<compile_context>
chip_gen: v7x
topology: tpu7x:2x2x1
jax: 0.10.0
libtpu: 0.0.40
codegen_flags: <defaults>
</compile_context>

<pallas_src>
import jax
import jax.numpy as jnp
from jax import lax
from jax.experimental import pallas as pl
from jax.experimental.pallas import tpu as pltpu

BN_EPS = 1e-5


def _round_up(v, m):
    return (v + m - 1) // m * m


def _cdiv(a, b):
    return -(-a // b)


def _sublane(dtype):
    return {4: 8, 2: 16, 1: 32}.get(jnp.dtype(dtype).itemsize, 8)


def _block_vmem_bytes(shape, dtype):
    """Rough VMEM footprint of one block (minor dim -> 128 lanes, 2nd minor ->
    dtype sublane tile)."""
    itemsize = jnp.dtype(dtype).itemsize
    lead = 1
    for d in shape[:-2]:
        lead *= int(d)
    return (lead * _round_up(int(shape[-2]), _sublane(dtype))
            * _round_up(int(shape[-1]), 128) * itemsize)


def _resident_spec(block_shape, index_map):
    """BlockSpec for a grid-invariant block: single-buffer it when the running
    Pallas supports pipeline_mode (saves the redundant second VMEM buffer)."""
    try:
        return pl.BlockSpec(block_shape, index_map, pipeline_mode=pl.Buffered(1))
    except Exception:  # older Pallas without pipeline_mode / Buffered(1)
        return pl.BlockSpec(block_shape, index_map)


# ---------------- wrapper + kernels ----------------

def conv2d_batchnorm_relu(x_nchw, w, b, gamma, beta, *, stride, padding,
                          target_rows=512, compute_dtype=jnp.bfloat16):
    """x_nchw: (N, Cin, H, W) f32; w: (Cout, Cin, KH, KW); b/gamma/beta: (Cout,).

    Returns the NCHW result of Conv2d -> BatchNorm2d(train) -> ReLU.
    `b` mirrors nn.Conv2d(bias=True) but is mathematically cancelled by the
    train-mode BN mean subtraction, so it is never used (eval-mode BN with
    running stats would have to re-add it).
    """
    del b  # exactly cancelled by BN's batch-mean subtraction (train mode)
    N, Cin, H, W = x_nchw.shape
    Cout, _, KH, KW = w.shape
    s = int(stride)
    p = int(padding)
    Ho = (H + 2 * p - KH) // s + 1
    Wo = (W + 2 * p - KW) // s + 1
    T = KH * KW
    oh_max = (KH - 1) // s
    ow_max = (KW - 1) // s

    Cout_p = _round_up(Cout, 128)          # lane-dense matmul / conv intermediate
    Wo_p = _round_up(Wo, 16)               # sublane-tile aligned (bf16 and f32)

    # rows (= output-H values) handled per phase-1 grid step
    TH = max(1, min(Ho, _cdiv(target_rows, Wo_p)))
    HT = _cdiv(Ho, TH)
    if N * HT < 2 and Ho > 1:              # keep >= 2 steps so megacore can split
        TH = _cdiv(Ho, 2)
        HT = _cdiv(Ho, TH)
    Ho_p = HT * TH
    MR = TH * Wo_p                         # matmul rows per step
    needs_mask = (Ho_p != Ho) or (Wo_p != Wo)

    # ---- glue: NCHW -> NHWC, zero-pad, stride-phase decomposition ----------
    # The s*s phases jointly hold every input pixel exactly once: no K-fold /
    # T-fold im2col duplication in HBM (this replaces v2's (M, KH*KW*Cin) xs).
    Hph = Ho_p + oh_max
    Wph = Wo_p + ow_max
    x = jnp.transpose(x_nchw, (0, 2, 3, 1)).astype(compute_dtype)        # NHWC
    xpad = jnp.pad(x, ((0, 0),
                       (p, s * Hph - H - p),
                       (p, s * Wph - W - p),
                       (0, 0)))
    xph = xpad.reshape(N, Hph, s, Wph, s, Cin)
    xph = jnp.transpose(xph, (0, 2, 4, 1, 3, 5)).reshape(N, s * s, Hph, Wph, Cin)

    # weights: (Cout, Cin, KH, KW) -> (T, Cin, Cout) -> pad Cout; tap = kh*KW+kw
    w_t = jnp.transpose(w, (2, 3, 1, 0)).reshape(T, Cin, Cout).astype(jnp.float32)
    w_t = jnp.pad(w_t, ((0, 0), (0, 0), (0, Cout_p - Cout))).astype(compute_dtype)

    conv_dtype = compute_dtype  # bf16 intermediate on the fast path (f32 stats)

    # ---- phase 1: resident-image conv (T micro-matmuls) + fused BN stats ----
    def conv_stats_kernel(xph_ref, w_ref, conv_ref, stats_ref, acc_ref):
        t = pl.program_id(1)
        row0 = t * TH
        acc_ref[...] = jnp.zeros_like(acc_ref)
        for kh in range(KH):
            ph, oh = kh % s, kh // s
            for kw in range(KW):
                pw, ow = kw % s, kw // s
                pidx = ph * s + pw
                v = xph_ref[0, pidx, pl.ds(row0 + oh, TH), pl.ds(ow, Wo_p), :]
                v = v.reshape(MR, Cin)
                acc_ref[...] += jnp.dot(v, w_ref[kh * KW + kw],
                                        preferred_element_type=jnp.float32)
        acc = acc_ref[...]
        if needs_mask:  # zero phantom rows/cols so BN statistics stay exact
            ridx = lax.broadcasted_iota(jnp.int32, (MR, 1), 0)
            ho = row0 + ridx // Wo_p
            wo = ridx % Wo_p
            acc = jnp.where((ho < Ho) & (wo < Wo), acc, 0.0)
        conv_ref[...] = acc.reshape(1, TH, Wo_p, Cout_p).astype(conv_ref.dtype)
        ssum = jnp.sum(acc, axis=0, keepdims=True)
        ssq = jnp.sum(acc * acc, axis=0, keepdims=True)
        stats_ref[...] = jnp.concatenate([ssum, ssq], axis=0)[None, None]

    xph_block = (1, s * s, Hph, Wph, Cin)
    w_block = (T, Cin, Cout_p)
    conv_block = (1, TH, Wo_p, Cout_p)
    stats_block = (1, 1, 2, Cout_p)

    est1 = (2 * _block_vmem_bytes(xph_block, compute_dtype)
            + 2 * _block_vmem_bytes(w_block, compute_dtype)
            + 2 * _block_vmem_bytes(conv_block, conv_dtype)
            + 2 * _block_vmem_bytes(stats_block, jnp.float32)
            + _block_vmem_bytes((MR, Cout_p), jnp.float32))
    vmem1 = max(32 * 2**20, min(int(1.5 * est1) + (4 << 20), 100 * 2**20))

    cost1 = pl.CostEstimate(
        flops=2 * N * Ho_p * Wo_p * T * Cin * Cout_p,
        transcendentals=0,
        bytes_accessed=int(xph.size * xph.dtype.itemsize
                           + w_t.size * w_t.dtype.itemsize
                           + N * Ho_p * Wo_p * Cout_p
                           * jnp.dtype(conv_dtype).itemsize
                           + N * HT * 2 * Cout_p * 4))

    conv_out, stats = pl.pallas_call(
        conv_stats_kernel,
        out_shape=(
            jax.ShapeDtypeStruct((N, Ho_p, Wo_p, Cout_p), conv_dtype),
            jax.ShapeDtypeStruct((N, HT, 2, Cout_p), jnp.float32),
        ),
        grid=(N, HT),
        in_specs=[
            pl.BlockSpec(xph_block, lambda n, t: (n, 0, 0, 0, 0)),
            _resident_spec(w_block, lambda n, t: (0, 0, 0)),
        ],
        out_specs=(
            pl.BlockSpec(conv_block, lambda n, t: (n, t, 0, 0)),
            pl.BlockSpec(stats_block, lambda n, t: (n, t, 0, 0)),
        ),
        scratch_shapes=[pltpu.VMEM((MR, Cout_p), jnp.float32)],
        compiler_params=pltpu.CompilerParams(
            dimension_semantics=("parallel", "parallel"),
            vmem_limit_bytes=vmem1),
        cost_estimate=cost1,
    )(xph, w_t)

    # ---- tiny cross-tile BN finalize in plain JAX ((Cout_p,) vectors only) ----
    Mreal = N * Ho * Wo
    tot = jnp.sum(stats, axis=(0, 1))                     # (2, Cout_p) f32
    mean = tot[0] / Mreal
    var = jnp.maximum(tot[1] / Mreal - mean * mean, 0.0)  # biased (train) var
    # TODO(synk): single-pass E[x^2]-E[x]^2 can lose precision when |mean|>>std;
    #             switch to per-tile shifted accumulation if tighter agreement
    #             with PyTorch BN is ever required.
    inv = lax.rsqrt(var + BN_EPS)
    gamma_p = jnp.pad(gamma.astype(jnp.float32), (0, Cout_p - Cout))
    beta_p = jnp.pad(beta.astype(jnp.float32), (0, Cout_p - Cout))
    scale = (gamma_p * inv).reshape(1, Cout_p)
    shift = (beta_p - mean * gamma_p * inv).reshape(1, Cout_p)

    # ---- phase 2: parallel normalize + ReLU, writes unpadded NHWC directly ----
    def bn_relu_kernel(conv_ref, scale_ref, shift_ref, o_ref):
        y = conv_ref[...].astype(jnp.float32) * scale_ref[...] + shift_ref[...]
        o_ref[...] = jnp.maximum(y, 0.0)[:, :, :Wo, :Cout]

    # independent, larger phase-2 row tile: biggest divisor of Ho_p under budget
    per_row = (_block_vmem_bytes((1, 1, Wo_p, Cout_p), conv_dtype)
               + _block_vmem_bytes((1, 1, Wo, Cout), jnp.float32))
    budget = 4 * 2**20
    TH2 = 1
    for d in range(1, Ho_p + 1):
        if Ho_p % d == 0 and d * per_row <= budget:
            TH2 = d
    HT2 = Ho_p // TH2

    est2 = (2 * _block_vmem_bytes((1, TH2, Wo_p, Cout_p), conv_dtype)
            + 2 * _block_vmem_bytes((1, TH2, Wo, Cout), jnp.float32)
            + 4 * _block_vmem_bytes((1, Cout_p), jnp.float32))
    vmem2 = max(32 * 2**20, min(int(1.5 * est2) + (4 << 20), 100 * 2**20))

    y = pl.pallas_call(
        bn_relu_kernel,
        out_shape=jax.ShapeDtypeStruct((N, Ho_p, Wo, Cout), jnp.float32),
        grid=(N, HT2),
        in_specs=[
            pl.BlockSpec((1, TH2, Wo_p, Cout_p), lambda n, t: (n, t, 0, 0)),
            _resident_spec((1, Cout_p), lambda n, t: (0, 0)),
            _resident_spec((1, Cout_p), lambda n, t: (0, 0)),
        ],
        out_specs=pl.BlockSpec((1, TH2, Wo, Cout), lambda n, t: (n, t, 0, 0)),
        compiler_params=pltpu.CompilerParams(
            dimension_semantics=("parallel", "parallel"),
            vmem_limit_bytes=vmem2),
    )(conv_out, scale, shift)

    if Ho_p != Ho:
        y = y[:, :Ho]
    # NHWC -> NCHW only to match the PyTorch module's output layout.
    return jnp.transpose(y, (0, 3, 1, 2))


# ---------------- pure-JAX reference (PyTorch semantics) ----------------

def _reference(x_nchw, w, b, gamma, beta, *, stride, padding):
    conv = lax.conv_general_dilated(
        x_nchw.astype(jnp.float32), w.astype(jnp.float32),
        window_strides=(stride, stride),
        padding=((padding, padding), (padding, padding)),
        dimension_numbers=("NCHW", "OIHW", "NCHW"),
    ) + b.reshape(1, -1, 1, 1)
    mean = jnp.mean(conv, axis=(0, 2, 3), keepdims=True)
    var = jnp.mean(jnp.square(conv - mean), axis=(0, 2, 3), keepdims=True)
    y = (conv - mean) * lax.rsqrt(var + BN_EPS)
    y = y * gamma.reshape(1, -1, 1, 1) + beta.reshape(1, -1, 1, 1)
    return jnp.maximum(y, 0.0)


if __name__ == "__main__":
    key = jax.random.PRNGKey(0)

    configs = [
        # (name, N, Cin, H, W, Cout, ksize, stride, pad)
        ("residual_block_3x3_s1", 2, 4, 16, 16, 8, 3, 1, 1),   # encoder CBR
        ("stem_7x7_s2",           2, 3, 16, 16, 8, 7, 2, 3),   # LinkNet stem (scaled)
    ]

    for idx, (name, N, Cin, H, W, Cout, ks, st, pd) in enumerate(configs):
        kx, kw_, kb = jax.random.split(jax.random.fold_in(key, idx), 3)
        x = jax.random.normal(kx, (N, Cin, H, W), dtype=jnp.float32)
        w = 0.1 * jax.random.normal(kw_, (Cout, Cin, ks, ks), dtype=jnp.float32)
        b = 0.1 * jax.random.normal(kb, (Cout,), dtype=jnp.float32)
        gamma = jnp.ones((Cout,), dtype=jnp.float32)   # fresh BatchNorm2d init
        beta = jnp.zeros((Cout,), dtype=jnp.float32)

        ref = _reference(x, w, b, gamma, beta, stride=st, padding=pd)

        # f32 matmul path (tight check) and bf16 matmul path (perf default);
        # an extra small-tile f32 run exercises the multi-tile + masking path.
        cases = [(jnp.float32, 1e-4, 512), (jnp.bfloat16, 1e-1, 512)]
        if idx == 0:
            cases.append((jnp.float32, 1e-4, 96))
        for cdt, atol, rows in cases:
            out = conv2d_batchnorm_relu(
                x, w, b, gamma, beta, stride=st, padding=pd,
                target_rows=rows, compute_dtype=cdt)
            out = jax.block_until_ready(out)
            assert out.shape == ref.shape, (name, out.shape, ref.shape)
            err = float(jnp.max(jnp.abs(out - ref)))
            assert err < atol, (name, str(cdt), rows, err)

    print("KERNEL_OK")
</pallas_src>

<mosaic_0001>
module attributes {stable_mosaic.version = 11 : i64} {
  func.func @conv_stats_kernel(%arg0: i32, %arg1: i32, %arg2: memref<1x1x18x18x4xf32, #tpu.memory_space<vmem>>, %arg3: memref<9x4x128xf32, #tpu.memory_space<vmem>>, %arg4: memref<1x16x16x128xf32, #tpu.memory_space<vmem>>, %arg5: memref<1x1x2x128xf32, #tpu.memory_space<vmem>>, %arg6: memref<256x128xf32, #tpu.memory_space<vmem>>) attributes {dimension_semantics = [#tpu.dimension_semantics<parallel>, #tpu.dimension_semantics<parallel>], iteration_bounds = array<i64: 2, 1>, scalar_prefetch = 0 : i64, scratch_operands = 1 : i64, tpu.core_type = #tpu.core_type<tc>, window_params = [{transform_indices = @transform_0, window_bounds = array<i64: 1, 1, 18, 18, 4>}, {pipeline_mode = #tpu.pipeline_mode<synchronous>, transform_indices = @transform_1, window_bounds = array<i64: 9, 4, 128>}, {transform_indices = @transform_2, window_bounds = array<i64: 1, 16, 16, 128>}, {transform_indices = @transform_3, window_bounds = array<i64: 1, 1, 2, 128>}]} {
    %c16_i32 = arith.constant 16 : i32
    %0 = arith.muli %arg1, %c16_i32 : i32
    %cst = arith.constant 0.000000e+00 : f32
    %1 = vector.broadcast %cst : f32 to vector<256x128xf32>
    %c0 = arith.constant 0 : index
    %c0_0 = arith.constant 0 : index
    %2 = vector.load %arg6[%c0, %c0_0] : memref<256x128xf32, #tpu.memory_space<vmem>>, vector<256x128xf32>
    tpu.vector_store %arg6[%c0, %c0_0], %1 {strides = array<i32>} : memref<256x128xf32, #tpu.memory_space<vmem>>, vector<256x128xf32>,
    %c0_i32 = arith.constant 0 : i32
    %3 = arith.addi %0, %c0_i32 : i32
    %c0_1 = arith.constant 0 : index
    %c0_2 = arith.constant 0 : index
    %4 = arith.index_cast %3 : i32 to index
    %c0_3 = arith.constant 0 : index
    %c0_4 = arith.constant 0 : index
    %5 = vector.load %arg2[%c0_1, %c0_2, %4, %c0_3, %c0_4] : memref<1x1x18x18x4xf32, #tpu.memory_space<vmem>>, vector<1x1x16x16x4xf32>
    %6 = vector.shape_cast %5 : vector<1x1x16x16x4xf32> to vector<16x16x4xf32>
    %7 = vector.shape_cast %6 : vector<16x16x4xf32> to vector<256x4xf32>
    %c0_5 = arith.constant 0 : index
    %c0_6 = arith.constant 0 : index
    %8 = vector.load %arg6[%c0_5, %c0_6] : memref<256x128xf32, #tpu.memory_space<vmem>>, vector<256x128xf32>
    %c0_7 = arith.constant 0 : index
    %c0_8 = arith.constant 0 : index
    %c0_9 = arith.constant 0 : index
    %9 = vector.load %arg3[%c0_7, %c0_8, %c0_9] : memref<9x4x128xf32, #tpu.memory_space<vmem>>, vector<1x4x128xf32>
    %10 = vector.shape_cast %9 : vector<1x4x128xf32> to vector<4x128xf32>
    %cst_10 = arith.constant dense<0.000000e+00> : vector<256x128xf32>
    %11 = tpu.matmul %7, %10, %cst_10 {dimension_numbers = #tpu.dot_dimension_numbers<[1], [0], [0], [1], [0, 0, 1, 1], [], []>} : vector<256x4xf32>, vector<4x128xf32>, vector<256x128xf32> -> vector<256x128xf32>
    %12 = arith.addf %8, %11 : vector<256x128xf32>
    %c0_11 = arith.constant 0 : index
    %c0_12 = arith.constant 0 : index
    %13 = vector.load %arg6[%c0_11, %c0_12] : memref<256x128xf32, #tpu.memory_space<vmem>>, vector<256x128xf32>
    tpu.vector_store %arg6[%c0_11, %c0_12], %12 {strides = array<i32>} : memref<256x128xf32, #tpu.memory_space<vmem>>, vector<256x128xf32>,
    %c0_i32_13 = arith.constant 0 : i32
    %14 = arith.addi %0, %c0_i32_13 : i32
    %c0_14 = arith.constant 0 : index
    %c0_15 = arith.constant 0 : index
    %15 = arith.index_cast %14 : i32 to index
    %c1 = arith.constant 1 : index
    %c0_16 = arith.constant 0 : index
    %16 = vector.load %arg2[%c0_14, %c0_15, %15, %c1, %c0_16] : memref<1x1x18x18x4xf32, #tpu.memory_space<vmem>>, vector<1x1x16x16x4xf32>
    %17 = vector.shape_cast %16 : vector<1x1x16x16x4xf32> to vector<16x16x4xf32>
    %18 = vector.shape_cast %17 : vector<16x16x4xf32> to vector<256x4xf32>
    %c0_17 = arith.constant 0 : index
    %c0_18 = arith.constant 0 : index
    %19 = vector.load %arg6[%c0_17, %c0_18] : memref<256x128xf32, #tpu.memory_space<vmem>>, vector<256x128xf32>
    %c1_19 = arith.constant 1 : index
    %c0_20 = arith.constant 0 : index
    %c0_21 = arith.constant 0 : index
    %20 = vector.load %arg3[%c1_19, %c0_20, %c0_21] : memref<9x4x128xf32, #tpu.memory_space<vmem>>, vector<1x4x128xf32>
    %21 = vector.shape_cast %20 : vector<1x4x128xf32> to vector<4x128xf32>
    %cst_22 = arith.constant dense<0.000000e+00> : vector<256x128xf32>
    %22 = tpu.matmul %18, %21, %cst_22 {dimension_numbers = #tpu.dot_dimension_numbers<[1], [0], [0], [1], [0, 0, 1, 1], [], []>} : vector<256x4xf32>, vector<4x128xf32>, vector<256x128xf32> -> vector<256x128xf32>
    %23 = arith.addf %19, %22 : vector<256x128xf32>
    %c0_23 = arith.constant 0 : index
    %c0_24 = arith.constant 0 : index
    %24 = vector.load %arg6[%c0_23, %c0_24] : memref<256x128xf32, #tpu.memory_space<vmem>>, vector<256x128xf32>
    tpu.vector_store %arg6[%c0_23, %c0_24], %23 {strides = array<i32>} : memref<256x128xf32, #tpu.memory_space<vmem>>, vector<256x128xf32>,
    %c0_i32_25 = arith.constant 0 : i32
    %25 = arith.addi %0, %c0_i32_25 : i32
    %c0_26 = arith.constant 0 : index
    %c0_27 = arith.constant 0 : index
    %26 = arith.index_cast %25 : i32 to index
    %c2 = arith.constant 2 : index
    %c0_28 = arith.constant 0 : index
    %27 = vector.load %arg2[%c0_26, %c0_27, %26, %c2, %c0_28] : memref<1x1x18x18x4xf32, #tpu.memory_space<vmem>>, vector<1x1x16x16x4xf32>
    %28 = vector.shape_cast %27 : vector<1x1x16x16x4xf32> to vector<16x16x4xf32>
    %29 = vector.shape_cast %28 : vector<16x16x4xf32> to vector<256x4xf32>
    %c0_29 = arith.constant 0 : index
    %c0_30 = arith.constant 0 : index
    %30 = vector.load %arg6[%c0_29, %c0_30] : memref<256x128xf32, #tpu.memory_space<vmem>>, vector<256x128xf32>
    %c2_31 = arith.constant 2 : index
    %c0_32 = arith.constant 0 : index
    %c0_33 = arith.constant 0 : index
    %31 = vector.load %arg3[%c2_31, %c0_32, %c0_33] : memref<9x4x128xf32, #tpu.memory_space<vmem>>, vector<1x4x128xf32>
    %32 = vector.shape_cast %31 : vector<1x4x128xf32> to vector<4x128xf32>
    %cst_34 = arith.constant dense<0.000000e+00> : vector<256x128xf32>
    %33 = tpu.matmul %29, %32, %cst_34 {dimension_numbers = #tpu.dot_dimension_numbers<[1], [0], [0], [1], [0, 0, 1, 1], [], []>} : vector<256x4xf32>, vector<4x128xf32>, vector<256x128xf32> -> vector<256x128xf32>
    %34 = arith.addf %30, %33 : vector<256x128xf32>
    %c0_35 = arith.constant 0 : index
    %c0_36 = arith.constant 0 : index
    %35 = vector.load %arg6[%c0_35, %c0_36] : memref<256x128xf32, #tpu.memory_space<vmem>>, vector<256x128xf32>
    tpu.vector_store %arg6[%c0_35, %c0_36], %34 {strides = array<i32>} : memref<256x128xf32, #tpu.memory_space<vmem>>, vector<256x128xf32>,
    %c1_i32 = arith.constant 1 : i32
    %36 = arith.addi %0, %c1_i32 : i32
    %c0_37 = arith.constant 0 : index
    %c0_38 = arith.constant 0 : index
    %37 = arith.index_cast %36 : i32 to index
    %c0_39 = arith.constant 0 : index
    %c0_40 = arith.constant 0 : index
    %38 = vector.load %arg2[%c0_37, %c0_38, %37, %c0_39, %c0_40] : memref<1x1x18x18x4xf32, #tpu.memory_space<vmem>>, vector<1x1x16x16x4xf32>
    %39 = vector.shape_cast %38 : vector<1x1x16x16x4xf32> to vector<16x16x4xf32>
    %40 = vector.shape_cast %39 : vector<16x16x4xf32> to vector<256x4xf32>
    %c0_41 = arith.constant 0 : index
    %c0_42 = arith.constant 0 : index
    %41 = vector.load %arg6[%c0_41, %c0_42] : memref<256x128xf32, #tpu.memory_space<vmem>>, vector<256x128xf32>
    %c3 = arith.constant 3 : index
    %c0_43 = arith.constant 0 : index
    %c0_44 = arith.constant 0 : index
    %42 = vector.load %arg3[%c3, %c0_43, %c0_44] : memref<9x4x128xf32, #tpu.memory_space<vmem>>, vector<1x4x128xf32>
    %43 = vector.shape_cast %42 : vector<1x4x128xf32> to vector<4x128xf32>
    %cst_45 = arith.constant dense<0.000000e+00> : vector<256x128xf32>
    %44 = tpu.matmul %40, %43, %cst_45 {dimension_numbers = #tpu.dot_dimension_numbers<[1], [0], [0], [1], [0, 0, 1, 1], [], []>} : vector<256x4xf32>, vector<4x128xf32>, vector<256x128xf32> -> vector<256x128xf32>
    %45 = arith.addf %41, %44 : vector<256x128xf32>
    %c0_46 = arith.constant 0 : index
    %c0_47 = arith.constant 0 : index
    %46 = vector.load %arg6[%c0_46, %c0_47] : memref<256x128xf32, #tpu.memory_space<vmem>>, vector<256x128xf32>
    tpu.vector_store %arg6[%c0_46, %c0_47], %45 {strides = array<i32>} : memref<256x128xf32, #tpu.memory_space<vmem>>, vector<256x128xf32>,
    %c1_i32_48 = arith.constant 1 : i32
    %47 = arith.addi %0, %c1_i32_48 : i32
    %c0_49 = arith.constant 0 : index
    %c0_50 = arith.constant 0 : index
    %48 = arith.index_cast %47 : i32 to index
    %c1_51 = arith.constant 1 : index
    %c0_52 = arith.constant 0 : index
    %49 = vector.load %arg2[%c0_49, %c0_50, %48, %c1_51, %c0_52] : memref<1x1x18x18x4xf32, #tpu.memory_space<vmem>>, vector<1x1x16x16x4xf32>
    %50 = vector.shape_cast %49 : vector<1x1x16x16x4xf32> to vector<16x16x4xf32>
    %51 = vector.shape_cast %50 : vector<16x16x4xf32> to vector<256x4xf32>
    %c0_53 = arith.constant 0 : index
    %c0_54 = arith.constant 0 : index
    %52 = vector.load %arg6[%c0_53, %c0_54] : memref<256x128xf32, #tpu.memory_space<vmem>>, vector<256x128xf32>
    %c4 = arith.constant 4 : index
    %c0_55 = arith.constant 0 : index
    %c0_56 = arith.constant 0 : index
    %53 = vector.load %arg3[%c4, %c0_55, %c0_56] : memref<9x4x128xf32, #tpu.memory_space<vmem>>, vector<1x4x128xf32>
    %54 = vector.shape_cast %53 : vector<1x4x128xf32> to vector<4x128xf32>
    %cst_57 = arith.constant dense<0.000000e+00> : vector<256x128xf32>
    %55 = tpu.matmul %51, %54, %cst_57 {dimension_numbers = #tpu.dot_dimension_numbers<[1], [0], [0], [1], [0, 0, 1, 1], [], []>} : vector<256x4xf32>, vector<4x128xf32>, vector<256x128xf32> -> vector<256x128xf32>
    %56 = arith.addf %52, %55 : vector<256x128xf32>
    %c0_58 = arith.constant 0 : index
    %c0_59 = arith.constant 0 : index
    %57 = vector.load %arg6[%c0_58, %c0_59] : memref<256x128xf32, #tpu.memory_space<vmem>>, vector<256x128xf32>
    tpu.vector_store %arg6[%c0_58, %c0_59], %56 {strides = array<i32>} : memref<256x128xf32, #tpu.memory_space<vmem>>, vector<256x128xf32>,
    %c1_i32_60 = arith.constant 1 : i32
    %58 = arith.addi %0, %c1_i32_60 : i32
    %c0_61 = arith.constant 0 : index
    %c0_62 = arith.constant 0 : index
    %59 = arith.index_cast %58 : i32 to index
    %c2_63 = arith.constant 2 : index
    %c0_64 = arith.constant 0 : index
    %60 = vector.load %arg2[%c0_61, %c0_62, %59, %c2_63, %c0_64] : memref<1x1x18x18x4xf32, #tpu.memory_space<vmem>>, vector<1x1x16x16x4xf32>
    %61 = vector.shape_cast %60 : vector<1x1x16x16x4xf32> to vector<16x16x4xf32>
    %62 = vector.shape_cast %61 : vector<16x16x4xf32> to vector<256x4xf32>
    %c0_65 = arith.constant 0 : index
    %c0_66 = arith.constant 0 : index
    %63 = vector.load %arg6[%c0_65, %c0_66] : memref<256x128xf32, #tpu.memory_space<vmem>>, vector<256x128xf32>
    %c5 = arith.constant 5 : index
    %c0_67 = arith.constant 0 : index
    %c0_68 = arith.constant 0 : index
    %64 = vector.load %arg3[%c5, %c0_67, %c0_68] : memref<9x4x128xf32, #tpu.memory_space<vmem>>, vector<1x4x128xf32>
    %65 = vector.shape_cast %64 : vector<1x4x128xf32> to vector<4x128xf32>
    %cst_69 = arith.constant dense<0.000000e+00> : vector<256x128xf32>
    %66 = tpu.matmul %62, %65, %cst_69 {dimension_numbers = #tpu.dot_dimension_numbers<[1], [0], [0], [1], [0, 0, 1, 1], [], []>} : vector<256x4xf32>, vector<4x128xf32>, vector<256x128xf32> -> vector<256x128xf32>
    %67 = arith.addf %63, %66 : vector<256x128xf32>
    %c0_70 = arith.constant 0 : index
    %c0_71 = arith.constant 0 : index
    %68 = vector.load %arg6[%c0_70, %c0_71] : memref<256x128xf32, #tpu.memory_space<vmem>>, vector<256x128xf32>
    tpu.vector_store %arg6[%c0_70, %c0_71], %67 {strides = array<i32>} : memref<256x128xf32, #tpu.memory_space<vmem>>, vector<256x128xf32>,
    %c2_i32 = arith.constant 2 : i32
    %69 = arith.addi %0, %c2_i32 : i32
    %c0_72 = arith.constant 0 : index
    %c0_73 = arith.constant 0 : index
    %70 = arith.index_cast %69 : i32 to index
    %c0_74 = arith.constant 0 : index
    %c0_75 = arith.constant 0 : index
    %71 = vector.load %arg2[%c0_72, %c0_73, %70, %c0_74, %c0_75] : memref<1x1x18x18x4xf32, #tpu.memory_space<vmem>>, vector<1x1x16x16x4xf32>
    %72 = vector.shape_cast %71 : vector<1x1x16x16x4xf32> to vector<16x16x4xf32>
    %73 = vector.shape_cast %72 : vector<16x16x4xf32> to vector<256x4xf32>
    %c0_76 = arith.constant 0 : index
    %c0_77 = arith.constant 0 : index
    %74 = vector.load %arg6[%c0_76, %c0_77] : memref<256x128xf32, #tpu.memory_space<vmem>>, vector<256x128xf32>
    %c6 = arith.constant 6 : index
    %c0_78 = arith.constant 0 : index
    %c0_79 = arith.constant 0 : index
    %75 = vector.load %arg3[%c6, %c0_78, %c0_79] : memref<9x4x128xf32, #tpu.memory_space<vmem>>, vector<1x4x128xf32>
    %76 = vector.shape_cast %75 : vector<1x4x128xf32> to vector<4x128xf32>
    %cst_80 = arith.constant dense<0.000000e+00> : vector<256x128xf32>
    %77 = tpu.matmul %73, %76, %cst_80 {dimension_numbers = #tpu.dot_dimension_numbers<[1], [0], [0], [1], [0, 0, 1, 1], [], []>} : vector<256x4xf32>, vector<4x128xf32>, vector<256x128xf32> -> vector<256x128xf32>
    %78 = arith.addf %74, %77 : vector<256x128xf32>
    %c0_81 = arith.constant 0 : index
    %c0_82 = arith.constant 0 : index
    %79 = vector.load %arg6[%c0_81, %c0_82] : memref<256x128xf32, #tpu.memory_space<vmem>>, vector<256x128xf32>
    tpu.vector_store %arg6[%c0_81, %c0_82], %78 {strides = array<i32>} : memref<256x128xf32, #tpu.memory_space<vmem>>, vector<256x128xf32>,
    %c2_i32_83 = arith.constant 2 : i32
    %80 = arith.addi %0, %c2_i32_83 : i32
    %c0_84 = arith.constant 0 : index
    %c0_85 = arith.constant 0 : index
    %81 = arith.index_cast %80 : i32 to index
    %c1_86 = arith.constant 1 : index
    %c0_87 = arith.constant 0 : index
    %82 = vector.load %arg2[%c0_84, %c0_85, %81, %c1_86, %c0_87] : memref<1x1x18x18x4xf32, #tpu.memory_space<vmem>>, vector<1x1x16x16x4xf32>
    %83 = vector.shape_cast %82 : vector<1x1x16x16x4xf32> to vector<16x16x4xf32>
    %84 = vector.shape_cast %83 : vector<16x16x4xf32> to vector<256x4xf32>
    %c0_88 = arith.constant 0 : index
    %c0_89 = arith.constant 0 : index
    %85 = vector.load %arg6[%c0_88, %c0_89] : memref<256x128xf32, #tpu.memory_space<vmem>>, vector<256x128xf32>
    %c7 = arith.constant 7 : index
    %c0_90 = arith.constant 0 : index
    %c0_91 = arith.constant 0 : index
    %86 = vector.load %arg3[%c7, %c0_90, %c0_91] : memref<9x4x128xf32, #tpu.memory_space<vmem>>, vector<1x4x128xf32>
    %87 = vector.shape_cast %86 : vector<1x4x128xf32> to vector<4x128xf32>
    %cst_92 = arith.constant dense<0.000000e+00> : vector<256x128xf32>
    %88 = tpu.matmul %84, %87, %cst_92 {dimension_numbers = #tpu.dot_dimension_numbers<[1], [0], [0], [1], [0, 0, 1, 1], [], []>} : vector<256x4xf32>, vector<4x128xf32>, vector<256x128xf32> -> vector<256x128xf32>
    %89 = arith.addf %85, %88 : vector<256x128xf32>
    %c0_93 = arith.constant 0 : index
    %c0_94 = arith.constant 0 : index
    %90 = vector.load %arg6[%c0_93, %c0_94] : memref<256x128xf32, #tpu.memory_space<vmem>>, vector<256x128xf32>
    tpu.vector_store %arg6[%c0_93, %c0_94], %89 {strides = array<i32>} : memref<256x128xf32, #tpu.memory_space<vmem>>, vector<256x128xf32>,
    %c2_i32_95 = arith.constant 2 : i32
    %91 = arith.addi %0, %c2_i32_95 : i32
    %c0_96 = arith.constant 0 : index
    %c0_97 = arith.constant 0 : index
    %92 = arith.index_cast %91 : i32 to index
    %c2_98 = arith.constant 2 : index
    %c0_99 = arith.constant 0 : index
    %93 = vector.load %arg2[%c0_96, %c0_97, %92, %c2_98, %c0_99] : memref<1x1x18x18x4xf32, #tpu.memory_space<vmem>>, vector<1x1x16x16x4xf32>
    %94 = vector.shape_cast %93 : vector<1x1x16x16x4xf32> to vector<16x16x4xf32>
    %95 = vector.shape_cast %94 : vector<16x16x4xf32> to vector<256x4xf32>
    %c0_100 = arith.constant 0 : index
    %c0_101 = arith.constant 0 : index
    %96 = vector.load %arg6[%c0_100, %c0_101] : memref<256x128xf32, #tpu.memory_space<vmem>>, vector<256x128xf32>
    %c8 = arith.constant 8 : index
    %c0_102 = arith.constant 0 : index
    %c0_103 = arith.constant 0 : index
    %97 = vector.load %arg3[%c8, %c0_102, %c0_103] : memref<9x4x128xf32, #tpu.memory_space<vmem>>, vector<1x4x128xf32>
    %98 = vector.shape_cast %97 : vector<1x4x128xf32> to vector<4x128xf32>
    %cst_104 = arith.constant dense<0.000000e+00> : vector<256x128xf32>
    %99 = tpu.matmul %95, %98, %cst_104 {dimension_numbers = #tpu.dot_dimension_numbers<[1], [0], [0], [1], [0, 0, 1, 1], [], []>} : vector<256x4xf32>, vector<4x128xf32>, vector<256x128xf32> -> vector<256x128xf32>
    %100 = arith.addf %96, %99 : vector<256x128xf32>
    %c0_105 = arith.constant 0 : index
    %c0_106 = arith.constant 0 : index
    %101 = vector.load %arg6[%c0_105, %c0_106] : memref<256x128xf32, #tpu.memory_space<vmem>>, vector<256x128xf32>
    tpu.vector_store %arg6[%c0_105, %c0_106], %100 {strides = array<i32>} : memref<256x128xf32, #tpu.memory_space<vmem>>, vector<256x128xf32>,
    %c0_107 = arith.constant 0 : index
    %c0_108 = arith.constant 0 : index
    %102 = vector.load %arg6[%c0_107, %c0_108] : memref<256x128xf32, #tpu.memory_space<vmem>>, vector<256x128xf32>
    %103 = vector.shape_cast %102 : vector<256x128xf32> to vector<1x16x16x128xf32>
    %c0_109 = arith.constant 0 : index
    %c0_110 = arith.constant 0 : index
    %c0_111 = arith.constant 0 : index
    %c0_112 = arith.constant 0 : index
    %104 = vector.load %arg4[%c0_109, %c0_110, %c0_111, %c0_112] : memref<1x16x16x128xf32, #tpu.memory_space<vmem>>, vector<1x16x16x128xf32>
    tpu.vector_store %arg4[%c0_109, %c0_110, %c0_111, %c0_112], %103 {strides = array<i32>} : memref<1x16x16x128xf32, #tpu.memory_space<vmem>>, vector<1x16x16x128xf32>,
    %cst_113 = arith.constant dense<0.000000e+00> : vector<128xf32>
    %105 = vector.multi_reduction <add>, %102, %cst_113 [0] : vector<256x128xf32> to vector<128xf32>
    %106 = vector.shape_cast %105 : vector<128xf32> to vector<1x128xf32>
    %107 = arith.mulf %102, %102 : vector<256x128xf32>
    %cst_114 = arith.constant dense<0.000000e+00> : vector<128xf32>
    %108 = vector.multi_reduction <add>, %107, %cst_114 [0] : vector<256x128xf32> to vector<128xf32>
    %109 = vector.shape_cast %108 : vector<128xf32> to vector<1x128xf32>
    %110 = tpu.concatenate %106, %109 in 0 : vector<1x128xf32>, vector<1x128xf32> -> vector<2x128xf32>
    %111 = vector.shape_cast %110 : vector<2x128xf32> to vector<1x1x2x128xf32>
    %c0_115 = arith.constant 0 : index
    %c0_116 = arith.constant 0 : index
    %c0_117 = arith.constant 0 : index
    %c0_118 = arith.constant 0 : index
    %112 = vector.load %arg5[%c0_115, %c0_116, %c0_117, %c0_118] : memref<1x1x2x128xf32, #tpu.memory_space<vmem>>, vector<1x1x2x128xf32>
    tpu.vector_store %arg5[%c0_115, %c0_116, %c0_117, %c0_118], %111 {strides = array<i32>} : memref<1x1x2x128xf32, #tpu.memory_space<vmem>>, vector<1x1x2x128xf32>,
    return
  }
  func.func @transform_0(%arg0: i32, %arg1: i32) -> (i32, i32, i32, i32, i32) {
    %c0_i32 = arith.constant 0 : i32
    %c0_i32_0 = arith.constant 0 : i32
    %c0_i32_1 = arith.constant 0 : i32
    %c0_i32_2 = arith.constant 0 : i32
    %c0_i32_3 = arith.constant 0 : i32
    return %arg0, %c0_i32, %c0_i32_0, %c0_i32_1, %c0_i32_2 : i32, i32, i32, i32, i32
  }
  func.func @transform_1(%arg0: i32, %arg1: i32) -> (i32, i32, i32) {
    %c0_i32 = arith.constant 0 : i32
    %c0_i32_0 = arith.constant 0 : i32
    %c0_i32_1 = arith.constant 0 : i32
    %c0_i32_2 = arith.constant 0 : i32
    return %c0_i32, %c0_i32_0, %c0_i32_1 : i32, i32, i32
  }
  func.func @transform_2(%arg0: i32, %arg1: i32) -> (i32, i32, i32, i32) {
    %c0_i32 = arith.constant 0 : i32
    %c0_i32_0 = arith.constant 0 : i32
    %c0_i32_1 = arith.constant 0 : i32
    return %arg0, %arg1, %c0_i32, %c0_i32_0 : i32, i32, i32, i32
  }
  func.func @transform_3(%arg0: i32, %arg1: i32) -> (i32, i32, i32, i32) {
    %c0_i32 = arith.constant 0 : i32
    %c0_i32_0 = arith.constant 0 : i32
    %c0_i32_1 = arith.constant 0 : i32
    return %arg0, %arg1, %c0_i32, %c0_i32_0 : i32, i32, i32, i32
  }
}

</mosaic_0001>

<llo_original>
// kernel: tpu_custom_call.1
$region0: #{tpu_custom_call.1}
  #allocation0 [shape = 'u32[]', space=smem, size = 0x4, offset = 0x4, fixed_abs, tag = 'smem constant byte address 0x4 - core index']
  #allocation1 [shape = 'u32[144,128]{1,0:T(1,128)}', space=vmem, size = 0x12000, scoped, tag = 'internal scratch']
  #allocation2 [shape = 'f32[256,128]{1,0:T(8,128)}', space=vmem, size = 0x20000, scoped, tag = 'scratch operand']
  %s0 = inlined_call_operand.vmem [shape: f32[2,1,18,18,4], index: 0, kind: input, shape index: {}]
  %s1 = inlined_call_operand.vmem [shape: f32[9,4,128], index: 1, kind: input, shape index: {}]
  %s2 = inlined_call_operand.hbm [shape: f32[2,16,16,128], index: 2, kind: output, shape index: {0}]
  %s3 = inlined_call_operand.hbm [shape: f32[2,1,2,128], index: 3, kind: output, shape index: {1}]
  %4 = xla_tuple %s2, %s3
  %s5 = sld [smem:[#allocation0]]
  $region49: #{tpu_custom_call.1} parent=0
    _
  %s7 = ssub.s32 1, %s5
  %s8 = scalar_select 0, %s7, %s5
  $region1: #{tpu_custom_call.1} parent=0
    #allocation3 [shape = 'u8[262144]{0}', space=vmem, size = 0x40000, scoped, tag = 'output window, operand 0']
    #allocation4 [shape = 's32[2]{0}', space=sflag, size = 0x8, scoped, tag = 'scoped memory for tpu_custom_call.1']
    #allocation5 [shape = 'u8[2048]{0}', space=vmem, size = 0x800, scoped, tag = 'output window, operand 1']
    #allocation6 [shape = 's32[2]{0}', space=sflag, size = 0x8, scoped, tag = 'scoped memory for tpu_custom_call.1']
    %9 = vsyncpa [#allocation4], 0
    %s10 = scalar_lea.sflag [#allocation4], 1
    %11 = vsyncpa %s10, 0
    %12 = vsyncpa [#allocation6], 0
    %s13 = scalar_lea.sflag [#allocation6], 1
    %14 = vsyncpa %s13, 0
    loop: start=0, step=1, limit=4
    $region2: #{tpu_custom_call.1} parent=1 // loop_pre_header
      _
    $region3: #{tpu_custom_call.1} parent=1 // loop_header
      %s16 = sphi 0, %s20
      %p17 = scmp.ge.s32.totalorder %s16, 4
      %s23 = sphi 0, %s35
      %s24 = sphi 0, %s31
      %s25 = sphi 0, %s23
      %s26 = sphi 0, %s24
      %s27 = sphi 0, %s25
      %s28 = sphi 0, %s26
      %s38 = sphi 0, %s40
      %s41 = sphi 0, %s38
      %s42 = sphi 0, %s41
      %s58 = sphi 0, %s42
      %s62 = sphi 0, %s62
      %s64 = sphi 0, %s62
      %s65 = sphi 0, %s64
      %s79 = sphi 0, %s65
      %s87 = sphi 0, %s89
      %s90 = sphi 0, %s87
      %s91 = sphi 0, %s90
      %s107 = sphi 0, %s91
      %s115 = sphi 0, %s117
      %s118 = sphi 0, %s115
      %s119 = sphi 0, %s118
      %s135 = sphi 0, %s119
    $region4: #{tpu_custom_call.1} parent=1 // loop_header_branch
      %19 = sbr.rel (%p17) target = $region8
    $region5: #{tpu_custom_call.1} parent=1 // loop_body
      %s21 = ssub.s32 %s16, 1
      %s22 = ssub.s32 %s16, 2
      %s29 = sadd.s32 1, %s24
      %p30 = scmp.ge.s32.totalorder %s29, 1
      %s31 = scalar_select %p30, 0, %s29
      %s32 = sadd.s32 1, %s23
      %s33 = scalar_select %p30, %s32, %s23
      %p34 = scmp.ge.s32.totalorder %s33, 2
      %s35 = scalar_select %p34, 0, %s33
      %s36 = ssub.s32 %s23, %s35
      %p37 = scmp.eq.s32.totalorder %s36, 0
      %s39 = sadd.s32 %s38, 1
      %s40 = scalar_select %p37, %s38, %s39
      %p43 = pneg %p37
      %p44 = scmp.eq.s32.totalorder %s16, 1
      %p45 = por %p43, %p44
      %p46 = scmp.ne.s32.totalorder %s38, %s41
      %p47 = scmp.eq.s32.totalorder %s16, 0
      %p48 = por %p46, %p47
      %p49 = scmp.ne.s32.totalorder %s38, %s41
      %p50 = scmp.eq.s32.totalorder %s21, 1
      %p51 = por %p49, %p50
      %p52 = scmp.ne.s32.totalorder %s41, %s42
      %p53 = scmp.eq.s32.totalorder %s21, 0
      %p54 = por %p52, %p53
      %p55 = scmp.ne.s32.totalorder %s41, %s42
      %p56 = scmp.eq.s32.totalorder %s22, 1
      %p57 = por %p55, %p56
      %p59 = scmp.ne.s32.totalorder %s42, %s58
      %p60 = scmp.eq.s32.totalorder %s22, 0
      %p61 = por %p59, %p60
      %s63 = sadd.s32 %s62, 1
      %p66 = scmp.eq.s32.totalorder %s16, 1
      %p67 = scmp.ne.s32.totalorder %s62, %s64
      %p68 = scmp.eq.s32.totalorder %s16, 0
      %p69 = por %p67, %p68
      %p70 = scmp.ne.s32.totalorder %s62, %s64
      %p71 = scmp.eq.s32.totalorder %s21, 1
      %p72 = por %p70, %p71
      %p73 = scmp.ne.s32.totalorder %s64, %s65
      %p74 = scmp.eq.s32.totalorder %s21, 0
      %p75 = por %p73, %p74
      %p76 = scmp.ne.s32.totalorder %s64, %s65
      %p77 = scmp.eq.s32.totalorder %s22, 1
      %p78 = por %p76, %p77
      %p80 = scmp.ne.s32.totalorder %s65, %s79
      %p81 = scmp.eq.s32.totalorder %s22, 0
      %p82 = por %p80, %p81
      %s83 = ssub.s32 %s23, %s35
      %s84 = ssub.s32 %s24, %s31
      %s85 = sor.u32 %s83, %s84
      %p86 = scmp.eq.s32.totalorder %s85, 0
      %s88 = sadd.s32 %s87, 1
      %s89 = scalar_select %p86, %s87, %s88
      %p92 = pneg %p86
      %p93 = scmp.eq.s32.totalorder %s16, 1
      %p94 = por %p92, %p93
      %p95 = scmp.ne.s32.totalorder %s87, %s90
      %p96 = scmp.eq.s32.totalorder %s16, 0
      %p97 = por %p95, %p96
      %p98 = scmp.ne.s32.totalorder %s87, %s90
      %p99 = scmp.eq.s32.totalorder %s21, 1
      %p100 = por %p98, %p99
      %p101 = scmp.ne.s32.totalorder %s90, %s91
      %p102 = scmp.eq.s32.totalorder %s21, 0
      %p103 = por %p101, %p102
      %p104 = scmp.ne.s32.totalorder %s90, %s91
      %p105 = scmp.eq.s32.totalorder %s22, 1
      %p106 = por %p104, %p105
      %p108 = scmp.ne.s32.totalorder %s91, %s107
      %p109 = scmp.eq.s32.totalorder %s22, 0
      %p110 = por %p108, %p109
      %s111 = ssub.s32 %s23, %s35
      %s112 = ssub.s32 %s24, %s31
      %s113 = sor.u32 %s111, %s112
      %p114 = scmp.eq.s32.totalorder %s113, 0
      %s116 = sadd.s32 %s115, 1
      %s117 = scalar_select %p114, %s115, %s116
      %p120 = pneg %p114
      %p121 = scmp.eq.s32.totalorder %s16, 1
      %p122 = por %p120, %p121
      %p123 = scmp.ne.s32.totalorder %s115, %s118
      %p124 = scmp.eq.s32.totalorder %s16, 0
      %p125 = por %p123, %p124
      %p126 = scmp.ne.s32.totalorder %s115, %s118
      %p127 = scmp.eq.s32.totalorder %s21, 1
      %p128 = por %p126, %p127
      %p129 = scmp.ne.s32.totalorder %s118, %s119
      %p130 = scmp.eq.s32.totalorder %s21, 0
      %p131 = por %p129, %p130
      %p132 = scmp.ne.s32.totalorder %s118, %s119
      %p133 = scmp.eq.s32.totalorder %s22, 1
      %p134 = por %p132, %p133
      %p136 = scmp.ne.s32.totalorder %s119, %s135
      %p137 = scmp.eq.s32.totalorder %s22, 0
      %p138 = por %p136, %p137
      %p139 = scmp.le.s32.totalorder 1, %s16
      %p140 = scmp.lt.s32.totalorder %s16, 3
      %p141 = pnand %p139, %p140
      %p142 = pneg %p141
      // Predicated region
      $region9: #{tpu_custom_call.1} parent=5 // pred_check
        _
      $region10: #{tpu_custom_call.1} parent=5 // pred_check_branch
        %144 = sbr.rel (%p141) target = $region12
      $region11: #{tpu_custom_call.1} parent=5 // pred_region
        %s145 = ssub.s32 %s16, 1
        // Predicated region
        $region13: #{tpu_custom_call.1} parent=11 // pred_check
          %p146 = pneg %p75
        $region14: #{tpu_custom_call.1} parent=11 // pred_check_branch
          %148 = sbr.rel (%p146) target = $region16
        $region15: #{tpu_custom_call.1} parent=11 // pred_region
          _
        $region16: #{tpu_custom_call.1} parent=11 // pred_fallthru
          _
      $region12: #{tpu_custom_call.1} parent=5 // pred_fallthru
        _
      %p149 = scmp.lt.s32.totalorder %s16, 2
      // Predicated region
      $region17: #{tpu_custom_call.1} parent=5 // pred_check
        %p150 = pneg %p149
      $region18: #{tpu_custom_call.1} parent=5 // pred_check_branch
        %152 = sbr.rel (%p150) target = $region20
      $region19: #{tpu_custom_call.1} parent=5 // pred_region
        // Predicated region
        $region21: #{tpu_custom_call.1} parent=19 // pred_check
          %p153 = pneg %p48
        $region22: #{tpu_custom_call.1} parent=19 // pred_check_branch
          %155 = sbr.rel (%p153) target = $region24
        $region23: #{tpu_custom_call.1} parent=19 // pred_region
          %p156 = scmp.lt.s32.totalorder %s23, 1
          %s157 = scalar_select %p156, %s23, 1
          %s158 = smul.addr %s157, 54
          %s159 = smul.addr %s158, 8
          %s160 = scalar_lea.vmem %s0, %s159
        $region24: #{tpu_custom_call.1} parent=19 // pred_fallthru
          _
      $region20: #{tpu_custom_call.1} parent=5 // pred_fallthru
        _
      %p161 = scmp.le.s32.totalorder 1, %s16
      %p162 = scmp.lt.s32.totalorder %s16, 3
      %p163 = pnand %p161, %p162
      %p164 = pneg %p163
      // Predicated region
      $region25: #{tpu_custom_call.1} parent=5 // pred_check
        _
      $region26: #{tpu_custom_call.1} parent=5 // pred_check_branch
        %166 = sbr.rel (%p163) target = $region28
      $region27: #{tpu_custom_call.1} parent=5 // pred_region
        %s167 = ssub.s32 %s16, 1
        %p168 = scmp.lt.s32.totalorder %s25, 1
        %s169 = scalar_select %p168, %s25, 1
        %s170 = smul.addr %s169, 54
        %s171 = smul.addr %s170, 8
        %s172 = scalar_lea.vmem %s0, %s171
        %p173 = pneg %p54
        %p174 = pneg %p51
        %p175 = pneg %p75
        %p176 = pneg %p72
        %p177 = pneg %p103
        %p178 = pneg %p100
        %s179 = sand.u32 %s90, 1
        %s180 = scalar_lea.sflag [#allocation4], %s179
        %s181 = sand.u32 %s90, 1
        %s182 = smul.addr %s181, 256
        %s183 = scalar_lea.vmem [#allocation3], %s182
        %p184 = pneg %p131
        %p185 = pneg %p128
        %s186 = sand.u32 %s118, 1
        %s187 = scalar_lea.sflag [#allocation6], %s186
        %s188 = sand.u32 %s118, 1
        %s189 = smul.addr %s188, 2
        %s190 = scalar_lea.vmem [#allocation5], %s189
        %p191 = scmp.lt.s32.totalorder %s25, 1
        %s192 = scalar_select %p191, %s25, 1
        %s193 = smul.addr %s192, 54
        %s194 = smul.addr %s193, 8
        %s195 = scalar_lea.vmem %s0, %s194
        %s196 = smul.u32 16, %s26
        %s197 = smul.u32 %s26, 16
        %198 = vst [vmem:[#allocation2] sm:$0xff] 0.0
        %199 = vst [vmem:[#allocation2 + $0x8] sm:$0xff] 0.0
        %200 = vst [vmem:[#allocation2 + $0x10] sm:$0xff] 0.0
        %201 = vst [vmem:[#allocation2 + $0x18] sm:$0xff] 0.0
        %202 = vst [vmem:[#allocation2 + $0x20] sm:$0xff] 0.0
        %203 = vst [vmem:[#allocation2 + $0x28] sm:$0xff] 0.0
        %204 = vst [vmem:[#allocation2 + $0x30] sm:$0xff] 0.0
        %205 = vst [vmem:[#allocation2 + $0x38] sm:$0xff] 0.0
        %206 = vst [vmem:[#allocation2 + $0x40] sm:$0xff] 0.0
        %207 = vst [vmem:[#allocation2 + $0x48] sm:$0xff] 0.0
        %208 = vst [vmem:[#allocation2 + $0x50] sm:$0xff] 0.0
        %209 = vst [vmem:[#allocation2 + $0x58] sm:$0xff] 0.0
        %210 = vst [vmem:[#allocation2 + $0x60] sm:$0xff] 0.0
        %211 = vst [vmem:[#allocation2 + $0x68] sm:$0xff] 0.0
        %212 = vst [vmem:[#allocation2 + $0x70] sm:$0xff] 0.0
        %213 = vst [vmem:[#allocation2 + $0x78] sm:$0xff] 0.0
        %214 = vst [vmem:[#allocation2 + $0x80] sm:$0xff] 0.0
        %215 = vst [vmem:[#allocation2 + $0x88] sm:$0xff] 0.0
        %216 = vst [vmem:[#allocation2 + $0x90] sm:$0xff] 0.0
        %217 = vst [vmem:[#allocation2 + $0x98] sm:$0xff] 0.0
        %218 = vst [vmem:[#allocation2 + $0xa0] sm:$0xff] 0.0
        %219 = vst [vmem:[#allocation2 + $0xa8] sm:$0xff] 0.0
        %220 = vst [vmem:[#allocation2 + $0xb0] sm:$0xff] 0.0
        %221 = vst [vmem:[#allocation2 + $0xb8] sm:$0xff] 0.0
        %222 = vst [vmem:[#allocation2 + $0xc0] sm:$0xff] 0.0
        %223 = vst [vmem:[#allocation2 + $0xc8] sm:$0xff] 0.0
        %224 = vst [vmem:[#allocation2 + $0xd0] sm:$0xff] 0.0
        %225 = vst [vmem:[#allocation2 + $0xd8] sm:$0xff] 0.0
        %226 = vst [vmem:[#allocation2 + $0xe0] sm:$0xff] 0.0
        %227 = vst [vmem:[#allocation2 + $0xe8] sm:$0xff] 0.0
        %228 = vst [vmem:[#allocation2 + $0xf0] sm:$0xff] 0.0
        %229 = vst [vmem:[#allocation2 + $0xf8] sm:$0xff] 0.0
        %s230 = smul.u32 %s197, 24
        %s231 = scalar_lea.vmem %s195, %s230
        %v232 = vld [vmem:[%s231] sm:$0xff]
        %v233 = vld [vmem:[%s231 + $0x8] sm:$0xff]
        %v234 = vld [vmem:[%s231 + $0x18] sm:$0xff]
        %v235 = vld [vmem:[%s231 + $0x20] sm:$0xff]
        %v236 = vld [vmem:[%s231 + $0x30] sm:$0xff]
        %v237 = vld [vmem:[%s231 + $0x38] sm:$0xff]
        %v238 = vld [vmem:[%s231 + $0x48] sm:$0xff]
        %v239 = vld [vmem:[%s231 + $0x50] sm:$0xff]
        %v240 = vld [vmem:[%s231 + $0x60] sm:$0xff]
        %v241 = vld [vmem:[%s231 + $0x68] sm:$0xff]
        %v242 = vld [vmem:[%s231 + $0x78] sm:$0xff]
        %v243 = vld [vmem:[%s231 + $0x80] sm:$0xff]
        %v244 = vld [vmem:[%s231 + $0x90] sm:$0xff]
        %v245 = vld [vmem:[%s231 + $0x98] sm:$0xff]
        %v246 = vld [vmem:[%s231 + $0xa8] sm:$0xff]
        %v247 = vld [vmem:[%s231 + $0xb0] sm:$0xff]
        %v248 = vld [vmem:[%s231 + $0xc0] sm:$0xff]
        %v249 = vld [vmem:[%s231 + $0xc8] sm:$0xff]
        %v250 = vld [vmem:[%s231 + $0xd8] sm:$0xff]
        %v251 = vld [vmem:[%s231 + $0xe0] sm:$0xff]
        %v252 = vld [vmem:[%s231 + $0xf0] sm:$0xff]
        %v253 = vld [vmem:[%s231 + $0xf8] sm:$0xff]
        %v254 = vld [vmem:[%s231 + $0x108] sm:$0xff]
        %v255 = vld [vmem:[%s231 + $0x110] sm:$0xff]
        %v256 = vld [vmem:[%s231 + $0x120] sm:$0xff]
        %v257 = vld [vmem:[%s231 + $0x128] sm:$0xff]
        %v258 = vld [vmem:[%s231 + $0x138] sm:$0xff]
        %v259 = vld [vmem:[%s231 + $0x140] sm:$0xff]
        %v260 = vld [vmem:[%s231 + $0x150] sm:$0xff]
        %v261 = vld [vmem:[%s231 + $0x158] sm:$0xff]
        %v262 = vld [vmem:[%s231 + $0x168] sm:$0xff]
        %v263 = vld [vmem:[%s231 + $0x170] sm:$0xff]
        %v264 = vld [vmem:[#allocation2] sm:$0xff]
        %v265 = vld [vmem:[#allocation2 + $0x8] sm:$0xff]
        %v266 = vld [vmem:[#allocation2 + $0x10] sm:$0xff]
        %v267 = vld [vmem:[#allocation2 + $0x18] sm:$0xff]
        %v268 = vld [vmem:[#allocation2 + $0x20] sm:$0xff]
        %v269 = vld [vmem:[#allocation2 + $0x28] sm:$0xff]
        %v270 = vld [vmem:[#allocation2 + $0x30] sm:$0xff]
        %v271 = vld [vmem:[#allocation2 + $0x38] sm:$0xff]
        %v272 = vld [vmem:[#allocation2 + $0x40] sm:$0xff]
        %v273 = vld [vmem:[#allocation2 + $0x48] sm:$0xff]
        %v274 = vld [vmem:[#allocation2 + $0x50] sm:$0xff]
        %v275 = vld [vmem:[#allocation2 + $0x58] sm:$0xff]
        %v276 = vld [vmem:[#allocation2 + $0x60] sm:$0xff]
        %v277 = vld [vmem:[#allocation2 + $0x68] sm:$0xff]
        %v278 = vld [vmem:[#allocation2 + $0x70] sm:$0xff]
        %v279 = vld [vmem:[#allocation2 + $0x78] sm:$0xff]
        %v280 = vld [vmem:[#allocation2 + $0x80] sm:$0xff]
        %v281 = vld [vmem:[#allocation2 + $0x88] sm:$0xff]
        %v282 = vld [vmem:[#allocation2 + $0x90] sm:$0xff]
        %v283 = vld [vmem:[#allocation2 + $0x98] sm:$0xff]
        %v284 = vld [vmem:[#allocation2 + $0xa0] sm:$0xff]
        %v285 = vld [vmem:[#allocation2 + $0xa8] sm:$0xff]
        %v286 = vld [vmem:[#allocation2 + $0xb0] sm:$0xff]
        %v287 = vld [vmem:[#allocation2 + $0xb8] sm:$0xff]
        %v288 = vld [vmem:[#allocation2 + $0xc0] sm:$0xff]
        %v289 = vld [vmem:[#allocation2 + $0xc8] sm:$0xff]
        %v290 = vld [vmem:[#allocation2 + $0xd0] sm:$0xff]
        %v291 = vld [vmem:[#allocation2 + $0xd8] sm:$0xff]
        %v292 = vld [vmem:[#allocation2 + $0xe0] sm:$0xff]
        %v293 = vld [vmem:[#allocation2 + $0xe8] sm:$0xff]
        %v294 = vld [vmem:[#allocation2 + $0xf0] sm:$0xff]
        %v295 = vld [vmem:[#allocation2 + $0xf8] sm:$0xff]
        %v296 = vld [vmem:[%s1] sm:$0xf]
        %vm297 = vcmask 31744
        %v299 = vsel %vm297, %v232, 0
        %v302 = vsel %vm297, %v233, 0
        %v305 = vsel %vm297, %v234, 0
        %v308 = vsel %vm297, %v235, 0
        %v311 = vsel %vm297, %v236, 0
        %v314 = vsel %vm297, %v237, 0
        %v317 = vsel %vm297, %v238, 0
        %v320 = vsel %vm297, %v239, 0
        %v323 = vsel %vm297, %v240, 0
        %v326 = vsel %vm297, %v241, 0
        %v329 = vsel %vm297, %v242, 0
        %v332 = vsel %vm297, %v243, 0
        %v335 = vsel %vm297, %v244, 0
        %v338 = vsel %vm297, %v245, 0
        %v341 = vsel %vm297, %v246, 0
        %v344 = vsel %vm297, %v247, 0
        %v347 = vsel %vm297, %v248, 0
        %v350 = vsel %vm297, %v249, 0
        %v353 = vsel %vm297, %v250, 0
        %v356 = vsel %vm297, %v251, 0
        %v359 = vsel %vm297, %v252, 0
        %v362 = vsel %vm297, %v253, 0
        %v365 = vsel %vm297, %v254, 0
        %v368 = vsel %vm297, %v255, 0
        %v371 = vsel %vm297, %v256, 0
        %v374 = vsel %vm297, %v257, 0
        %v377 = vsel %vm297, %v258, 0
        %v380 = vsel %vm297, %v259, 0
        %v383 = vsel %vm297, %v260, 0
        %v386 = vsel %vm297, %v261, 0
        %v389 = vsel %vm297, %v262, 0
        %v392 = vsel %vm297, %v263, 0
        %vm394 = vcmask 1043456
        %v396 = vsel %vm394, %v296, 0
        %398 = vmatprep.subr.mxu0 0.0
        %399 = vmatpush1.msra.mxu0 %v396
        %400 = vmatprep.subr.mxu0 0.0
        %401 = vmatpush1.msra.mxu0 0.0
        %402 = vmatprep.subr.mxu0 0.0
        %403 = vmatpush1.msra.mxu0 0.0
        %404 = vmatprep.subr.mxu0 0.0
        %405 = vmatpush1.msra.mxu0 0.0
        %406 = vmatprep.subr.mxu0 0.0
        %407 = vmatpush1.msra.mxu0 0.0
        %408 = vmatprep.subr.mxu0 0.0
        %409 = vmatpush1.msra.mxu0 0.0
        %410 = vmatprep.subr.mxu0 0.0
        %411 = vmatpush1.msra.mxu0 0.0
        %412 = vmatprep.subr.mxu0 0.0
        %413 = vmatpush1.msra.mxu0 0.0
        %414 = vmatprep.subr.mxu0 0.0
        %415 = vmatpush1.msra.mxu0 0.0
        %416 = vmatprep.subr.mxu0 0.0
        %417 = vmatpush1.msra.mxu0 0.0
        %418 = vmatprep.subr.mxu0 0.0
        %419 = vmatpush1.msra.mxu0 0.0
        %420 = vmatprep.subr.mxu0 0.0
        %421 = vmatpush1.msra.mxu0 0.0
        %422 = vmatprep.subr.mxu0 0.0
        %423 = vmatpush1.msra.mxu0 0.0
        %424 = vmatprep.subr.mxu0 0.0
        %425 = vmatpush1.msra.mxu0 0.0
        %426 = vmatprep.subr.mxu0 0.0
        %427 = vmatpush1.msra.mxu0 0.0
        %428 = vmatprep.subr.mxu0 0.0
        %429 = vmatpush1.msra.mxu0 0.0
        %430 = vmatprep.subr.mxu0 0.0
        %431 = vmatpush1.msra.mxu0 0.0
        %432 = vmatprep.subr.mxu0 0.0
        %433 = vmatpush1.msra.mxu0 0.0
        %434 = vmatprep.subr.mxu0 0.0
        %435 = vmatpush1.msra.mxu0 0.0
        %436 = vmatprep.subr.mxu0 0.0
        %437 = vmatpush1.msra.mxu0 0.0
        %438 = vmatprep.subr.mxu0 0.0
        %439 = vmatpush1.msra.mxu0 0.0
        %440 = vmatprep.subr.mxu0 0.0
        %441 = vmatpush1.msra.mxu0 0.0
        %442 = vmatprep.subr.mxu0 0.0
        %443 = vmatpush1.msra.mxu0 0.0
        %444 = vmatprep.subr.mxu0 0.0
        %445 = vmatpush1.msra.mxu0 0.0
        %446 = vmatprep.subr.mxu0 0.0
        %447 = vmatpush1.msra.mxu0 0.0
        %448 = vmatprep.subr.mxu0 0.0
        %449 = vmatpush1.msra.mxu0 0.0
        %450 = vmatprep.subr.mxu0 0.0
        %451 = vmatpush1.msra.mxu0 0.0
        %452 = vmatprep.subr.mxu0 0.0
        %453 = vmatpush1.msra.mxu0 0.0
        %454 = vmatprep.subr.mxu0 0.0
        %455 = vmatpush1.msra.mxu0 0.0
        %456 = vmatprep.subr.mxu0 0.0
        %457 = vmatpush1.msra.mxu0 0.0
        %458 = vmatprep.subr.mxu0 0.0
        %459 = vmatpush1.msra.mxu0 0.0
        %460 = vmatprep.subr.mxu0 0.0
        %461 = vmatpush1.msra.mxu0 0.0
        %462 = vmatprep.mubr.f32.mxu0 0.0
        %463 = vmatmul.mubr.f32.gmra.mrb[0].mxu0 %v299
        %v464 = vpop.f32.mrb[0].mxu0
        %v465 = vadd.f32 0.0, %v464
        %v466 = vpop.f32.mrb[0].mxu0
        %467 = vmatprep.mubr.f32.mxu0 0.0
        %468 = vmatmul.mubr.f32.gmra.mrb[0].mxu0 %v302
        %v469 = vpop.f32.mrb[0].mxu0
        %v470 = vadd.f32 0.0, %v469
        %v471 = vpop.f32.mrb[0].mxu0
        %472 = vmatprep.mubr.f32.mxu0 0.0
        %473 = vmatmul.mubr.f32.gmra.mrb[0].mxu0 %v305
        %v474 = vpop.f32.mrb[0].mxu0
        %v475 = vadd.f32 0.0, %v474
        %v476 = vpop.f32.mrb[0].mxu0
        %477 = vmatprep.mubr.f32.mxu0 0.0
        %478 = vmatmul.mubr.f32.gmra.mrb[0].mxu0 %v308
        %v479 = vpop.f32.mrb[0].mxu0
        %v480 = vadd.f32 0.0, %v479
        %v481 = vpop.f32.mrb[0].mxu0
        %482 = vmatprep.mubr.f32.mxu0 0.0
        %483 = vmatmul.mubr.f32.gmra.mrb[0].mxu0 %v311
        %v484 = vpop.f32.mrb[0].mxu0
        %v485 = vadd.f32 0.0, %v484
        %v486 = vpop.f32.mrb[0].mxu0
        %487 = vmatprep.mubr.f32.mxu0 0.0
        %488 = vmatmul.mubr.f32.gmra.mrb[0].mxu0 %v314
        %v489 = vpop.f32.mrb[0].mxu0
        %v490 = vadd.f32 0.0, %v489
        %v491 = vpop.f32.mrb[0].mxu0
        %492 = vmatprep.mubr.f32.mxu0 0.0
        %493 = vmatmul.mubr.f32.gmra.mrb[0].mxu0 %v317
        %v494 = vpop.f32.mrb[0].mxu0
        %v495 = vadd.f32 0.0, %v494
        %v496 = vpop.f32.mrb[0].mxu0
        %497 = vmatprep.mubr.f32.mxu0 0.0
        %498 = vmatmul.mubr.f32.gmra.mrb[0].mxu0 %v320
        %v499 = vpop.f32.mrb[0].mxu0
        %v500 = vadd.f32 0.0, %v499
        %v501 = vpop.f32.mrb[0].mxu0
        %502 = vmatprep.mubr.f32.mxu0 0.0
        %503 = vmatmul.mubr.f32.gmra.mrb[0].mxu0 %v323
        %v504 = vpop.f32.mrb[0].mxu0
        %v505 = vadd.f32 0.0, %v504
        %v506 = vpop.f32.mrb[0].mxu0
        %507 = vmatprep.mubr.f32.mxu0 0.0
        %508 = vmatmul.mubr.f32.gmra.mrb[0].mxu0 %v326
        %v509 = vpop.f32.mrb[0].mxu0
        %v510 = vadd.f32 0.0, %v509
        %v511 = vpop.f32.mrb[0].mxu0
        %512 = vmatprep.mubr.f32.mxu0 0.0
        %513 = vmatmul.mubr.f32.gmra.mrb[0].mxu0 %v329
        %v514 = vpop.f32.mrb[0].mxu0
        %v515 = vadd.f32 0.0, %v514
        %v516 = vpop.f32.mrb[0].mxu0
        %517 = vmatprep.mubr.f32.mxu0 0.0
        %518 = vmatmul.mubr.f32.gmra.mrb[0].mxu0 %v332
        %v519 = vpop.f32.mrb[0].mxu0
        %v520 = vadd.f32 0.0, %v519
        %v521 = vpop.f32.mrb[0].mxu0
        %522 = vmatprep.mubr.f32.mxu0 0.0
        %523 = vmatmul.mubr.f32.gmra.mrb[0].mxu0 %v335
        %v524 = vpop.f32.mrb[0].mxu0
        %v525 = vadd.f32 0.0, %v524
        %v526 = vpop.f32.mrb[0].mxu0
        %527 = vmatprep.mubr.f32.mxu0 0.0
        %528 = vmatmul.mubr.f32.gmra.mrb[0].mxu0 %v338
        %v529 = vpop.f32.mrb[0].mxu0
        %v530 = vadd.f32 0.0, %v529
        %v531 = vpop.f32.mrb[0].mxu0
        %532 = vmatprep.mubr.f32.mxu0 0.0
        %533 = vmatmul.mubr.f32.gmra.mrb[0].mxu0 %v341
        %v534 = vpop.f32.mrb[0].mxu0
        %v535 = vadd.f32 0.0, %v534
        %v536 = vpop.f32.mrb[0].mxu0
        %537 = vmatprep.mubr.f32.mxu0 0.0
        %538 = vmatmul.mubr.f32.gmra.mrb[0].mxu0 %v344
        %v539 = vpop.f32.mrb[0].mxu0
        %v540 = vadd.f32 0.0, %v539
        %v541 = vpop.f32.mrb[0].mxu0
        %542 = vmatprep.mubr.f32.mxu0 0.0
        %543 = vmatmul.mubr.f32.gmra.mrb[0].mxu0 %v347
        %v544 = vpop.f32.mrb[0].mxu0
        %v545 = vadd.f32 0.0, %v544
        %v546 = vpop.f32.mrb[0].mxu0
        %547 = vmatprep.mubr.f32.mxu0 0.0
        %548 = vmatmul.mubr.f32.gmra.mrb[0].mxu0 %v350
        %v549 = vpop.f32.mrb[0].mxu0
        %v550 = vadd.f32 0.0, %v549
        %v551 = vpop.f32.mrb[0].mxu0
        %552 = vmatprep.mubr.f32.mxu0 0.0
        %553 = vmatmul.mubr.f32.gmra.mrb[0].mxu0 %v353
        %v554 = vpop.f32.mrb[0].mxu0
        %v555 = vadd.f32 0.0, %v554
        %v556 = vpop.f32.mrb[0].mxu0
        %557 = vmatprep.mubr.f32.mxu0 0.0
        %558 = vmatmul.mubr.f32.gmra.mrb[0].mxu0 %v356
        %v559 = vpop.f32.mrb[0].mxu0
        %v560 = vadd.f32 0.0, %v559
        %v561 = vpop.f32.mrb[0].mxu0
        %562 = vmatprep.mubr.f32.mxu0 0.0
        %563 = vmatmul.mubr.f32.gmra.mrb[0].mxu0 %v359
        %v564 = vpop.f32.mrb[0].mxu0
        %v565 = vadd.f32 0.0, %v564
        %v566 = vpop.f32.mrb[0].mxu0
        %567 = vmatprep.mubr.f32.mxu0 0.0
        %568 = vmatmul.mubr.f32.gmra.mrb[0].mxu0 %v362
        %v569 = vpop.f32.mrb[0].mxu0
        %v570 = vadd.f32 0.0, %v569
        %v571 = vpop.f32.mrb[0].mxu0
        %572 = vmatprep.mubr.f32.mxu0 0.0
        %573 = vmatmul.mubr.f32.gmra.mrb[0].mxu0 %v365
        %v574 = vpop.f32.mrb[0].mxu0
        %v575 = vadd.f32 0.0, %v574
        %v576 = vpop.f32.mrb[0].mxu0
        %577 = vmatprep.mubr.f32.mxu0 0.0
        %578 = vmatmul.mubr.f32.gmra.mrb[0].mxu0 %v368
        %v579 = vpop.f32.mrb[0].mxu0
        %v580 = vadd.f32 0.0, %v579
        %v581 = vpop.f32.mrb[0].mxu0
        %582 = vmatprep.mubr.f32.mxu0 0.0
        %583 = vmatmul.mubr.f32.gmra.mrb[0].mxu0 %v371
        %v584 = vpop.f32.mrb[0].mxu0
        %v585 = vadd.f32 0.0, %v584
        %v586 = vpop.f32.mrb[0].mxu0
        %587 = vmatprep.mubr.f32.mxu0 0.0
        %588 = vmatmul.mubr.f32.gmra.mrb[0].mxu0 %v374
        %v589 = vpop.f32.mrb[0].mxu0
        %v590 = vadd.f32 0.0, %v589
        %v591 = vpop.f32.mrb[0].mxu0
        %592 = vmatprep.mubr.f32.mxu0 0.0
        %593 = vmatmul.mubr.f32.gmra.mrb[0].mxu0 %v377
        %v594 = vpop.f32.mrb[0].mxu0
        %v595 = vadd.f32 0.0, %v594
        %v596 = vpop.f32.mrb[0].mxu0
        %597 = vmatprep.mubr.f32.mxu0 0.0
        %598 = vmatmul.mubr.f32.gmra.mrb[0].mxu0 %v380
        %v599 = vpop.f32.mrb[0].mxu0
        %v600 = vadd.f32 0.0, %v599
        %v601 = vpop.f32.mrb[0].mxu0
        %602 = vmatprep.mubr.f32.mxu0 0.0
        %603 = vmatmul.mubr.f32.gmra.mrb[0].mxu0 %v383
        %v604 = vpop.f32.mrb[0].mxu0
        %v605 = vadd.f32 0.0, %v604
        %v606 = vpop.f32.mrb[0].mxu0
        %607 = vmatprep.mubr.f32.mxu0 0.0
        %608 = vmatmul.mubr.f32.gmra.mrb[0].mxu0 %v386
        %v609 = vpop.f32.mrb[0].mxu0
        %v610 = vadd.f32 0.0, %v609
        %v611 = vpop.f32.mrb[0].mxu0
        %612 = vmatprep.mubr.f32.mxu0 0.0
        %613 = vmatmul.mubr.f32.gmra.mrb[0].mxu0 %v389
        %v614 = vpop.f32.mrb[0].mxu0
        %v615 = vadd.f32 0.0, %v614
        %v616 = vpop.f32.mrb[0].mxu0
        %617 = vmatprep.mubr.f32.mxu0 0.0
        %618 = vmatmul.mubr.f32.gmra.mrb[0].mxu0 %v392
        %v619 = vpop.f32.mrb[0].mxu0
        %v620 = vadd.f32 0.0, %v619
        %v621 = vpop.f32.mrb[0].mxu0
        %622 = vdwg.mxu0
        %v623 = vadd.f32 %v264, %v465
        %v624 = vadd.f32 %v265, %v470
        %v625 = vadd.f32 %v266, %v475
        %v626 = vadd.f32 %v267, %v480
        %v627 = vadd.f32 %v268, %v485
        %v628 = vadd.f32 %v269, %v490
        %v629 = vadd.f32 %v270, %v495
        %v630 = vadd.f32 %v271, %v500
        %v631 = vadd.f32 %v272, %v505
        %v632 = vadd.f32 %v273, %v510
        %v633 = vadd.f32 %v274, %v515
        %v634 = vadd.f32 %v275, %v520
        %v635 = vadd.f32 %v276, %v525
        %v636 = vadd.f32 %v277, %v530
        %v637 = vadd.f32 %v278, %v535
        %v638 = vadd.f32 %v279, %v540
        %v639 = vadd.f32 %v280, %v545
        %v640 = vadd.f32 %v281, %v550
        %v641 = vadd.f32 %v282, %v555
        %v642 = vadd.f32 %v283, %v560
        %v643 = vadd.f32 %v284, %v565
        %v644 = vadd.f32 %v285, %v570
        %v645 = vadd.f32 %v286, %v575
        %v646 = vadd.f32 %v287, %v580
        %v647 = vadd.f32 %v288, %v585
        %v648 = vadd.f32 %v289, %v590
        %v649 = vadd.f32 %v290, %v595
        %v650 = vadd.f32 %v291, %v600
        %v651 = vadd.f32 %v292, %v605
        %v652 = vadd.f32 %v293, %v610
        %v653 = vadd.f32 %v294, %v615
        %v654 = vadd.f32 %v295, %v620
        %655 = vst [vmem:[#allocation2] sm:$0xff] %v623
        %656 = vst [vmem:[#allocation2 + $0x8] sm:$0xff] %v624
        %657 = vst [vmem:[#allocation2 + $0x10] sm:$0xff] %v625
        %658 = vst [vmem:[#allocation2 + $0x18] sm:$0xff] %v626
        %659 = vst [vmem:[#allocation2 + $0x20] sm:$0xff] %v627
        %660 = vst [vmem:[#allocation2 + $0x28] sm:$0xff] %v628
        %661 = vst [vmem:[#allocation2 + $0x30] sm:$0xff] %v629
        %662 = vst [vmem:[#allocation2 + $0x38] sm:$0xff] %v630
        %663 = vst [vmem:[#allocation2 + $0x40] sm:$0xff] %v631
        %664 = vst [vmem:[#allocation2 + $0x48] sm:$0xff] %v632
        %665 = vst [vmem:[#allocation2 + $0x50] sm:$0xff] %v633
        %666 = vst [vmem:[#allocation2 + $0x58] sm:$0xff] %v634
        %667 = vst [vmem:[#allocation2 + $0x60] sm:$0xff] %v635
        %668 = vst [vmem:[#allocation2 + $0x68] sm:$0xff] %v636
        %669 = vst [vmem:[#allocation2 + $0x70] sm:$0xff] %v637
        %670 = vst [vmem:[#allocation2 + $0x78] sm:$0xff] %v638
        %671 = vst [vmem:[#allocation2 + $0x80] sm:$0xff] %v639
        %672 = vst [vmem:[#allocation2 + $0x88] sm:$0xff] %v640
        %673 = vst [vmem:[#allocation2 + $0x90] sm:$0xff] %v641
        %674 = vst [vmem:[#allocation2 + $0x98] sm:$0xff] %v642
        %675 = vst [vmem:[#allocation2 + $0xa0] sm:$0xff] %v643
        %676 = vst [vmem:[#allocation2 + $0xa8] sm:$0xff] %v644
        %677 = vst [vmem:[#allocation2 + $0xb0] sm:$0xff] %v645
        %678 = vst [vmem:[#allocation2 + $0xb8] sm:$0xff] %v646
        %679 = vst [vmem:[#allocation2 + $0xc0] sm:$0xff] %v647
        %680 = vst [vmem:[#allocation2 + $0xc8] sm:$0xff] %v648
        %681 = vst [vmem:[#allocation2 + $0xd0] sm:$0xff] %v649
        %682 = vst [vmem:[#allocation2 + $0xd8] sm:$0xff] %v650
        %683 = vst [vmem:[#allocation2 + $0xe0] sm:$0xff] %v651
        %684 = vst [vmem:[#allocation2 + $0xe8] sm:$0xff] %v652
        %685 = vst [vmem:[#allocation2 + $0xf0] sm:$0xff] %v653
        %686 = vst [vmem:[#allocation2 + $0xf8] sm:$0xff] %v654
        %v687 = vld [vmem:[%s231 + $0x1] sm:$0xff]
        %v688 = vld [vmem:[%s231 + $0x9] sm:$0xff]
        %v689 = vld [vmem:[%s231 + $0x19] sm:$0xff]
        %v690 = vld [vmem:[%s231 + $0x21] sm:$0xff]
        %v691 = vld [vmem:[%s231 + $0x31] sm:$0xff]
        %v692 = vld [vmem:[%s231 + $0x39] sm:$0xff]
        %v693 = vld [vmem:[%s231 + $0x49] sm:$0xff]
        %v694 = vld [vmem:[%s231 + $0x51] sm:$0xff]
        %v695 = vld [vmem:[%s231 + $0x61] sm:$0xff]
        %v696 = vld [vmem:[%s231 + $0x69] sm:$0xff]
        %v697 = vld [vmem:[%s231 + $0x79] sm:$0xff]
        %v698 = vld [vmem:[%s231 + $0x81] sm:$0xff]
        %v699 = vld [vmem:[%s231 + $0x91] sm:$0xff]
        %v700 = vld [vmem:[%s231 + $0x99] sm:$0xff]
        %v701 = vld [vmem:[%s231 + $0xa9] sm:$0xff]
        %v702 = vld [vmem:[%s231 + $0xb1] sm:$0xff]
        %v703 = vld [vmem:[%s231 + $0xc1] sm:$0xff]
        %v704 = vld [vmem:[%s231 + $0xc9] sm:$0xff]
        %v705 = vld [vmem:[%s231 + $0xd9] sm:$0xff]
        %v706 = vld [vmem:[%s231 + $0xe1] sm:$0xff]
        %v707 = vld [vmem:[%s231 + $0xf1] sm:$0xff]
        %v708 = vld [vmem:[%s231 + $0xf9] sm:$0xff]
        %v709 = vld [vmem:[%s231 + $0x109] sm:$0xff]
        %v710 = vld [vmem:[%s231 + $0x111] sm:$0xff]
        %v711 = vld [vmem:[%s231 + $0x121] sm:$0xff]
        %v712 = vld [vmem:[%s231 + $0x129] sm:$0xff]
        %v713 = vld [vmem:[%s231 + $0x139] sm:$0xff]
        %v714 = vld [vmem:[%s231 + $0x141] sm:$0xff]
        %v715 = vld [vmem:[%s231 + $0x151] sm:$0xff]
        %v716 = vld [vmem:[%s231 + $0x159] sm:$0xff]
        %v717 = vld [vmem:[%s231 + $0x169] sm:$0xff]
        %v718 = vld [vmem:[%s231 + $0x171] sm:$0xff]
        %v719 = vld [vmem:[#allocation2] sm:$0xff]
        %v720 = vld [vmem:[#allocation2 + $0x8] sm:$0xff]
        %v721 = vld [vmem:[#allocation2 + $0x10] sm:$0xff]
        %v722 = vld [vmem:[#allocation2 + $0x18] sm:$0xff]
        %v723 = vld [vmem:[#allocation2 + $0x20] sm:$0xff]
        %v724 = vld [vmem:[#allocation2 + $0x28] sm:$0xff]
        %v725 = vld [vmem:[#allocation2 + $0x30] sm:$0xff]
        %v726 = vld [vmem:[#allocation2 + $0x38] sm:$0xff]
        %v727 = vld [vmem:[#allocation2 + $0x40] sm:$0xff]
        %v728 = vld [vmem:[#allocation2 + $0x48] sm:$0xff]
        %v729 = vld [vmem:[#allocation2 + $0x50] sm:$0xff]
        %v730 = vld [vmem:[#allocation2 + $0x58] sm:$0xff]
        %v731 = vld [vmem:[#allocation2 + $0x60] sm:$0xff]
        %v732 = vld [vmem:[#allocation2 + $0x68] sm:$0xff]
        %v733 = vld [vmem:[#allocation2 + $0x70] sm:$0xff]
        %v734 = vld [vmem:[#allocation2 + $0x78] sm:$0xff]
        %v735 = vld [vmem:[#allocation2 + $0x80] sm:$0xff]
        %v736 = vld [vmem:[#allocation2 + $0x88] sm:$0xff]
        %v737 = vld [vmem:[#allocation2 + $0x90] sm:$0xff]
        %v738 = vld [vmem:[#allocation2 + $0x98] sm:$0xff]
        %v739 = vld [vmem:[#allocation2 + $0xa0] sm:$0xff]
        %v740 = vld [vmem:[#allocation2 + $0xa8] sm:$0xff]
        %v741 = vld [vmem:[#allocation2 + $0xb0] sm:$0xff]
        %v742 = vld [vmem:[#allocation2 + $0xb8] sm:$0xff]
        %v743 = vld [vmem:[#allocation2 + $0xc0] sm:$0xff]
        %v744 = vld [vmem:[#allocation2 + $0xc8] sm:$0xff]
        %v745 = vld [vmem:[#allocation2 + $0xd0] sm:$0xff]
        %v746 = vld [vmem:[#allocation2 + $0xd8] sm:$0xff]
        %v747 = vld [vmem:[#allocation2 + $0xe0] sm:$0xff]
        %v748 = vld [vmem:[#allocation2 + $0xe8] sm:$0xff]
        %v749 = vld [vmem:[#allocation2 + $0xf0] sm:$0xff]
        %v750 = vld [vmem:[#allocation2 + $0xf8] sm:$0xff]
        %s751 = scalar_lea.vmem %s1, 4
        %v752 = vld [vmem:[%s751] sm:$0xf]
        %v754 = vsel %vm297, %v687, 0
        %v757 = vsel %vm297, %v688, 0
        %v760 = vsel %vm297, %v689, 0
        %v763 = vsel %vm297, %v690, 0
        %v766 = vsel %vm297, %v691, 0
        %v769 = vsel %vm297, %v692, 0
        %v772 = vsel %vm297, %v693, 0
        %v775 = vsel %vm297, %v694, 0
        %v778 = vsel %vm297, %v695, 0
        %v781 = vsel %vm297, %v696, 0
        %v784 = vsel %vm297, %v697, 0
        %v787 = vsel %vm297, %v698, 0
        %v790 = vsel %vm297, %v699, 0
        %v793 = vsel %vm297, %v700, 0
        %v796 = vsel %vm297, %v701, 0
        %v799 = vsel %vm297, %v702, 0
        %v802 = vsel %vm297, %v703, 0
        %v805 = vsel %vm297, %v704, 0
        %v808 = vsel %vm297, %v705, 0
        %v811 = vsel %vm297, %v706, 0
        %v814 = vsel %vm297, %v707, 0
        %v817 = vsel %vm297, %v708, 0
        %v820 = vsel %vm297, %v709, 0
        %v823 = vsel %vm297, %v710, 0
        %v826 = vsel %vm297, %v711, 0
        %v829 = vsel %vm297, %v712, 0
        %v832 = vsel %vm297, %v713, 0
        %v835 = vsel %vm297, %v714, 0
        %v838 = vsel %vm297, %v715, 0
        %v841 = vsel %vm297, %v716, 0
        %v844 = vsel %vm297, %v717, 0
        %v847 = vsel %vm297, %v718, 0
        %v850 = vsel %vm394, %v752, 0
        %852 = vmatprep.subr.mxu0 0.0
        %853 = vmatpush1.msra.mxu0 %v850
        %854 = vmatprep.subr.mxu0 0.0
        %855 = vmatpush1.msra.mxu0 0.0
        %856 = vmatprep.subr.mxu0 0.0
        %857 = vmatpush1.msra.mxu0 0.0
        %858 = vmatprep.subr.mxu0 0.0
        %859 = vmatpush1.msra.mxu0 0.0
        %860 = vmatprep.subr.mxu0 0.0
        %861 = vmatpush1.msra.mxu0 0.0
        %862 = vmatprep.subr.mxu0 0.0
        %863 = vmatpush1.msra.mxu0 0.0
        %864 = vmatprep.subr.mxu0 0.0
        %865 = vmatpush1.msra.mxu0 0.0
        %866 = vmatprep.subr.mxu0 0.0
        %867 = vmatpush1.msra.mxu0 0.0
        %868 = vmatprep.subr.mxu0 0.0
        %869 = vmatpush1.msra.mxu0 0.0
        %870 = vmatprep.subr.mxu0 0.0
        %871 = vmatpush1.msra.mxu0 0.0
        %872 = vmatprep.subr.mxu0 0.0
        %873 = vmatpush1.msra.mxu0 0.0
        %874 = vmatprep.subr.mxu0 0.0
        %875 = vmatpush1.msra.mxu0 0.0
        %876 = vmatprep.subr.mxu0 0.0
        %877 = vmatpush1.msra.mxu0 0.0
        %878 = vmatprep.subr.mxu0 0.0
        %879 = vmatpush1.msra.mxu0 0.0
        %880 = vmatprep.subr.mxu0 0.0
        %881 = vmatpush1.msra.mxu0 0.0
        %882 = vmatprep.subr.mxu0 0.0
        %883 = vmatpush1.msra.mxu0 0.0
        %884 = vmatprep.subr.mxu0 0.0
        %885 = vmatpush1.msra.mxu0 0.0
        %886 = vmatprep.subr.mxu0 0.0
        %887 = vmatpush1.msra.mxu0 0.0
        %888 = vmatprep.subr.mxu0 0.0
        %889 = vmatpush1.msra.mxu0 0.0
        %890 = vmatprep.subr.mxu0 0.0
        %891 = vmatpush1.msra.mxu0 0.0
        %892 = vmatprep.subr.mxu0 0.0
        %893 = vmatpush1.msra.mxu0 0.0
        %894 = vmatprep.subr.mxu0 0.0
        %895 = vmatpush1.msra.mxu0 0.0
        %896 = vmatprep.subr.mxu0 0.0
        %897 = vmatpush1.msra.mxu0 0.0
        %898 = vmatprep.subr.mxu0 0.0
        %899 = vmatpush1.msra.mxu0 0.0
        %900 = vmatprep.subr.mxu0 0.0
        %901 = vmatpush1.msra.mxu0 0.0
        %902 = vmatprep.subr.mxu0 0.0
        %903 = vmatpush1.msra.mxu0 0.0
        %904 = vmatprep.subr.mxu0 0.0
        %905 = vmatpush1.msra.mxu0 0.0
        %906 = vmatprep.subr.mxu0 0.0
        %907 = vmatpush1.msra.mxu0 0.0
        %908 = vmatprep.subr.mxu0 0.0
        %909 = vmatpush1.msra.mxu0 0.0
        %910 = vmatprep.subr.mxu0 0.0
        %911 = vmatpush1.msra.mxu0 0.0
        %912 = vmatprep.subr.mxu0 0.0
        %913 = vmatpush1.msra.mxu0 0.0
        %914 = vmatprep.subr.mxu0 0.0
        %915 = vmatpush1.msra.mxu0 0.0
        %916 = vmatprep.mubr.f32.mxu0 0.0
        %917 = vmatmul.mubr.f32.gmra.mrb[0].mxu0 %v754
        %v918 = vpop.f32.mrb[0].mxu0
        %v919 = vadd.f32 0.0, %v918
        %v920 = vpop.f32.mrb[0].mxu0
        %921 = vmatprep.mubr.f32.mxu0 0.0
        %922 = vmatmul.mubr.f32.gmra.mrb[0].mxu0 %v757
        %v923 = vpop.f32.mrb[0].mxu0
        %v924 = vadd.f32 0.0, %v923
        %v925 = vpop.f32.mrb[0].mxu0
        %926 = vmatprep.mubr.f32.mxu0 0.0
        %927 = vmatmul.mubr.f32.gmra.mrb[0].mxu0 %v760
        %v928 = vpop.f32.mrb[0].mxu0
        %v929 = vadd.f32 0.0, %v928
        %v930 = vpop.f32.mrb[0].mxu0
        %931 = vmatprep.mubr.f32.mxu0 0.0
        %932 = vmatmul.mubr.f32.gmra.mrb[0].mxu0 %v763
        %v933 = vpop.f32.mrb[0].mxu0
        %v934 = vadd.f32 0.0, %v933
        %v935 = vpop.f32.mrb[0].mxu0
        %936 = vmatprep.mubr.f32.mxu0 0.0
        %937 = vmatmul.mubr.f32.gmra.mrb[0].mxu0 %v766
        %v938 = vpop.f32.mrb[0].mxu0
        %v939 = vadd.f32 0.0, %v938
        %v940 = vpop.f32.mrb[0].mxu0
        %941 = vmatprep.mubr.f32.mxu0 0.0
        %942 = vmatmul.mubr.f32.gmra.mrb[0].mxu0 %v769
        %v943 = vpop.f32.mrb[0].mxu0
        %v944 = vadd.f32 0.0, %v943
        %v945 = vpop.f32.mrb[0].mxu0
        %946 = vmatprep.mubr.f32.mxu0 0.0
        %947 = vmatmul.mubr.f32.gmra.mrb[0].mxu0 %v772
        %v948 = vpop.f32.mrb[0].mxu0
        %v949 = vadd.f32 0.0, %v948
        %v950 = vpop.f32.mrb[0].mxu0
        %951 = vmatprep.mubr.f32.mxu0 0.0
        %952 = vmatmul.mubr.f32.gmra.mrb[0].mxu0 %v775
        %v953 = vpop.f32.mrb[0].mxu0
        %v954 = vadd.f32 0.0, %v953
        %v955 = vpop.f32.mrb[0].mxu0
        %956 = vmatprep.mubr.f32.mxu0 0.0
        %957 = vmatmul.mubr.f32.gmra.mrb[0].mxu0 %v778
        %v958 = vpop.f32.mrb[0].mxu0
        %v959 = vadd.f32 0.0, %v958
        %v960 = vpop.f32.mrb[0].mxu0
        %961 = vmatprep.mubr.f32.mxu0 0.0
        %962 = vmatmul.mubr.f32.gmra.mrb[0].mxu0 %v781
        %v963 = vpop.f32.mrb[0].mxu0
        %v964 = vadd.f32 0.0, %v963
        %v965 = vpop.f32.mrb[0].mxu0
        %966 = vmatprep.mubr.f32.mxu0 0.0
        %967 = vmatmul.mubr.f32.gmra.mrb[0].mxu0 %v784
        %v968 = vpop.f32.mrb[0].mxu0
        %v969 = vadd.f32 0.0, %v968
        %v970 = vpop.f32.mrb[0].mxu0
        %971 = vmatprep.mubr.f32.mxu0 0.0
        %972 = vmatmul.mubr.f32.gmra.mrb[0].mxu0 %v787
        %v973 = vpop.f32.mrb[0].mxu0
        %v974 = vadd.f32 0.0, %v973
        %v975 = vpop.f32.mrb[0].mxu0
        %976 = vmatprep.mubr.f32.mxu0 0.0
        %977 = vmatmul.mubr.f32.gmra.mrb[0].mxu0 %v790
        %v978 = vpop.f32.mrb[0].mxu0
        %v979 = vadd.f32 0.0, %v978
        %v980 = vpop.f32.mrb[0].mxu0
        %981 = vmatprep.mubr.f32.mxu0 0.0
        %982 = vmatmul.mubr.f32.gmra.mrb[0].mxu0 %v793
        %v983 = vpop.f32.mrb[0].mxu0
        %v984 = vadd.f32 0.0, %v983
        %v985 = vpop.f32.mrb[0].mxu0
        %986 = vmatprep.mubr.f32.mxu0 0.0
        %987 = vmatmul.mubr.f32.gmra.mrb[0].mxu0 %v796
        %v988 = vpop.f32.mrb[0].mxu0
        %v989 = vadd.f32 0.0, %v988
        %v990 = vpop.f32.mrb[0].mxu0
        %991 = vmatprep.mubr.f32.mxu0 0.0
        %992 = vmatmul.mubr.f32.gmra.mrb[0].mxu0 %v799
        %v993 = vpop.f32.mrb[0].mxu0
        %v994 = vadd.f32 0.0, %v993
        %v995 = vpop.f32.mrb[0].mxu0
        %996 = vmatprep.mubr.f32.mxu0 0.0
        %997 = vmatmul.mubr.f32.gmra.mrb[0].mxu0 %v802
        %v998 = vpop.f32.mrb[0].mxu0
        %v999 = vadd.f32 0.0, %v998
        %v1000 = vpop.f32.mrb[0].mxu0
        %1001 = vmatprep.mubr.f32.mxu0 0.0
        %1002 = vmatmul.mubr.f32.gmra.mrb[0].mxu0 %v805
        %v1003 = vpop.f32.mrb[0].mxu0
        %v1004 = vadd.f32 0.0, %v1003
        %v1005 = vpop.f32.mrb[0].mxu0
        %1006 = vmatprep.mubr.f32.mxu0 0.0
        %1007 = vmatmul.mubr.f32.gmra.mrb[0].mxu0 %v808
        %v1008 = vpop.f32.mrb[0].mxu0
        %v1009 = vadd.f32 0.0, %v1008
        %v1010 = vpop.f32.mrb[0].mxu0
        %1011 = vmatprep.mubr.f32.mxu0 0.0
        %1012 = vmatmul.mubr.f32.gmra.mrb[0].mxu0 %v811
        %v1013 = vpop.f32.mrb[0].mxu0
        %v1014 = vadd.f32 0.0, %v1013
        %v1015 = vpop.f32.mrb[0].mxu0
        %1016 = vmatprep.mubr.f32.mxu0 0.0
        %1017 = vmatmul.mubr.f32.gmra.mrb[0].mxu0 %v814
        %v1018 = vpop.f32.mrb[0].mxu0
        %v1019 = vadd.f32 0.0, %v1018
        %v1020 = vpop.f32.mrb[0].mxu0
        %1021 = vmatprep.mubr.f32.mxu0 0.0
        %1022 = vmatmul.mubr.f32.gmra.mrb[0].mxu0 %v817
        %v1023 = vpop.f32.mrb[0].mxu0
        %v1024 = vadd.f32 0.0, %v1023
        %v1025 = vpop.f32.mrb[0].mxu0
        %1026 = vmatprep.mubr.f32.mxu0 0.0
        %1027 = vmatmul.mubr.f32.gmra.mrb[0].mxu0 %v820
        %v1028 = vpop.f32.mrb[0].mxu0
        %v1029 = vadd.f32 0.0, %v1028
        %v1030 = vpop.f32.mrb[0].mxu0
        %1031 = vmatprep.mubr.f32.mxu0 0.0
        %1032 = vmatmul.mubr.f32.gmra.mrb[0].mxu0 %v823
        %v1033 = vpop.f32.mrb[0].mxu0
        %v1034 = vadd.f32 0.0, %v1033
        %v1035 = vpop.f32.mrb[0].mxu0
        %1036 = vmatprep.mubr.f32.mxu0 0.0
        %1037 = vmatmul.mubr.f32.gmra.mrb[0].mxu0 %v826
        %v1038 = vpop.f32.mrb[0].mxu0
        %v1039 = vadd.f32 0.0, %v1038
        %v1040 = vpop.f32.mrb[0].mxu0
        %1041 = vmatprep.mubr.f32.mxu0 0.0
        %1042 = vmatmul.mubr.f32.gmra.mrb[0].mxu0 %v829
        %v1043 = vpop.f32.mrb[0].mxu0
        %v1044 = vadd.f32 0.0, %v1043
        %v1045 = vpop.f32.mrb[0].mxu0
        %1046 = vmatprep.mubr.f32.mxu0 0.0
        %1047 = vmatmul.mubr.f32.gmra.mrb[0].mxu0 %v832
        %v1048 = vpop.f32.mrb[0].mxu0
        %v1049 = vadd.f32 0.0, %v1048
        %v1050 = vpop.f32.mrb[0].mxu0
        %1051 = vmatprep.mubr.f32.mxu0 0.0
        %1052 = vmatmul.mubr.f32.gmra.mrb[0].mxu0 %v835
        %v1053 = vpop.f32.mrb[0].mxu0
        %v1054 = vadd.f32 0.0, %v1053
        %v1055 = vpop.f32.mrb[0].mxu0
        %1056 = vmatprep.mubr.f32.mxu0 0.0
        %1057 = vmatmul.mubr.f32.gmra.mrb[0].mxu0 %v838
        %v1058 = vpop.f32.mrb[0].mxu0
        %v1059 = vadd.f32 0.0, %v1058
        %v1060 = vpop.f32.mrb[0].mxu0
        %1061 = vmatprep.mubr.f32.mxu0 0.0
        %1062 = vmatmul.mubr.f32.gmra.mrb[0].mxu0 %v841
        %v1063 = vpop.f32.mrb[0].mxu0
        %v1064 = vadd.f32 0.0, %v1063
        %v1065 = vpop.f32.mrb[0].mxu0
        %1066 = vmatprep.mubr.f32.mxu0 0.0
        %1067 = vmatmul.mubr.f32.gmra.mrb[0].mxu0 %v844
        %v1068 = vpop.f32.mrb[0].mxu0
        %v1069 = vadd.f32 0.0, %v1068
        %v1070 = vpop.f32.mrb[0].mxu0
        %1071 = vmatprep.mubr.f32.mxu0 0.0
        %1072 = vmatmul.mubr.f32.gmra.mrb[0].mxu0 %v847
        %v1073 = vpop.f32.mrb[0].mxu0
        %v1074 = vadd.f32 0.0, %v1073
        %v1075 = vpop.f32.mrb[0].mxu0
        %1076 = vdwg.mxu0
        %v1077 = vadd.f32 %v719, %v919
        %v1078 = vadd.f32 %v720, %v924
        %v1079 = vadd.f32 %v721, %v929
        %v1080 = vadd.f32 %v722, %v934
        %v1081 = vadd.f32 %v723, %v939
        %v1082 = vadd.f32 %v724, %v944
        %v1083 = vadd.f32 %v725, %v949
        %v1084 = vadd.f32 %v726, %v954
        %v1085 = vadd.f32 %v727, %v959
        %v1086 = vadd.f32 %v728, %v964
        %v1087 = vadd.f32 %v729, %v969
        %v1088 = vadd.f32 %v730, %v974
        %v1089 = vadd.f32 %v731, %v979
        %v1090 = vadd.f32 %v732, %v984
        %v1091 = vadd.f32 %v733, %v989
        %v1092 = vadd.f32 %v734, %v994
        %v1093 = vadd.f32 %v735, %v999
        %v1094 = vadd.f32 %v736, %v1004
        %v1095 = vadd.f32 %v737, %v1009
        %v1096 = vadd.f32 %v738, %v1014
        %v1097 = vadd.f32 %v739, %v1019
        %v1098 = vadd.f32 %v740, %v1024
        %v1099 = vadd.f32 %v741, %v1029
        %v1100 = vadd.f32 %v742, %v1034
        %v1101 = vadd.f32 %v743, %v1039
        %v1102 = vadd.f32 %v744, %v1044
        %v1103 = vadd.f32 %v745, %v1049
        %v1104 = vadd.f32 %v746, %v1054
        %v1105 = vadd.f32 %v747, %v1059
        %v1106 = vadd.f32 %v748, %v1064
        %v1107 = vadd.f32 %v749, %v1069
        %v1108 = vadd.f32 %v750, %v1074
        %1109 = vst [vmem:[#allocation2] sm:$0xff] %v1077
        %1110 = vst [vmem:[#allocation2 + $0x8] sm:$0xff] %v1078
        %1111 = vst [vmem:[#allocation2 + $0x10] sm:$0xff] %v1079
        %1112 = vst [vmem:[#allocation2 + $0x18] sm:$0xff] %v1080
        %1113 = vst [vmem:[#allocation2 + $0x20] sm:$0xff] %v1081
        %1114 = vst [vmem:[#allocation2 + $0x28] sm:$0xff] %v1082
        %1115 = vst [vmem:[#allocation2 + $0x30] sm:$0xff] %v1083
        %1116 = vst [vmem:[#allocation2 + $0x38] sm:$0xff] %v1084
        %1117 = vst [vmem:[#allocation2 + $0x40] sm:$0xff] %v1085
        %1118 = vst [vmem:[#allocation2 + $0x48] sm:$0xff] %v1086
        %1119 = vst [vmem:[#allocation2 + $0x50] sm:$0xff] %v1087
        %1120 = vst [vmem:[#allocation2 + $0x58] sm:$0xff] %v1088
        %1121 = vst [vmem:[#allocation2 + $0x60] sm:$0xff] %v1089
        %1122 = vst [vmem:[#allocation2 + $0x68] sm:$0xff] %v1090
        %1123 = vst [vmem:[#allocation2 + $0x70] sm:$0xff] %v1091
        %1124 = vst [vmem:[#allocation2 + $0x78] sm:$0xff] %v1092
        %1125 = vst [vmem:[#allocation2 + $0x80] sm:$0xff] %v1093
        %1126 = vst [vmem:[#allocation2 + $0x88] sm:$0xff] %v1094
        %1127 = vst [vmem:[#allocation2 + $0x90] sm:$0xff] %v1095
        %1128 = vst [vmem:[#allocation2 + $0x98] sm:$0xff] %v1096
        %1129 = vst [vmem:[#allocation2 + $0xa0] sm:$0xff] %v1097
        %1130 = vst [vmem:[#allocation2 + $0xa8] sm:$0xff] %v1098
        %1131 = vst [vmem:[#allocation2 + $0xb0] sm:$0xff] %v1099
        %1132 = vst [vmem:[#allocation2 + $0xb8] sm:$0xff] %v1100
        %1133 = vst [vmem:[#allocation2 + $0xc0] sm:$0xff] %v1101
        %1134 = vst [vmem:[#allocation2 + $0xc8] sm:$0xff] %v1102
        %1135 = vst [vmem:[#allocation2 + $0xd0] sm:$0xff] %v1103
        %1136 = vst [vmem:[#allocation2 + $0xd8] sm:$0xff] %v1104
        %1137 = vst [vmem:[#allocation2 + $0xe0] sm:$0xff] %v1105
        %1138 = vst [vmem:[#allocation2 + $0xe8] sm:$0xff] %v1106
        %1139 = vst [vmem:[#allocation2 + $0xf0] sm:$0xff] %v1107
        %1140 = vst [vmem:[#allocation2 + $0xf8] sm:$0xff] %v1108
        %v1141 = vld [vmem:[%s231 + $0x2] sm:$0xff]
        %v1142 = vld [vmem:[%s231 + $0xa] sm:$0xff]
        %v1143 = vld [vmem:[%s231 + $0x1a] sm:$0xff]
        %v1144 = vld [vmem:[%s231 + $0x22] sm:$0xff]
        %v1145 = vld [vmem:[%s231 + $0x32] sm:$0xff]
        %v1146 = vld [vmem:[%s231 + $0x3a] sm:$0xff]
        %v1147 = vld [vmem:[%s231 + $0x4a] sm:$0xff]
        %v1148 = vld [vmem:[%s231 + $0x52] sm:$0xff]
        %v1149 = vld [vmem:[%s231 + $0x62] sm:$0xff]
        %v1150 = vld [vmem:[%s231 + $0x6a] sm:$0xff]
        %v1151 = vld [vmem:[%s231 + $0x7a] sm:$0xff]
        %v1152 = vld [vmem:[%s231 + $0x82] sm:$0xff]
        %v1153 = vld [vmem:[%s231 + $0x92] sm:$0xff]
        %v1154 = vld [vmem:[%s231 + $0x9a] sm:$0xff]
        %v1155 = vld [vmem:[%s231 + $0xaa] sm:$0xff]
        %v1156 = vld [vmem:[%s231 + $0xb2] sm:$0xff]
        %v1157 = vld [vmem:[%s231 + $0xc2] sm:$0xff]
        %v1158 = vld [vmem:[%s231 + $0xca] sm:$0xff]
        %v1159 = vld [vmem:[%s231 + $0xda] sm:$0xff]
        %v1160 = vld [vmem:[%s231 + $0xe2] sm:$0xff]
        %v1161 = vld [vmem:[%s231 + $0xf2] sm:$0xff]
        %v1162 = vld [vmem:[%s231 + $0xfa] sm:$0xff]
        %v1163 = vld [vmem:[%s231 + $0x10a] sm:$0xff]
        %v1164 = vld [vmem:[%s231 + $0x112] sm:$0xff]
        %v1165 = vld [vmem:[%s231 + $0x122] sm:$0xff]
        %v1166 = vld [vmem:[%s231 + $0x12a] sm:$0xff]
        %v1167 = vld [vmem:[%s231 + $0x13a] sm:$0xff]
        %v1168 = vld [vmem:[%s231 + $0x142] sm:$0xff]
        %v1169 = vld [vmem:[%s231 + $0x152] sm:$0xff]
        %v1170 = vld [vmem:[%s231 + $0x15a] sm:$0xff]
        %v1171 = vld [vmem:[%s231 + $0x16a] sm:$0xff]
        %v1172 = vld [vmem:[%s231 + $0x172] sm:$0xff]
        %v1173 = vld [vmem:[#allocation2] sm:$0xff]
        %v1174 = vld [vmem:[#allocation2 + $0x8] sm:$0xff]
        %v1175 = vld [vmem:[#allocation2 + $0x10] sm:$0xff]
        %v1176 = vld [vmem:[#allocation2 + $0x18] sm:$0xff]
        %v1177 = vld [vmem:[#allocation2 + $0x20] sm:$0xff]
        %v1178 = vld [vmem:[#allocation2 + $0x28] sm:$0xff]
        %v1179 = vld [vmem:[#allocation2 + $0x30] sm:$0xff]
        %v1180 = vld [vmem:[#allocation2 + $0x38] sm:$0xff]
        %v1181 = vld [vmem:[#allocation2 + $0x40] sm:$0xff]
        %v1182 = vld [vmem:[#allocation2 + $0x48] sm:$0xff]
        %v1183 = vld [vmem:[#allocation2 + $0x50] sm:$0xff]
        %v1184 = vld [vmem:[#allocation2 + $0x58] sm:$0xff]
        %v1185 = vld [vmem:[#allocation2 + $0x60] sm:$0xff]
        %v1186 = vld [vmem:[#allocation2 + $0x68] sm:$0xff]
        %v1187 = vld [vmem:[#allocation2 + $0x70] sm:$0xff]
        %v1188 = vld [vmem:[#allocation2 + $0x78] sm:$0xff]
        %v1189 = vld [vmem:[#allocation2 + $0x80] sm:$0xff]
        %v1190 = vld [vmem:[#allocation2 + $0x88] sm:$0xff]
        %v1191 = vld [vmem:[#allocation2 + $0x90] sm:$0xff]
        %v1192 = vld [vmem:[#allocation2 + $0x98] sm:$0xff]
        %v1193 = vld [vmem:[#allocation2 + $0xa0] sm:$0xff]
        %v1194 = vld [vmem:[#allocation2 + $0xa8] sm:$0xff]
        %v1195 = vld [vmem:[#allocation2 + $0xb0] sm:$0xff]
        %v1196 = vld [vmem:[#allocation2 + $0xb8] sm:$0xff]
        %v1197 = vld [vmem:[#allocation2 + $0xc0] sm:$0xff]
        %v1198 = vld [vmem:[#allocation2 + $0xc8] sm:$0xff]
        %v1199 = vld [vmem:[#allocation2 + $0xd0] sm:$0xff]
        %v1200 = vld [vmem:[#allocation2 + $0xd8] sm:$0xff]
        %v1201 = vld [vmem:[#allocation2 + $0xe0] sm:$0xff]
        %v1202 = vld [vmem:[#allocation2 + $0xe8] sm:$0xff]
        %v1203 = vld [vmem:[#allocation2 + $0xf0] sm:$0xff]
        %v1204 = vld [vmem:[#allocation2 + $0xf8] sm:$0xff]
        %s1205 = scalar_lea.vmem %s1, 8
        %v1206 = vld [vmem:[%s1205] sm:$0xf]
        %v1208 = vsel %vm297, %v1141, 0
        %v1211 = vsel %vm297, %v1142, 0
        %v1214 = vsel %vm297, %v1143, 0
        %v1217 = vsel %vm297, %v1144, 0
        %v1220 = vsel %vm297, %v1145, 0
        %v1223 = vsel %vm297, %v1146, 0
        %v1226 = vsel %vm297, %v1147, 0
        %v1229 = vsel %vm297, %v1148, 0
        %v1232 = vsel %vm297, %v1149, 0
        %v1235 = vsel %vm297, %v1150, 0
        %v1238 = vsel %vm297, %v1151, 0
        %v1241 = vsel %vm297, %v1152, 0
        %v1244 = vsel %vm297, %v1153, 0
        %v1247 = vsel %vm297, %v1154, 0
        %v1250 = vsel %vm297, %v1155, 0
        %v1253 = vsel %vm297, %v1156, 0
        %v1256 = vsel %vm297, %v1157, 0
        %v1259 = vsel %vm297, %v1158, 0
        %v1262 = vsel %vm297, %v1159, 0
        %v1265 = vsel %vm297, %v1160, 0
        %v1268 = vsel %vm297, %v1161, 0
        %v1271 = vsel %vm297, %v1162, 0
        %v1274 = vsel %vm297, %v1163, 0
        %v1277 = vsel %vm297, %v1164, 0
        %v1280 = vsel %vm297, %v1165, 0
        %v1283 = vsel %vm297, %v1166, 0
        %v1286 = vsel %vm297, %v1167, 0
        %v1289 = vsel %vm297, %v1168, 0
        %v1292 = vsel %vm297, %v1169, 0
        %v1295 = vsel %vm297, %v1170, 0
        %v1298 = vsel %vm297, %v1171, 0
        %v1301 = vsel %vm297, %v1172, 0
        %v1304 = vsel %vm394, %v1206, 0
        %1306 = vmatprep.subr.mxu0 0.0
        %1307 = vmatpush1.msra.mxu0 %v1304
        %1308 = vmatprep.subr.mxu0 0.0
        %1309 = vmatpush1.msra.mxu0 0.0
        %1310 = vmatprep.subr.mxu0 0.0
        %1311 = vmatpush1.msra.mxu0 0.0
        %1312 = vmatprep.subr.mxu0 0.0
        %1313 = vmatpush1.msra.mxu0 0.0
        %1314 = vmatprep.subr.mxu0 0.0
        %1315 = vmatpush1.msra.mxu0 0.0
        %1316 = vmatprep.subr.mxu0 0.0
        %1317 = vmatpush1.msra.mxu0 0.0
        %1318 = vmatprep.subr.mxu0 0.0
        %1319 = vmatpush1.msra.mxu0 0.0
        %1320 = vmatprep.subr.mxu0 0.0
        %1321 = vmatpush1.msra.mxu0 0.0
        %1322 = vmatprep.subr.mxu0 0.0
        %1323 = vmatpush1.msra.mxu0 0.0
        %1324 = vmatprep.subr.mxu0 0.0
        %1325 = vmatpush1.msra.mxu0 0.0
        %1326 = vmatprep.subr.mxu0 0.0
        %1327 = vmatpush1.msra.mxu0 0.0
        %1328 = vmatprep.subr.mxu0 0.0
        %1329 = vmatpush1.msra.mxu0 0.0
        %1330 = vmatprep.subr.mxu0 0.0
        %1331 = vmatpush1.msra.mxu0 0.0
        %1332 = vmatprep.subr.mxu0 0.0
        %1333 = vmatpush1.msra.mxu0 0.0
        %1334 = vmatprep.subr.mxu0 0.0
        %1335 = vmatpush1.msra.mxu0 0.0
        %1336 = vmatprep.subr.mxu0 0.0
        %1337 = vmatpush1.msra.mxu0 0.0
        %1338 = vmatprep.subr.mxu0 0.0
        %1339 = vmatpush1.msra.mxu0 0.0
        %1340 = vmatprep.subr.mxu0 0.0
        %1341 = vmatpush1.msra.mxu0 0.0
        %1342 = vmatprep.subr.mxu0 0.0
        %1343 = vmatpush1.msra.mxu0 0.0
        %1344 = vmatprep.subr.mxu0 0.0
        %1345 = vmatpush1.msra.mxu0 0.0
        %1346 = vmatprep.subr.mxu0 0.0
        %1347 = vmatpush1.msra.mxu0 0.0
        %1348 = vmatprep.subr.mxu0 0.0
        %1349 = vmatpush1.msra.mxu0 0.0
        %1350 = vmatprep.subr.mxu0 0.0
        %1351 = vmatpush1.msra.mxu0 0.0
        %1352 = vmatprep.subr.mxu0 0.0
        %1353 = vmatpush1.msra.mxu0 0.0
        %1354 = vmatprep.subr.mxu0 0.0
        %1355 = vmatpush1.msra.mxu0 0.0
        %1356 = vmatprep.subr.mxu0 0.0
        %1357 = vmatpush1.msra.mxu0 0.0
        %1358 = vmatprep.subr.mxu0 0.0
        %1359 = vmatpush1.msra.mxu0 0.0
        %1360 = vmatprep.subr.mxu0 0.0
        %1361 = vmatpush1.msra.mxu0 0.0
        %1362 = vmatprep.subr.mxu0 0.0
        %1363 = vmatpush1.msra.mxu0 0.0
        %1364 = vmatprep.subr.mxu0 0.0
        %1365 = vmatpush1.msra.mxu0 0.0
        %1366 = vmatprep.subr.mxu0 0.0
        %1367 = vmatpush1.msra.mxu0 0.0
        %1368 = vmatprep.subr.mxu0 0.0
        %1369 = vmatpush1.msra.mxu0 0.0
        %1370 = vmatprep.mubr.f32.mxu0 0.0
        %1371 = vmatmul.mubr.f32.gmra.mrb[0].mxu0 %v1208
        %v1372 = vpop.f32.mrb[0].mxu0
        %v1373 = vadd.f32 0.0, %v1372
        %v1374 = vpop.f32.mrb[0].mxu0
        %1375 = vmatprep.mubr.f32.mxu0 0.0
        %1376 = vmatmul.mubr.f32.gmra.mrb[0].mxu0 %v1211
        %v1377 = vpop.f32.mrb[0].mxu0
        %v1378 = vadd.f32 0.0, %v1377
        %v1379 = vpop.f32.mrb[0].mxu0
        %1380 = vmatprep.mubr.f32.mxu0 0.0
        %1381 = vmatmul.mubr.f32.gmra.mrb[0].mxu0 %v1214
        %v1382 = vpop.f32.mrb[0].mxu0
        %v1383 = vadd.f32 0.0, %v1382
        %v1384 = vpop.f32.mrb[0].mxu0
        %1385 = vmatprep.mubr.f32.mxu0 0.0
        %1386 = vmatmul.mubr.f32.gmra.mrb[0].mxu0 %v1217
        %v1387 = vpop.f32.mrb[0].mxu0
        %v1388 = vadd.f32 0.0, %v1387
        %v1389 = vpop.f32.mrb[0].mxu0
        %1390 = vmatprep.mubr.f32.mxu0 0.0
        %1391 = vmatmul.mubr.f32.gmra.mrb[0].mxu0 %v1220
        %v1392 = vpop.f32.mrb[0].mxu0
        %v1393 = vadd.f32 0.0, %v1392
        %v1394 = vpop.f32.mrb[0].mxu0
        %1395 = vmatprep.mubr.f32.mxu0 0.0
        %1396 = vmatmul.mubr.f32.gmra.mrb[0].mxu0 %v1223
        %v1397 = vpop.f32.mrb[0].mxu0
        %v1398 = vadd.f32 0.0, %v1397
        %v1399 = vpop.f32.mrb[0].mxu0
        %1400 = vmatprep.mubr.f32.mxu0 0.0
        %1401 = vmatmul.mubr.f32.gmra.mrb[0].mxu0 %v1226
        %v1402 = vpop.f32.mrb[0].mxu0
        %v1403 = vadd.f32 0.0, %v1402
        %v1404 = vpop.f32.mrb[0].mxu0
        %1405 = vmatprep.mubr.f32.mxu0 0.0
        %1406 = vmatmul.mubr.f32.gmra.mrb[0].mxu0 %v1229
        %v1407 = vpop.f32.mrb[0].mxu0
        %v1408 = vadd.f32 0.0, %v1407
        %v1409 = vpop.f32.mrb[0].mxu0
        %1410 = vmatprep.mubr.f32.mxu0 0.0
        %1411 = vmatmul.mubr.f32.gmra.mrb[0].mxu0 %v1232
        %v1412 = vpop.f32.mrb[0].mxu0
        %v1413 = vadd.f32 0.0, %v1412
        %v1414 = vpop.f32.mrb[0].mxu0
        %1415 = vmatprep.mubr.f32.mxu0 0.0
        %1416 = vmatmul.mubr.f32.gmra.mrb[0].mxu0 %v1235
        %v1417 = vpop.f32.mrb[0].mxu0
        %v1418 = vadd.f32 0.0, %v1417
        %v1419 = vpop.f32.mrb[0].mxu0
        %1420 = vmatprep.mubr.f32.mxu0 0.0
        %1421 = vmatmul.mubr.f32.gmra.mrb[0].mxu0 %v1238
        %v1422 = vpop.f32.mrb[0].mxu0
        %v1423 = vadd.f32 0.0, %v1422
        %v1424 = vpop.f32.mrb[0].mxu0
        %1425 = vmatprep.mubr.f32.mxu0 0.0
        %1426 = vmatmul.mubr.f32.gmra.mrb[0].mxu0 %v1241
        %v1427 = vpop.f32.mrb[0].mxu0
        %v1428 = vadd.f32 0.0, %v1427
        %v1429 = vpop.f32.mrb[0].mxu0
        %1430 = vmatprep.mubr.f32.mxu0 0.0
        %1431 = vmatmul.mubr.f32.gmra.mrb[0].mxu0 %v1244
        %v1432 = vpop.f32.mrb[0].mxu0
        %v1433 = vadd.f32 0.0, %v1432
        %v1434 = vpop.f32.mrb[0].mxu0
        %1435 = vmatprep.mubr.f32.mxu0 0.0
        %1436 = vmatmul.mubr.f32.gmra.mrb[0].mxu0 %v1247
        %v1437 = vpop.f32.mrb[0].mxu0
        %v1438 = vadd.f32 0.0, %v1437
        %v1439 = vpop.f32.mrb[0].mxu0
        %1440 = vmatprep.mubr.f32.mxu0 0.0
        %1441 = vmatmul.mubr.f32.gmra.mrb[0].mxu0 %v1250
        %v1442 = vpop.f32.mrb[0].mxu0
        %v1443 = vadd.f32 0.0, %v1442
        %v1444 = vpop.f32.mrb[0].mxu0
        %1445 = vmatprep.mubr.f32.mxu0 0.0
        %1446 = vmatmul.mubr.f32.gmra.mrb[0].mxu0 %v1253
        %v1447 = vpop.f32.mrb[0].mxu0
        %v1448 = vadd.f32 0.0, %v1447
        %v1449 = vpop.f32.mrb[0].mxu0
        %1450 = vmatprep.mubr.f32.mxu0 0.0
        %1451 = vmatmul.mubr.f32.gmra.mrb[0].mxu0 %v1256
        %v1452 = vpop.f32.mrb[0].mxu0
        %v1453 = vadd.f32 0.0, %v1452
        %v1454 = vpop.f32.mrb[0].mxu0
        %1455 = vmatprep.mubr.f32.mxu0 0.0
        %1456 = vmatmul.mubr.f32.gmra.mrb[0].mxu0 %v1259
        %v1457 = vpop.f32.mrb[0].mxu0
        %v1458 = vadd.f32 0.0, %v1457
        %v1459 = vpop.f32.mrb[0].mxu0
        %1460 = vmatprep.mubr.f32.mxu0 0.0
        %1461 = vmatmul.mubr.f32.gmra.mrb[0].mxu0 %v1262
        %v1462 = vpop.f32.mrb[0].mxu0
        %v1463 = vadd.f32 0.0, %v1462
        %v1464 = vpop.f32.mrb[0].mxu0
        %1465 = vmatprep.mubr.f32.mxu0 0.0
        %1466 = vmatmul.mubr.f32.gmra.mrb[0].mxu0 %v1265
        %v1467 = vpop.f32.mrb[0].mxu0
        %v1468 = vadd.f32 0.0, %v1467
        %v1469 = vpop.f32.mrb[0].mxu0
        %1470 = vmatprep.mubr.f32.mxu0 0.0
        %1471 = vmatmul.mubr.f32.gmra.mrb[0].mxu0 %v1268
        %v1472 = vpop.f32.mrb[0].mxu0
        %v1473 = vadd.f32 0.0, %v1472
        %v1474 = vpop.f32.mrb[0].mxu0
        %1475 = vmatprep.mubr.f32.mxu0 0.0
        %1476 = vmatmul.mubr.f32.gmra.mrb[0].mxu0 %v1271
        %v1477 = vpop.f32.mrb[0].mxu0
        %v1478 = vadd.f32 0.0, %v1477
        %v1479 = vpop.f32.mrb[0].mxu0
        %1480 = vmatprep.mubr.f32.mxu0 0.0
        %1481 = vmatmul.mubr.f32.gmra.mrb[0].mxu0 %v1274
        %v1482 = vpop.f32.mrb[0].mxu0
        %v1483 = vadd.f32 0.0, %v1482
        %v1484 = vpop.f32.mrb[0].mxu0
        %1485 = vmatprep.mubr.f32.mxu0 0.0
        %1486 = vmatmul.mubr.f32.gmra.mrb[0].mxu0 %v1277
        %v1487 = vpop.f32.mrb[0].mxu0
        %v1488 = vadd.f32 0.0, %v1487
        %v1489 = vpop.f32.mrb[0].mxu0
        %1490 = vmatprep.mubr.f32.mxu0 0.0
        %1491 = vmatmul.mubr.f32.gmra.mrb[0].mxu0 %v1280
        %v1492 = vpop.f32.mrb[0].mxu0
        %v1493 = vadd.f32 0.0, %v1492
        %v1494 = vpop.f32.mrb[0].mxu0
        %1495 = vmatprep.mubr.f32.mxu0 0.0
        %1496 = vmatmul.mubr.f32.gmra.mrb[0].mxu0 %v1283
        %v1497 = vpop.f32.mrb[0].mxu0
        %v1498 = vadd.f32 0.0, %v1497
        %v1499 = vpop.f32.mrb[0].mxu0
        %1500 = vmatprep.mubr.f32.mxu0 0.0
        %1501 = vmatmul.mubr.f32.gmra.mrb[0].mxu0 %v1286
        %v1502 = vpop.f32.mrb[0].mxu0
        %v1503 = vadd.f32 0.0, %v1502
        %v1504 = vpop.f32.mrb[0].mxu0
        %1505 = vmatprep.mubr.f32.mxu0 0.0
        %1506 = vmatmul.mubr.f32.gmra.mrb[0].mxu0 %v1289
        %v1507 = vpop.f32.mrb[0].mxu0
        %v1508 = vadd.f32 0.0, %v1507
        %v1509 = vpop.f32.mrb[0].mxu0
        %1510 = vmatprep.mubr.f32.mxu0 0.0
        %1511 = vmatmul.mubr.f32.gmra.mrb[0].mxu0 %v1292
        %v1512 = vpop.f32.mrb[0].mxu0
        %v1513 = vadd.f32 0.0, %v1512
        %v1514 = vpop.f32.mrb[0].mxu0
        %1515 = vmatprep.mubr.f32.mxu0 0.0
        %1516 = vmatmul.mubr.f32.gmra.mrb[0].mxu0 %v1295
        %v1517 = vpop.f32.mrb[0].mxu0
        %v1518 = vadd.f32 0.0, %v1517
        %v1519 = vpop.f32.mrb[0].mxu0
        %1520 = vmatprep.mubr.f32.mxu0 0.0
        %1521 = vmatmul.mubr.f32.gmra.mrb[0].mxu0 %v1298
        %v1522 = vpop.f32.mrb[0].mxu0
        %v1523 = vadd.f32 0.0, %v1522
        %v1524 = vpop.f32.mrb[0].mxu0
        %1525 = vmatprep.mubr.f32.mxu0 0.0
        %1526 = vmatmul.mubr.f32.gmra.mrb[0].mxu0 %v1301
        %v1527 = vpop.f32.mrb[0].mxu0
        %v1528 = vadd.f32 0.0, %v1527
        %v1529 = vpop.f32.mrb[0].mxu0
        %1530 = vdwg.mxu0
        %v1531 = vadd.f32 %v1173, %v1373
        %v1532 = vadd.f32 %v1174, %v1378
        %v1533 = vadd.f32 %v1175, %v1383
        %v1534 = vadd.f32 %v1176, %v1388
        %v1535 = vadd.f32 %v1177, %v1393
        %v1536 = vadd.f32 %v1178, %v1398
        %v1537 = vadd.f32 %v1179, %v1403
        %v1538 = vadd.f32 %v1180, %v1408
        %v1539 = vadd.f32 %v1181, %v1413
        %v1540 = vadd.f32 %v1182, %v1418
        %v1541 = vadd.f32 %v1183, %v1423
        %v1542 = vadd.f32 %v1184, %v1428
        %v1543 = vadd.f32 %v1185, %v1433
        %v1544 = vadd.f32 %v1186, %v1438
        %v1545 = vadd.f32 %v1187, %v1443
        %v1546 = vadd.f32 %v1188, %v1448
        %v1547 = vadd.f32 %v1189, %v1453
        %v1548 = vadd.f32 %v1190, %v1458
        %v1549 = vadd.f32 %v1191, %v1463
        %v1550 = vadd.f32 %v1192, %v1468
        %v1551 = vadd.f32 %v1193, %v1473
        %v1552 = vadd.f32 %v1194, %v1478
        %v1553 = vadd.f32 %v1195, %v1483
        %v1554 = vadd.f32 %v1196, %v1488
        %v1555 = vadd.f32 %v1197, %v1493
        %v1556 = vadd.f32 %v1198, %v1498
        %v1557 = vadd.f32 %v1199, %v1503
        %v1558 = vadd.f32 %v1200, %v1508
        %v1559 = vadd.f32 %v1201, %v1513
        %v1560 = vadd.f32 %v1202, %v1518
        %v1561 = vadd.f32 %v1203, %v1523
        %v1562 = vadd.f32 %v1204, %v1528
        %1563 = vst [vmem:[#allocation2] sm:$0xff] %v1531
        %1564 = vst [vmem:[#allocation2 + $0x8] sm:$0xff] %v1532
        %1565 = vst [vmem:[#allocation2 + $0x10] sm:$0xff] %v1533
        %1566 = vst [vmem:[#allocation2 + $0x18] sm:$0xff] %v1534
        %1567 = vst [vmem:[#allocation2 + $0x20] sm:$0xff] %v1535
        %1568 = vst [vmem:[#allocation2 + $0x28] sm:$0xff] %v1536
        %1569 = vst [vmem:[#allocation2 + $0x30] sm:$0xff] %v1537
        %1570 = vst [vmem:[#allocation2 + $0x38] sm:$0xff] %v1538
        %1571 = vst [vmem:[#allocation2 + $0x40] sm:$0xff] %v1539
        %1572 = vst [vmem:[#allocation2 + $0x48] sm:$0xff] %v1540
        %1573 = vst [vmem:[#allocation2 + $0x50] sm:$0xff] %v1541
        %1574 = vst [vmem:[#allocation2 + $0x58] sm:$0xff] %v1542
        %1575 = vst [vmem:[#allocation2 + $0x60] sm:$0xff] %v1543
        %1576 = vst [vmem:[#allocation2 + $0x68] sm:$0xff] %v1544
        %1577 = vst [vmem:[#allocation2 + $0x70] sm:$0xff] %v1545
        %1578 = vst [vmem:[#allocation2 + $0x78] sm:$0xff] %v1546
        %1579 = vst [vmem:[#allocation2 + $0x80] sm:$0xff] %v1547
        %1580 = vst [vmem:[#allocation2 + $0x88] sm:$0xff] %v1548
        %1581 = vst [vmem:[#allocation2 + $0x90] sm:$0xff] %v1549
        %1582 = vst [vmem:[#allocation2 + $0x98] sm:$0xff] %v1550
        %1583 = vst [vmem:[#allocation2 + $0xa0] sm:$0xff] %v1551
        %1584 = vst [vmem:[#allocation2 + $0xa8] sm:$0xff] %v1552
        %1585 = vst [vmem:[#allocation2 + $0xb0] sm:$0xff] %v1553
        %1586 = vst [vmem:[#allocation2 + $0xb8] sm:$0xff] %v1554
        %1587 = vst [vmem:[#allocation2 + $0xc0] sm:$0xff] %v1555
        %1588 = vst [vmem:[#allocation2 + $0xc8] sm:$0xff] %v1556
        %1589 = vst [vmem:[#allocation2 + $0xd0] sm:$0xff] %v1557
        %1590 = vst [vmem:[#allocation2 + $0xd8] sm:$0xff] %v1558
        %1591 = vst [vmem:[#allocation2 + $0xe0] sm:$0xff] %v1559
        %1592 = vst [vmem:[#allocation2 + $0xe8] sm:$0xff] %v1560
        %1593 = vst [vmem:[#allocation2 + $0xf0] sm:$0xff] %v1561
        %1594 = vst [vmem:[#allocation2 + $0xf8] sm:$0xff] %v1562
        %s1595 = sadd.s32 %s197, 1
        %s1596 = smul.u32 %s1595, 24
        %s1597 = scalar_lea.vmem %s195, %s1596
        %v1598 = vld [vmem:[%s1597] sm:$0xff]
        %v1599 = vld [vmem:[%s1597 + $0x8] sm:$0xff]
        %v1600 = vld [vmem:[%s1597 + $0x18] sm:$0xff]
        %v1601 = vld [vmem:[%s1597 + $0x20] sm:$0xff]
        %v1602 = vld [vmem:[%s1597 + $0x30] sm:$0xff]
        %v1603 = vld [vmem:[%s1597 + $0x38] sm:$0xff]
        %v1604 = vld [vmem:[%s1597 + $0x48] sm:$0xff]
        %v1605 = vld [vmem:[%s1597 + $0x50] sm:$0xff]
        %v1606 = vld [vmem:[%s1597 + $0x60] sm:$0xff]
        %v1607 = vld [vmem:[%s1597 + $0x68] sm:$0xff]
        %v1608 = vld [vmem:[%s1597 + $0x78] sm:$0xff]
        %v1609 = vld [vmem:[%s1597 + $0x80] sm:$0xff]
        %v1610 = vld [vmem:[%s1597 + $0x90] sm:$0xff]
        %v1611 = vld [vmem:[%s1597 + $0x98] sm:$0xff]
        %v1612 = vld [vmem:[%s1597 + $0xa8] sm:$0xff]
        %v1613 = vld [vmem:[%s1597 + $0xb0] sm:$0xff]
        %v1614 = vld [vmem:[%s1597 + $0xc0] sm:$0xff]
        %v1615 = vld [vmem:[%s1597 + $0xc8] sm:$0xff]
        %v1616 = vld [vmem:[%s1597 + $0xd8] sm:$0xff]
        %v1617 = vld [vmem:[%s1597 + $0xe0] sm:$0xff]
        %v1618 = vld [vmem:[%s1597 + $0xf0] sm:$0xff]
        %v1619 = vld [vmem:[%s1597 + $0xf8] sm:$0xff]
        %v1620 = vld [vmem:[%s1597 + $0x108] sm:$0xff]
        %v1621 = vld [vmem:[%s1597 + $0x110] sm:$0xff]
        %v1622 = vld [vmem:[%s1597 + $0x120] sm:$0xff]
        %v1623 = vld [vmem:[%s1597 + $0x128] sm:$0xff]
        %v1624 = vld [vmem:[%s1597 + $0x138] sm:$0xff]
        %v1625 = vld [vmem:[%s1597 + $0x140] sm:$0xff]
        %v1626 = vld [vmem:[%s1597 + $0x150] sm:$0xff]
        %v1627 = vld [vmem:[%s1597 + $0x158] sm:$0xff]
        %v1628 = vld [vmem:[%s1597 + $0x168] sm:$0xff]
        %v1629 = vld [vmem:[%s1597 + $0x170] sm:$0xff]
        %v1630 = vld [vmem:[#allocation2] sm:$0xff]
        %v1631 = vld [vmem:[#allocation2 + $0x8] sm:$0xff]
        %v1632 = vld [vmem:[#allocation2 + $0x10] sm:$0xff]
        %v1633 = vld [vmem:[#allocation2 + $0x18] sm:$0xff]
        %v1634 = vld [vmem:[#allocation2 + $0x20] sm:$0xff]
        %v1635 = vld [vmem:[#allocation2 + $0x28] sm:$0xff]
        %v1636 = vld [vmem:[#allocation2 + $0x30] sm:$0xff]
        %v1637 = vld [vmem:[#allocation2 + $0x38] sm:$0xff]
        %v1638 = vld [vmem:[#allocation2 + $0x40] sm:$0xff]
        %v1639 = vld [vmem:[#allocation2 + $0x48] sm:$0xff]
        %v1640 = vld [vmem:[#allocation2 + $0x50] sm:$0xff]
        %v1641 = vld [vmem:[#allocation2 + $0x58] sm:$0xff]
        %v1642 = vld [vmem:[#allocation2 + $0x60] sm:$0xff]
        %v1643 = vld [vmem:[#allocation2 + $0x68] sm:$0xff]
        %v1644 = vld [vmem:[#allocation2 + $0x70] sm:$0xff]
        %v1645 = vld [vmem:[#allocation2 + $0x78] sm:$0xff]
        %v1646 = vld [vmem:[#allocation2 + $0x80] sm:$0xff]
        %v1647 = vld [vmem:[#allocation2 + $0x88] sm:$0xff]
        %v1648 = vld [vmem:[#allocation2 + $0x90] sm:$0xff]
        %v1649 = vld [vmem:[#allocation2 + $0x98] sm:$0xff]
        %v1650 = vld [vmem:[#allocation2 + $0xa0] sm:$0xff]
        %v1651 = vld [vmem:[#allocation2 + $0xa8] sm:$0xff]
        %v1652 = vld [vmem:[#allocation2 + $0xb0] sm:$0xff]
        %v1653 = vld [vmem:[#allocation2 + $0xb8] sm:$0xff]
        %v1654 = vld [vmem:[#allocation2 + $0xc0] sm:$0xff]
        %v1655 = vld [vmem:[#allocation2 + $0xc8] sm:$0xff]
        %v1656 = vld [vmem:[#allocation2 + $0xd0] sm:$0xff]
        %v1657 = vld [vmem:[#allocation2 + $0xd8] sm:$0xff]
        %v1658 = vld [vmem:[#allocation2 + $0xe0] sm:$0xff]
        %v1659 = vld [vmem:[#allocation2 + $0xe8] sm:$0xff]
        %v1660 = vld [vmem:[#allocation2 + $0xf0] sm:$0xff]
        %v1661 = vld [vmem:[#allocation2 + $0xf8] sm:$0xff]
        %s1662 = scalar_lea.vmem %s1, 12
        %v1663 = vld [vmem:[%s1662] sm:$0xf]
        %v1665 = vsel %vm297, %v1598, 0
        %v1668 = vsel %vm297, %v1599, 0
        %v1671 = vsel %vm297, %v1600, 0
        %v1674 = vsel %vm297, %v1601, 0
        %v1677 = vsel %vm297, %v1602, 0
        %v1680 = vsel %vm297, %v1603, 0
        %v1683 = vsel %vm297, %v1604, 0
        %v1686 = vsel %vm297, %v1605, 0
        %v1689 = vsel %vm297, %v1606, 0
        %v1692 = vsel %vm297, %v1607, 0
        %v1695 = vsel %vm297, %v1608, 0
        %v1698 = vsel %vm297, %v1609, 0
        %v1701 = vsel %vm297, %v1610, 0
        %v1704 = vsel %vm297, %v1611, 0
        %v1707 = vsel %vm297, %v1612, 0
        %v1710 = vsel %vm297, %v1613, 0
        %v1713 = vsel %vm297, %v1614, 0
        %v1716 = vsel %vm297, %v1615, 0
        %v1719 = vsel %vm297, %v1616, 0
        %v1722 = vsel %vm297, %v1617, 0
        %v1725 = vsel %vm297, %v1618, 0
        %v1728 = vsel %vm297, %v1619, 0
        %v1731 = vsel %vm297, %v1620, 0
        %v1734 = vsel %vm297, %v1621, 0
        %v1737 = vsel %vm297, %v1622, 0
        %v1740 = vsel %vm297, %v1623, 0
        %v1743 = vsel %vm297, %v1624, 0
        %v1746 = vsel %vm297, %v1625, 0
        %v1749 = vsel %vm297, %v1626, 0
        %v1752 = vsel %vm297, %v1627, 0
        %v1755 = vsel %vm297, %v1628, 0
        %v1758 = vsel %vm297, %v1629, 0
        %v1761 = vsel %vm394, %v1663, 0
        %1763 = vmatprep.subr.mxu0 0.0
        %1764 = vmatpush1.msra.mxu0 %v1761
        %1765 = vmatprep.subr.mxu0 0.0
        %1766 = vmatpush1.msra.mxu0 0.0
        %1767 = vmatprep.subr.mxu0 0.0
        %1768 = vmatpush1.msra.mxu0 0.0
        %1769 = vmatprep.subr.mxu0 0.0
        %1770 = vmatpush1.msra.mxu0 0.0
        %1771 = vmatprep.subr.mxu0 0.0
        %1772 = vmatpush1.msra.mxu0 0.0
        %1773 = vmatprep.subr.mxu0 0.0
        %1774 = vmatpush1.msra.mxu0 0.0
        %1775 = vmatprep.subr.mxu0 0.0
        %1776 = vmatpush1.msra.mxu0 0.0
        %1777 = vmatprep.subr.mxu0 0.0
        %1778 = vmatpush1.msra.mxu0 0.0
        %1779 = vmatprep.subr.mxu0 0.0
        %1780 = vmatpush1.msra.mxu0 0.0
        %1781 = vmatprep.subr.mxu0 0.0
        %1782 = vmatpush1.msra.mxu0 0.0
        %1783 = vmatprep.subr.mxu0 0.0
        %1784 = vmatpush1.msra.mxu0 0.0
        %1785 = vmatprep.subr.mxu0 0.0
        %1786 = vmatpush1.msra.mxu0 0.0
        %1787 = vmatprep.subr.mxu0 0.0
        %1788 = vmatpush1.msra.mxu0 0.0
        %1789 = vmatprep.subr.mxu0 0.0
        %1790 = vmatpush1.msra.mxu0 0.0
        %1791 = vmatprep.subr.mxu0 0.0
        %1792 = vmatpush1.msra.mxu0 0.0
        %1793 = vmatprep.subr.mxu0 0.0
        %1794 = vmatpush1.msra.mxu0 0.0
        %1795 = vmatprep.subr.mxu0 0.0
        %1796 = vmatpush1.msra.mxu0 0.0
        %1797 = vmatprep.subr.mxu0 0.0
        %1798 = vmatpush1.msra.mxu0 0.0
        %1799 = vmatprep.subr.mxu0 0.0
        %1800 = vmatpush1.msra.mxu0 0.0
        %1801 = vmatprep.subr.mxu0 0.0
        %1802 = vmatpush1.msra.mxu0 0.0
        %1803 = vmatprep.subr.mxu0 0.0
        %1804 = vmatpush1.msra.mxu0 0.0
        %1805 = vmatprep.subr.mxu0 0.0
        %1806 = vmatpush1.msra.mxu0 0.0
        %1807 = vmatprep.subr.mxu0 0.0
        %1808 = vmatpush1.msra.mxu0 0.0
        %1809 = vmatprep.subr.mxu0 0.0
        %1810 = vmatpush1.msra.mxu0 0.0
        %1811 = vmatprep.subr.mxu0 0.0
        %1812 = vmatpush1.msra.mxu0 0.0
        %1813 = vmatprep.subr.mxu0 0.0
        %1814 = vmatpush1.msra.mxu0 0.0
        %1815 = vmatprep.subr.mxu0 0.0
        %1816 = vmatpush1.msra.mxu0 0.0
        %1817 = vmatprep.subr.mxu0 0.0
        %1818 = vmatpush1.msra.mxu0 0.0
        %1819 = vmatprep.subr.mxu0 0.0
        %1820 = vmatpush1.msra.mxu0 0.0
        %1821 = vmatprep.subr.mxu0 0.0
        %1822 = vmatpush1.msra.mxu0 0.0
        %1823 = vmatprep.subr.mxu0 0.0
        %1824 = vmatpush1.msra.mxu0 0.0
        %1825 = vmatprep.subr.mxu0 0.0
        %1826 = vmatpush1.msra.mxu0 0.0
        %1827 = vmatprep.mubr.f32.mxu0 0.0
        %1828 = vmatmul.mubr.f32.gmra.mrb[0].mxu0 %v1665
        %v1829 = vpop.f32.mrb[0].mxu0
        %v1830 = vadd.f32 0.0, %v1829
        %v1831 = vpop.f32.mrb[0].mxu0
        %1832 = vmatprep.mubr.f32.mxu0 0.0
        %1833 = vmatmul.mubr.f32.gmra.mrb[0].mxu0 %v1668
        %v1834 = vpop.f32.mrb[0].mxu0
        %v1835 = vadd.f32 0.0, %v1834
        %v1836 = vpop.f32.mrb[0].mxu0
        %1837 = vmatprep.mubr.f32.mxu0 0.0
        %1838 = vmatmul.mubr.f32.gmra.mrb[0].mxu0 %v1671
        %v1839 = vpop.f32.mrb[0].mxu0
        %v1840 = vadd.f32 0.0, %v1839
        %v1841 = vpop.f32.mrb[0].mxu0
        %1842 = vmatprep.mubr.f32.mxu0 0.0
        %1843 = vmatmul.mubr.f32.gmra.mrb[0].mxu0 %v1674
        %v1844 = vpop.f32.mrb[0].mxu0
        %v1845 = vadd.f32 0.0, %v1844
        %v1846 = vpop.f32.mrb[0].mxu0
        %1847 = vmatprep.mubr.f32.mxu0 0.0
        %1848 = vmatmul.mubr.f32.gmra.mrb[0].mxu0 %v1677
        %v1849 = vpop.f32.mrb[0].mxu0
        %v1850 = vadd.f32 0.0, %v1849
        %v1851 = vpop.f32.mrb[0].mxu0
        %1852 = vmatprep.mubr.f32.mxu0 0.0
        %1853 = vmatmul.mubr.f32.gmra.mrb[0].mxu0 %v1680
        %v1854 = vpop.f32.mrb[0].mxu0
        %v1855 = vadd.f32 0.0, %v1854
        %v1856 = vpop.f32.mrb[0].mxu0
        %1857 = vmatprep.mubr.f32.mxu0 0.0
        %1858 = vmatmul.mubr.f32.gmra.mrb[0].mxu0 %v1683
        %v1859 = vpop.f32.mrb[0].mxu0
        %v1860 = vadd.f32 0.0, %v1859
        %v1861 = vpop.f32.mrb[0].mxu0
        %1862 = vmatprep.mubr.f32.mxu0 0.0
        %1863 = vmatmul.mubr.f32.gmra.mrb[0].mxu0 %v1686
        %v1864 = vpop.f32.mrb[0].mxu0
        %v1865 = vadd.f32 0.0, %v1864
        %v1866 = vpop.f32.mrb[0].mxu0
        %1867 = vmatprep.mubr.f32.mxu0 0.0
        %1868 = vmatmul.mubr.f32.gmra.mrb[0].mxu0 %v1689
        %v1869 = vpop.f32.mrb[0].mxu0
        %v1870 = vadd.f32 0.0, %v1869
        %v1871 = vpop.f32.mrb[0].mxu0
        %1872 = vmatprep.mubr.f32.mxu0 0.0
        %1873 = vmatmul.mubr.f32.gmra.mrb[0].mxu0 %v1692
        %v1874 = vpop.f32.mrb[0].mxu0
        %v1875 = vadd.f32 0.0, %v1874
        %v1876 = vpop.f32.mrb[0].mxu0
        %1877 = vmatprep.mubr.f32.mxu0 0.0
        %1878 = vmatmul.mubr.f32.gmra.mrb[0].mxu0 %v1695
        %v1879 = vpop.f32.mrb[0].mxu0
        %v1880 = vadd.f32 0.0, %v1879
        %v1881 = vpop.f32.mrb[0].mxu0
        %1882 = vmatprep.mubr.f32.mxu0 0.0
        %1883 = vmatmul.mubr.f32.gmra.mrb[0].mxu0 %v1698
        %v1884 = vpop.f32.mrb[0].mxu0
        %v1885 = vadd.f32 0.0, %v1884
        %v1886 = vpop.f32.mrb[0].mxu0
        %1887 = vmatprep.mubr.f32.mxu0 0.0
        %1888 = vmatmul.mubr.f32.gmra.mrb[0].mxu0 %v1701
        %v1889 = vpop.f32.mrb[0].mxu0
        %v1890 = vadd.f32 0.0, %v1889
        %v1891 = vpop.f32.mrb[0].mxu0
        %1892 = vmatprep.mubr.f32.mxu0 0.0
        %1893 = vmatmul.mubr.f32.gmra.mrb[0].mxu0 %v1704
        %v1894 = vpop.f32.mrb[0].mxu0
        %v1895 = vadd.f32 0.0, %v1894
        %v1896 = vpop.f32.mrb[0].mxu0
        %1897 = vmatprep.mubr.f32.mxu0 0.0
        %1898 = vmatmul.mubr.f32.gmra.mrb[0].mxu0 %v1707
        %v1899 = vpop.f32.mrb[0].mxu0
        %v1900 = vadd.f32 0.0, %v1899
        %v1901 = vpop.f32.mrb[0].mxu0
        %1902 = vmatprep.mubr.f32.mxu0 0.0
        %1903 = vmatmul.mubr.f32.gmra.mrb[0].mxu0 %v1710
        %v1904 = vpop.f32.mrb[0].mxu0
        %v1905 = vadd.f32 0.0, %v1904
        %v1906 = vpop.f32.mrb[0].mxu0
        %1907 = vmatprep.mubr.f32.mxu0 0.0
        %1908 = vmatmul.mubr.f32.gmra.mrb[0].mxu0 %v1713
        %v1909 = vpop.f32.mrb[0].mxu0
        %v1910 = vadd.f32 0.0, %v1909
        %v1911 = vpop.f32.mrb[0].mxu0
        %1912 = vmatprep.mubr.f32.mxu0 0.0
        %1913 = vmatmul.mubr.f32.gmra.mrb[0].mxu0 %v1716
        %v1914 = vpop.f32.mrb[0].mxu0
        %v1915 = vadd.f32 0.0, %v1914
        %v1916 = vpop.f32.mrb[0].mxu0
        %1917 = vmatprep.mubr.f32.mxu0 0.0
        %1918 = vmatmul.mubr.f32.gmra.mrb[0].mxu0 %v1719
        %v1919 = vpop.f32.mrb[0].mxu0
        %v1920 = vadd.f32 0.0, %v1919
        %v1921 = vpop.f32.mrb[0].mxu0
        %1922 = vmatprep.mubr.f32.mxu0 0.0
        %1923 = vmatmul.mubr.f32.gmra.mrb[0].mxu0 %v1722
        %v1924 = vpop.f32.mrb[0].mxu0
        %v1925 = vadd.f32 0.0, %v1924
        %v1926 = vpop.f32.mrb[0].mxu0
        %1927 = vmatprep.mubr.f32.mxu0 0.0
        %1928 = vmatmul.mubr.f32.gmra.mrb[0].mxu0 %v1725
        %v1929 = vpop.f32.mrb[0].mxu0
        %v1930 = vadd.f32 0.0, %v1929
        %v1931 = vpop.f32.mrb[0].mxu0
        %1932 = vmatprep.mubr.f32.mxu0 0.0
        %1933 = vmatmul.mubr.f32.gmra.mrb[0].mxu0 %v1728
        %v1934 = vpop.f32.mrb[0].mxu0
        %v1935 = vadd.f32 0.0, %v1934
        %v1936 = vpop.f32.mrb[0].mxu0
        %1937 = vmatprep.mubr.f32.mxu0 0.0
        %1938 = vmatmul.mubr.f32.gmra.mrb[0].mxu0 %v1731
        %v1939 = vpop.f32.mrb[0].mxu0
        %v1940 = vadd.f32 0.0, %v1939
        %v1941 = vpop.f32.mrb[0].mxu0
        %1942 = vmatprep.mubr.f32.mxu0 0.0
        %1943 = vmatmul.mubr.f32.gmra.mrb[0].mxu0 %v1734
        %v1944 = vpop.f32.mrb[0].mxu0
        %v1945 = vadd.f32 0.0, %v1944
        %v1946 = vpop.f32.mrb[0].mxu0
        %1947 = vmatprep.mubr.f32.mxu0 0.0
        %1948 = vmatmul.mubr.f32.gmra.mrb[0].mxu0 %v1737
        %v1949 = vpop.f32.mrb[0].mxu0
        %v1950 = vadd.f32 0.0, %v1949
        %v1951 = vpop.f32.mrb[0].mxu0
        %1952 = vmatprep.mubr.f32.mxu0 0.0
        %1953 = vmatmul.mubr.f32.gmra.mrb[0].mxu0 %v1740
        %v1954 = vpop.f32.mrb[0].mxu0
        %v1955 = vadd.f32 0.0, %v1954
        %v1956 = vpop.f32.mrb[0].mxu0
        %1957 = vmatprep.mubr.f32.mxu0 0.0
        %1958 = vmatmul.mubr.f32.gmra.mrb[0].mxu0 %v1743
        %v1959 = vpop.f32.mrb[0].mxu0
        %v1960 = vadd.f32 0.0, %v1959
        %v1961 = vpop.f32.mrb[0].mxu0
        %1962 = vmatprep.mubr.f32.mxu0 0.0
        %1963 = vmatmul.mubr.f32.gmra.mrb[0].mxu0 %v1746
        %v1964 = vpop.f32.mrb[0].mxu0
        %v1965 = vadd.f32 0.0, %v1964
        %v1966 = vpop.f32.mrb[0].mxu0
        %1967 = vmatprep.mubr.f32.mxu0 0.0
        %1968 = vmatmul.mubr.f32.gmra.mrb[0].mxu0 %v1749
        %v1969 = vpop.f32.mrb[0].mxu0
        %v1970 = vadd.f32 0.0, %v1969
        %v1971 = vpop.f32.mrb[0].mxu0
        %1972 = vmatprep.mubr.f32.mxu0 0.0
        %1973 = vmatmul.mubr.f32.gmra.mrb[0].mxu0 %v1752
        %v1974 = vpop.f32.mrb[0].mxu0
        %v1975 = vadd.f32 0.0, %v1974
        %v1976 = vpop.f32.mrb[0].mxu0
        %1977 = vmatprep.mubr.f32.mxu0 0.0
        %1978 = vmatmul.mubr.f32.gmra.mrb[0].mxu0 %v1755
        %v1979 = vpop.f32.mrb[0].mxu0
        %v1980 = vadd.f32 0.0, %v1979
        %v1981 = vpop.f32.mrb[0].mxu0
        %1982 = vmatprep.mubr.f32.mxu0 0.0
        %1983 = vmatmul.mubr.f32.gmra.mrb[0].mxu0 %v1758
        %v1984 = vpop.f32.mrb[0].mxu0
        %v1985 = vadd.f32 0.0, %v1984
        %v1986 = vpop.f32.mrb[0].mxu0
        %1987 = vdwg.mxu0
        %v1988 = vadd.f32 %v1630, %v1830
        %v1989 = vadd.f32 %v1631, %v1835
        %v1990 = vadd.f32 %v1632, %v1840
        %v1991 = vadd.f32 %v1633, %v1845
        %v1992 = vadd.f32 %v1634, %v1850
        %v1993 = vadd.f32 %v1635, %v1855
        %v1994 = vadd.f32 %v1636, %v1860
        %v1995 = vadd.f32 %v1637, %v1865
        %v1996 = vadd.f32 %v1638, %v1870
        %v1997 = vadd.f32 %v1639, %v1875
        %v1998 = vadd.f32 %v1640, %v1880
        %v1999 = vadd.f32 %v1641, %v1885
        %v2000 = vadd.f32 %v1642, %v1890
        %v2001 = vadd.f32 %v1643, %v1895
        %v2002 = vadd.f32 %v1644, %v1900
        %v2003 = vadd.f32 %v1645, %v1905
        %v2004 = vadd.f32 %v1646, %v1910
        %v2005 = vadd.f32 %v1647, %v1915
        %v2006 = vadd.f32 %v1648, %v1920
        %v2007 = vadd.f32 %v1649, %v1925
        %v2008 = vadd.f32 %v1650, %v1930
        %v2009 = vadd.f32 %v1651, %v1935
        %v2010 = vadd.f32 %v1652, %v1940
        %v2011 = vadd.f32 %v1653, %v1945
        %v2012 = vadd.f32 %v1654, %v1950
        %v2013 = vadd.f32 %v1655, %v1955
        %v2014 = vadd.f32 %v1656, %v1960
        %v2015 = vadd.f32 %v1657, %v1965
        %v2016 = vadd.f32 %v1658, %v1970
        %v2017 = vadd.f32 %v1659, %v1975
        %v2018 = vadd.f32 %v1660, %v1980
        %v2019 = vadd.f32 %v1661, %v1985
        %2020 = vst [vmem:[#allocation2] sm:$0xff] %v1988
        %2021 = vst [vmem:[#allocation2 + $0x8] sm:$0xff] %v1989
        %2022 = vst [vmem:[#allocation2 + $0x10] sm:$0xff] %v1990
        %2023 = vst [vmem:[#allocation2 + $0x18] sm:$0xff] %v1991
        %2024 = vst [vmem:[#allocation2 + $0x20] sm:$0xff] %v1992
        %2025 = vst [vmem:[#allocation2 + $0x28] sm:$0xff] %v1993
        %2026 = vst [vmem:[#allocation2 + $0x30] sm:$0xff] %v1994
        %2027 = vst [vmem:[#allocation2 + $0x38] sm:$0xff] %v1995
        %2028 = vst [vmem:[#allocation2 + $0x40] sm:$0xff] %v1996
        %2029 = vst [vmem:[#allocation2 + $0x48] sm:$0xff] %v1997
        %2030 = vst [vmem:[#allocation2 + $0x50] sm:$0xff] %v1998
        %2031 = vst [vmem:[#allocation2 + $0x58] sm:$0xff] %v1999
        %2032 = vst [vmem:[#allocation2 + $0x60] sm:$0xff] %v2000
        %2033 = vst [vmem:[#allocation2 + $0x68] sm:$0xff] %v2001
        %2034 = vst [vmem:[#allocation2 + $0x70] sm:$0xff] %v2002
        %2035 = vst [vmem:[#allocation2 + $0x78] sm:$0xff] %v2003
        %2036 = vst [vmem:[#allocation2 + $0x80] sm:$0xff] %v2004
        %2037 = vst [vmem:[#allocation2 + $0x88] sm:$0xff] %v2005
        %2038 = vst [vmem:[#allocation2 + $0x90] sm:$0xff] %v2006
        %2039 = vst [vmem:[#allocation2 + $0x98] sm:$0xff] %v2007
        %2040 = vst [vmem:[#allocation2 + $0xa0] sm:$0xff] %v2008
        %2041 = vst [vmem:[#allocation2 + $0xa8] sm:$0xff] %v2009
        %2042 = vst [vmem:[#allocation2 + $0xb0] sm:$0xff] %v2010
        %2043 = vst [vmem:[#allocation2 + $0xb8] sm:$0xff] %v2011
        %2044 = vst [vmem:[#allocation2 + $0xc0] sm:$0xff] %v2012
        %2045 = vst [vmem:[#allocation2 + $0xc8] sm:$0xff] %v2013
        %2046 = vst [vmem:[#allocation2 + $0xd0] sm:$0xff] %v2014
        %2047 = vst [vmem:[#allocation2 + $0xd8] sm:$0xff] %v2015
        %2048 = vst [vmem:[#allocation2 + $0xe0] sm:$0xff] %v2016
        %2049 = vst [vmem:[#allocation2 + $0xe8] sm:$0xff] %v2017
        %2050 = vst [vmem:[#allocation2 + $0xf0] sm:$0xff] %v2018
        %2051 = vst [vmem:[#allocation2 + $0xf8] sm:$0xff] %v2019
        %v2052 = vld [vmem:[%s1597 + $0x1] sm:$0xff]
        %v2053 = vld [vmem:[%s1597 + $0x9] sm:$0xff]
        %v2054 = vld [vmem:[%s1597 + $0x19] sm:$0xff]
        %v2055 = vld [vmem:[%s1597 + $0x21] sm:$0xff]
        %v2056 = vld [vmem:[%s1597 + $0x31] sm:$0xff]
        %v2057 = vld [vmem:[%s1597 + $0x39] sm:$0xff]
        %v2058 = vld [vmem:[%s1597 + $0x49] sm:$0xff]
        %v2059 = vld [vmem:[%s1597 + $0x51] sm:$0xff]
        %v2060 = vld [vmem:[%s1597 + $0x61] sm:$0xff]
        %v2061 = vld [vmem:[%s1597 + $0x69] sm:$0xff]
        %v2062 = vld [vmem:[%s1597 + $0x79] sm:$0xff]
        %v2063 = vld [vmem:[%s1597 + $0x81] sm:$0xff]
        %v2064 = vld [vmem:[%s1597 + $0x91] sm:$0xff]
        %v2065 = vld [vmem:[%s1597 + $0x99] sm:$0xff]
        %v2066 = vld [vmem:[%s1597 + $0xa9] sm:$0xff]
        %v2067 = vld [vmem:[%s1597 + $0xb1] sm:$0xff]
        %v2068 = vld [vmem:[%s1597 + $0xc1] sm:$0xff]
        %v2069 = vld [vmem:[%s1597 + $0xc9] sm:$0xff]
        %v2070 = vld [vmem:[%s1597 + $0xd9] sm:$0xff]
        %v2071 = vld [vmem:[%s1597 + $0xe1] sm:$0xff]
        %v2072 = vld [vmem:[%s1597 + $0xf1] sm:$0xff]
        %v2073 = vld [vmem:[%s1597 + $0xf9] sm:$0xff]
        %v2074 = vld [vmem:[%s1597 + $0x109] sm:$0xff]
        %v2075 = vld [vmem:[%s1597 + $0x111] sm:$0xff]
        %v2076 = vld [vmem:[%s1597 + $0x121] sm:$0xff]
        %v2077 = vld [vmem:[%s1597 + $0x129] sm:$0xff]
        %v2078 = vld [vmem:[%s1597 + $0x139] sm:$0xff]
        %v2079 = vld [vmem:[%s1597 + $0x141] sm:$0xff]
        %v2080 = vld [vmem:[%s1597 + $0x151] sm:$0xff]
        %v2081 = vld [vmem:[%s1597 + $0x159] sm:$0xff]
        %v2082 = vld [vmem:[%s1597 + $0x169] sm:$0xff]
        %v2083 = vld [vmem:[%s1597 + $0x171] sm:$0xff]
        %v2084 = vld [vmem:[#allocation2] sm:$0xff]
        %v2085 = vld [vmem:[#allocation2 + $0x8] sm:$0xff]
        %v2086 = vld [vmem:[#allocation2 + $0x10] sm:$0xff]
        %v2087 = vld [vmem:[#allocation2 + $0x18] sm:$0xff]
        %v2088 = vld [vmem:[#allocation2 + $0x20] sm:$0xff]
        %v2089 = vld [vmem:[#allocation2 + $0x28] sm:$0xff]
        %v2090 = vld [vmem:[#allocation2 + $0x30] sm:$0xff]
        %v2091 = vld [vmem:[#allocation2 + $0x38] sm:$0xff]
        %v2092 = vld [vmem:[#allocation2 + $0x40] sm:$0xff]
        %v2093 = vld [vmem:[#allocation2 + $0x48] sm:$0xff]
        %v2094 = vld [vmem:[#allocation2 + $0x50] sm:$0xff]
        %v2095 = vld [vmem:[#allocation2 + $0x58] sm:$0xff]
        %v2096 = vld [vmem:[#allocation2 + $0x60] sm:$0xff]
        %v2097 = vld [vmem:[#allocation2 + $0x68] sm:$0xff]
        %v2098 = vld [vmem:[#allocation2 + $0x70] sm:$0xff]
        %v2099 = vld [vmem:[#allocation2 + $0x78] sm:$0xff]
        %v2100 = vld [vmem:[#allocation2 + $0x80] sm:$0xff]
        %v2101 = vld [vmem:[#allocation2 + $0x88] sm:$0xff]
        %v2102 = vld [vmem:[#allocation2 + $0x90] sm:$0xff]
        %v2103 = vld [vmem:[#allocation2 + $0x98] sm:$0xff]
        %v2104 = vld [vmem:[#allocation2 + $0xa0] sm:$0xff]
        %v2105 = vld [vmem:[#allocation2 + $0xa8] sm:$0xff]
        %v2106 = vld [vmem:[#allocation2 + $0xb0] sm:$0xff]
        %v2107 = vld [vmem:[#allocation2 + $0xb8] sm:$0xff]
        %v2108 = vld [vmem:[#allocation2 + $0xc0] sm:$0xff]
        %v2109 = vld [vmem:[#allocation2 + $0xc8] sm:$0xff]
        %v2110 = vld [vmem:[#allocation2 + $0xd0] sm:$0xff]
        %v2111 = vld [vmem:[#allocation2 + $0xd8] sm:$0xff]
        %v2112 = vld [vmem:[#allocation2 + $0xe0] sm:$0xff]
        %v2113 = vld [vmem:[#allocation2 + $0xe8] sm:$0xff]
        %v2114 = vld [vmem:[#allocation2 + $0xf0] sm:$0xff]
        %v2115 = vld [vmem:[#allocation2 + $0xf8] sm:$0xff]
        %s2116 = scalar_lea.vmem %s1, 16
        %v2117 = vld [vmem:[%s2116] sm:$0xf]
        %v2119 = vsel %vm297, %v2052, 0
        %v2122 = vsel %vm297, %v2053, 0
        %v2125 = vsel %vm297, %v2054, 0
        %v2128 = vsel %vm297, %v2055, 0
        %v2131 = vsel %vm297, %v2056, 0
        %v2134 = vsel %vm297, %v2057, 0
        %v2137 = vsel %vm297, %v2058, 0
        %v2140 = vsel %vm297, %v2059, 0
        %v2143 = vsel %vm297, %v2060, 0
        %v2146 = vsel %vm297, %v2061, 0
        %v2149 = vsel %vm297, %v2062, 0
        %v2152 = vsel %vm297, %v2063, 0
        %v2155 = vsel %vm297, %v2064, 0
        %v2158 = vsel %vm297, %v2065, 0
        %v2161 = vsel %vm297, %v2066, 0
        %v2164 = vsel %vm297, %v2067, 0
        %v2167 = vsel %vm297, %v2068, 0
        %v2170 = vsel %vm297, %v2069, 0
        %v2173 = vsel %vm297, %v2070, 0
        %v2176 = vsel %vm297, %v2071, 0
        %v2179 = vsel %vm297, %v2072, 0
        %v2182 = vsel %vm297, %v2073, 0
        %v2185 = vsel %vm297, %v2074, 0
        %v2188 = vsel %vm297, %v2075, 0
        %v2191 = vsel %vm297, %v2076, 0
        %v2194 = vsel %vm297, %v2077, 0
        %v2197 = vsel %vm297, %v2078, 0
        %v2200 = vsel %vm297, %v2079, 0
        %v2203 = vsel %vm297, %v2080, 0
        %v2206 = vsel %vm297, %v2081, 0
        %v2209 = vsel %vm297, %v2082, 0
        %v2212 = vsel %vm297, %v2083, 0
        %v2215 = vsel %vm394, %v2117, 0
        %2217 = vmatprep.subr.mxu0 0.0
        %2218 = vmatpush1.msra.mxu0 %v2215
        %2219 = vmatprep.subr.mxu0 0.0
        %2220 = vmatpush1.msra.mxu0 0.0
        %2221 = vmatprep.subr.mxu0 0.0
        %2222 = vmatpush1.msra.mxu0 0.0
        %2223 = vmatprep.subr.mxu0 0.0
        %2224 = vmatpush1.msra.mxu0 0.0
        %2225 = vmatprep.subr.mxu0 0.0
        %2226 = vmatpush1.msra.mxu0 0.0
        %2227 = vmatprep.subr.mxu0 0.0
        %2228 = vmatpush1.msra.mxu0 0.0
        %2229 = vmatprep.subr.mxu0 0.0
        %2230 = vmatpush1.msra.mxu0 0.0
        %2231 = vmatprep.subr.mxu0 0.0
        %2232 = vmatpush1.msra.mxu0 0.0
        %2233 = vmatprep.subr.mxu0 0.0
        %2234 = vmatpush1.msra.mxu0 0.0
        %2235 = vmatprep.subr.mxu0 0.0
        %2236 = vmatpush1.msra.mxu0 0.0
        %2237 = vmatprep.subr.mxu0 0.0
        %2238 = vmatpush1.msra.mxu0 0.0
        %2239 = vmatprep.subr.mxu0 0.0
        %2240 = vmatpush1.msra.mxu0 0.0
        %2241 = vmatprep.subr.mxu0 0.0
        %2242 = vmatpush1.msra.mxu0 0.0
        %2243 = vmatprep.subr.mxu0 0.0
        %2244 = vmatpush1.msra.mxu0 0.0
        %2245 = vmatprep.subr.mxu0 0.0
        %2246 = vmatpush1.msra.mxu0 0.0
        %2247 = vmatprep.subr.mxu0 0.0
        %2248 = vmatpush1.msra.mxu0 0.0
        %2249 = vmatprep.subr.mxu0 0.0
        %2250 = vmatpush1.msra.mxu0 0.0
        %2251 = vmatprep.subr.mxu0 0.0
        %2252 = vmatpush1.msra.mxu0 0.0
        %2253 = vmatprep.subr.mxu0 0.0
        %2254 = vmatpush1.msra.mxu0 0.0
        %2255 = vmatprep.subr.mxu0 0.0
        %2256 = vmatpush1.msra.mxu0 0.0
        %2257 = vmatprep.subr.mxu0 0.0
        %2258 = vmatpush1.msra.mxu0 0.0
        %2259 = vmatprep.subr.mxu0 0.0
        %2260 = vmatpush1.msra.mxu0 0.0
        %2261 = vmatprep.subr.mxu0 0.0
        %2262 = vmatpush1.msra.mxu0 0.0
        %2263 = vmatprep.subr.mxu0 0.0
        %2264 = vmatpush1.msra.mxu0 0.0
        %2265 = vmatprep.subr.mxu0 0.0
        %2266 = vmatpush1.msra.mxu0 0.0
        %2267 = vmatprep.subr.mxu0 0.0
        %2268 = vmatpush1.msra.mxu0 0.0
        %2269 = vmatprep.subr.mxu0 0.0
        %2270 = vmatpush1.msra.mxu0 0.0
        %2271 = vmatprep.subr.mxu0 0.0
        %2272 = vmatpush1.msra.mxu0 0.0
        %2273 = vmatprep.subr.mxu0 0.0
        %2274 = vmatpush1.msra.mxu0 0.0
        %2275 = vmatprep.subr.mxu0 0.0
        %2276 = vmatpush1.msra.mxu0 0.0
        %2277 = vmatprep.subr.mxu0 0.0
        %2278 = vmatpush1.msra.mxu0 0.0
        %2279 = vmatprep.subr.mxu0 0.0
        %2280 = vmatpush1.msra.mxu0 0.0
        %2281 = vmatprep.mubr.f32.mxu0 0.0
        %2282 = vmatmul.mubr.f32.gmra.mrb[0].mxu0 %v2119
        %v2283 = vpop.f32.mrb[0].mxu0
        %v2284 = vadd.f32 0.0, %v2283
        %v2285 = vpop.f32.mrb[0].mxu0
        %2286 = vmatprep.mubr.f32.mxu0 0.0
        %2287 = vmatmul.mubr.f32.gmra.mrb[0].mxu0 %v2122
        %v2288 = vpop.f32.mrb[0].mxu0
        %v2289 = vadd.f32 0.0, %v2288
        %v2290 = vpop.f32.mrb[0].mxu0
        %2291 = vmatprep.mubr.f32.mxu0 0.0
        %2292 = vmatmul.mubr.f32.gmra.mrb[0].mxu0 %v2125
        %v2293 = vpop.f32.mrb[0].mxu0
        %v2294 = vadd.f32 0.0, %v2293
        %v2295 = vpop.f32.mrb[0].mxu0
        %2296 = vmatprep.mubr.f32.mxu0 0.0
        %2297 = vmatmul.mubr.f32.gmra.mrb[0].mxu0 %v2128
        %v2298 = vpop.f32.mrb[0].mxu0
        %v2299 = vadd.f32 0.0, %v2298
        %v2300 = vpop.f32.mrb[0].mxu0
        %2301 = vmatprep.mubr.f32.mxu0 0.0
        %2302 = vmatmul.mubr.f32.gmra.mrb[0].mxu0 %v2131
        %v2303 = vpop.f32.mrb[0].mxu0
        %v2304 = vadd.f32 0.0, %v2303
        %v2305 = vpop.f32.mrb[0].mxu0
        %2306 = vmatprep.mubr.f32.mxu0 0.0
        %2307 = vmatmul.mubr.f32.gmra.mrb[0].mxu0 %v2134
        %v2308 = vpop.f32.mrb[0].mxu0
        %v2309 = vadd.f32 0.0, %v2308
        %v2310 = vpop.f32.mrb[0].mxu0
        %2311 = vmatprep.mubr.f32.mxu0 0.0
        %2312 = vmatmul.mubr.f32.gmra.mrb[0].mxu0 %v2137
        %v2313 = vpop.f32.mrb[0].mxu0
        %v2314 = vadd.f32 0.0, %v2313
        %v2315 = vpop.f32.mrb[0].mxu0
        %2316 = vmatprep.mubr.f32.mxu0 0.0
        %2317 = vmatmul.mubr.f32.gmra.mrb[0].mxu0 %v2140
        %v2318 = vpop.f32.mrb[0].mxu0
        %v2319 = vadd.f32 0.0, %v2318
        %v2320 = vpop.f32.mrb[0].mxu0
        %2321 = vmatprep.mubr.f32.mxu0 0.0
        %2322 = vmatmul.mubr.f32.gmra.mrb[0].mxu0 %v2143
        %v2323 = vpop.f32.mrb[0].mxu0
        %v2324 = vadd.f32 0.0, %v2323
        %v2325 = vpop.f32.mrb[0].mxu0
        %2326 = vmatprep.mubr.f32.mxu0 0.0
        %2327 = vmatmul.mubr.f32.gmra.mrb[0].mxu0 %v2146
        %v2328 = vpop.f32.mrb[0].mxu0
        %v2329 = vadd.f32 0.0, %v2328
        %v2330 = vpop.f32.mrb[0].mxu0
        %2331 = vmatprep.mubr.f32.mxu0 0.0
        %2332 = vmatmul.mubr.f32.gmra.mrb[0].mxu0 %v2149
        %v2333 = vpop.f32.mrb[0].mxu0
        %v2334 = vadd.f32 0.0, %v2333
        %v2335 = vpop.f32.mrb[0].mxu0
        %2336 = vmatprep.mubr.f32.mxu0 0.0
        %2337 = vmatmul.mubr.f32.gmra.mrb[0].mxu0 %v2152
        %v2338 = vpop.f32.mrb[0].mxu0
        %v2339 = vadd.f32 0.0, %v2338
        %v2340 = vpop.f32.mrb[0].mxu0
        %2341 = vmatprep.mubr.f32.mxu0 0.0
        %2342 = vmatmul.mubr.f32.gmra.mrb[0].mxu0 %v2155
        %v2343 = vpop.f32.mrb[0].mxu0
        %v2344 = vadd.f32 0.0, %v2343
        %v2345 = vpop.f32.mrb[0].mxu0
        %2346 = vmatprep.mubr.f32.mxu0 0.0
        %2347 = vmatmul.mubr.f32.gmra.mrb[0].mxu0 %v2158
        %v2348 = vpop.f32.mrb[0].mxu0
        %v2349 = vadd.f32 0.0, %v2348
        %v2350 = vpop.f32.mrb[0].mxu0
        %2351 = vmatprep.mubr.f32.mxu0 0.0
        %2352 = vmatmul.mubr.f32.gmra.mrb[0].mxu0 %v2161
        %v2353 = vpop.f32.mrb[0].mxu0
        %v2354 = vadd.f32 0.0, %v2353
        %v2355 = vpop.f32.mrb[0].mxu0
        %2356 = vmatprep.mubr.f32.mxu0 0.0
        %2357 = vmatmul.mubr.f32.gmra.mrb[0].mxu0 %v2164
        %v2358 = vpop.f32.mrb[0].mxu0
        %v2359 = vadd.f32 0.0, %v2358
        %v2360 = vpop.f32.mrb[0].mxu0
        %2361 = vmatprep.mubr.f32.mxu0 0.0
        %2362 = vmatmul.mubr.f32.gmra.mrb[0].mxu0 %v2167
        %v2363 = vpop.f32.mrb[0].mxu0
        %v2364 = vadd.f32 0.0, %v2363
        %v2365 = vpop.f32.mrb[0].mxu0
        %2366 = vmatprep.mubr.f32.mxu0 0.0
        %2367 = vmatmul.mubr.f32.gmra.mrb[0].mxu0 %v2170
        %v2368 = vpop.f32.mrb[0].mxu0
        %v2369 = vadd.f32 0.0, %v2368
        %v2370 = vpop.f32.mrb[0].mxu0
        %2371 = vmatprep.mubr.f32.mxu0 0.0
        %2372 = vmatmul.mubr.f32.gmra.mrb[0].mxu0 %v2173
        %v2373 = vpop.f32.mrb[0].mxu0
        %v2374 = vadd.f32 0.0, %v2373
        %v2375 = vpop.f32.mrb[0].mxu0
        %2376 = vmatprep.mubr.f32.mxu0 0.0
        %2377 = vmatmul.mubr.f32.gmra.mrb[0].mxu0 %v2176
        %v2378 = vpop.f32.mrb[0].mxu0
        %v2379 = vadd.f32 0.0, %v2378
        %v2380 = vpop.f32.mrb[0].mxu0
        %2381 = vmatprep.mubr.f32.mxu0 0.0
        %2382 = vmatmul.mubr.f32.gmra.mrb[0].mxu0 %v2179
        %v2383 = vpop.f32.mrb[0].mxu0
        %v2384 = vadd.f32 0.0, %v2383
        %v2385 = vpop.f32.mrb[0].mxu0
        %2386 = vmatprep.mubr.f32.mxu0 0.0
        %2387 = vmatmul.mubr.f32.gmra.mrb[0].mxu0 %v2182
        %v2388 = vpop.f32.mrb[0].mxu0
        %v2389 = vadd.f32 0.0, %v2388
        %v2390 = vpop.f32.mrb[0].mxu0
        %2391 = vmatprep.mubr.f32.mxu0 0.0
        %2392 = vmatmul.mubr.f32.gmra.mrb[0].mxu0 %v2185
        %v2393 = vpop.f32.mrb[0].mxu0
        %v2394 = vadd.f32 0.0, %v2393
        %v2395 = vpop.f32.mrb[0].mxu0
        %2396 = vmatprep.mubr.f32.mxu0 0.0
        %2397 = vmatmul.mubr.f32.gmra.mrb[0].mxu0 %v2188
        %v2398 = vpop.f32.mrb[0].mxu0
        %v2399 = vadd.f32 0.0, %v2398
        %v2400 = vpop.f32.mrb[0].mxu0
        %2401 = vmatprep.mubr.f32.mxu0 0.0
        %2402 = vmatmul.mubr.f32.gmra.mrb[0].mxu0 %v2191
        %v2403 = vpop.f32.mrb[0].mxu0
        %v2404 = vadd.f32 0.0, %v2403
        %v2405 = vpop.f32.mrb[0].mxu0
        %2406 = vmatprep.mubr.f32.mxu0 0.0
        %2407 = vmatmul.mubr.f32.gmra.mrb[0].mxu0 %v2194
        %v2408 = vpop.f32.mrb[0].mxu0
        %v2409 = vadd.f32 0.0, %v2408
        %v2410 = vpop.f32.mrb[0].mxu0
        %2411 = vmatprep.mubr.f32.mxu0 0.0
        %2412 = vmatmul.mubr.f32.gmra.mrb[0].mxu0 %v2197
        %v2413 = vpop.f32.mrb[0].mxu0
        %v2414 = vadd.f32 0.0, %v2413
        %v2415 = vpop.f32.mrb[0].mxu0
        %2416 = vmatprep.mubr.f32.mxu0 0.0
        %2417 = vmatmul.mubr.f32.gmra.mrb[0].mxu0 %v2200
        %v2418 = vpop.f32.mrb[0].mxu0
        %v2419 = vadd.f32 0.0, %v2418
        %v2420 = vpop.f32.mrb[0].mxu0
        %2421 = vmatprep.mubr.f32.mxu0 0.0
        %2422 = vmatmul.mubr.f32.gmra.mrb[0].mxu0 %v2203
        %v2423 = vpop.f32.mrb[0].mxu0
        %v2424 = vadd.f32 0.0, %v2423
        %v2425 = vpop.f32.mrb[0].mxu0
        %2426 = vmatprep.mubr.f32.mxu0 0.0
        %2427 = vmatmul.mubr.f32.gmra.mrb[0].mxu0 %v2206
        %v2428 = vpop.f32.mrb[0].mxu0
        %v2429 = vadd.f32 0.0, %v2428
        %v2430 = vpop.f32.mrb[0].mxu0
        %2431 = vmatprep.mubr.f32.mxu0 0.0
        %2432 = vmatmul.mubr.f32.gmra.mrb[0].mxu0 %v2209
        %v2433 = vpop.f32.mrb[0].mxu0
        %v2434 = vadd.f32 0.0, %v2433
        %v2435 = vpop.f32.mrb[0].mxu0
        %2436 = vmatprep.mubr.f32.mxu0 0.0
        %2437 = vmatmul.mubr.f32.gmra.mrb[0].mxu0 %v2212
        %v2438 = vpop.f32.mrb[0].mxu0
        %v2439 = vadd.f32 0.0, %v2438
        %v2440 = vpop.f32.mrb[0].mxu0
        %2441 = vdwg.mxu0
        %v2442 = vadd.f32 %v2084, %v2284
        %v2443 = vadd.f32 %v2085, %v2289
        %v2444 = vadd.f32 %v2086, %v2294
        %v2445 = vadd.f32 %v2087, %v2299
        %v2446 = vadd.f32 %v2088, %v2304
        %v2447 = vadd.f32 %v2089, %v2309
        %v2448 = vadd.f32 %v2090, %v2314
        %v2449 = vadd.f32 %v2091, %v2319
        %v2450 = vadd.f32 %v2092, %v2324
        %v2451 = vadd.f32 %v2093, %v2329
        %v2452 = vadd.f32 %v2094, %v2334
        %v2453 = vadd.f32 %v2095, %v2339
        %v2454 = vadd.f32 %v2096, %v2344
        %v2455 = vadd.f32 %v2097, %v2349
        %v2456 = vadd.f32 %v2098, %v2354
        %v2457 = vadd.f32 %v2099, %v2359
        %v2458 = vadd.f32 %v2100, %v2364
        %v2459 = vadd.f32 %v2101, %v2369
        %v2460 = vadd.f32 %v2102, %v2374
        %v2461 = vadd.f32 %v2103, %v2379
        %v2462 = vadd.f32 %v2104, %v2384
        %v2463 = vadd.f32 %v2105, %v2389
        %v2464 = vadd.f32 %v2106, %v2394
        %v2465 = vadd.f32 %v2107, %v2399
        %v2466 = vadd.f32 %v2108, %v2404
        %v2467 = vadd.f32 %v2109, %v2409
        %v2468 = vadd.f32 %v2110, %v2414
        %v2469 = vadd.f32 %v2111, %v2419
        %v2470 = vadd.f32 %v2112, %v2424
        %v2471 = vadd.f32 %v2113, %v2429
        %v2472 = vadd.f32 %v2114, %v2434
        %v2473 = vadd.f32 %v2115, %v2439
        %2474 = vst [vmem:[#allocation2] sm:$0xff] %v2442
        %2475 = vst [vmem:[#allocation2 + $0x8] sm:$0xff] %v2443
        %2476 = vst [vmem:[#allocation2 + $0x10] sm:$0xff] %v2444
        %2477 = vst [vmem:[#allocation2 + $0x18] sm:$0xff] %v2445
        %2478 = vst [vmem:[#allocation2 + $0x20] sm:$0xff] %v2446
        %2479 = vst [vmem:[#allocation2 + $0x28] sm:$0xff] %v2447
        %2480 = vst [vmem:[#allocation2 + $0x30] sm:$0xff] %v2448
        %2481 = vst [vmem:[#allocation2 + $0x38] sm:$0xff] %v2449
        %2482 = vst [vmem:[#allocation2 + $0x40] sm:$0xff] %v2450
        %2483 = vst [vmem:[#allocation2 + $0x48] sm:$0xff] %v2451
        %2484 = vst [vmem:[#allocation2 + $0x50] sm:$0xff] %v2452
        %2485 = vst [vmem:[#allocation2 + $0x58] sm:$0xff] %v2453
        %2486 = vst [vmem:[#allocation2 + $0x60] sm:$0xff] %v2454
        %2487 = vst [vmem:[#allocation2 + $0x68] sm:$0xff] %v2455
        %2488 = vst [vmem:[#allocation2 + $0x70] sm:$0xff] %v2456
        %2489 = vst [vmem:[#allocation2 + $0x78] sm:$0xff] %v2457
        %2490 = vst [vmem:[#allocation2 + $0x80] sm:$0xff] %v2458
        %2491 = vst [vmem:[#allocation2 + $0x88] sm:$0xff] %v2459
        %2492 = vst [vmem:[#allocation2 + $0x90] sm:$0xff] %v2460
        %2493 = vst [vmem:[#allocation2 + $0x98] sm:$0xff] %v2461
        %2494 = vst [vmem:[#allocation2 + $0xa0] sm:$0xff] %v2462
        %2495 = vst [vmem:[#allocation2 + $0xa8] sm:$0xff] %v2463
        %2496 = vst [vmem:[#allocation2 + $0xb0] sm:$0xff] %v2464
        %2497 = vst [vmem:[#allocation2 + $0xb8] sm:$0xff] %v2465
        %2498 = vst [vmem:[#allocation2 + $0xc0] sm:$0xff] %v2466
        %2499 = vst [vmem:[#allocation2 + $0xc8] sm:$0xff] %v2467
        %2500 = vst [vmem:[#allocation2 + $0xd0] sm:$0xff] %v2468
        %2501 = vst [vmem:[#allocation2 + $0xd8] sm:$0xff] %v2469
        %2502 = vst [vmem:[#allocation2 + $0xe0] sm:$0xff] %v2470
        %2503 = vst [vmem:[#allocation2 + $0xe8] sm:$0xff] %v2471
        %2504 = vst [vmem:[#allocation2 + $0xf0] sm:$0xff] %v2472
        %2505 = vst [vmem:[#allocation2 + $0xf8] sm:$0xff] %v2473
        %v2506 = vld [vmem:[%s1597 + $0x2] sm:$0xff]
        %v2507 = vld [vmem:[%s1597 + $0xa] sm:$0xff]
        %v2508 = vld [vmem:[%s1597 + $0x1a] sm:$0xff]
        %v2509 = vld [vmem:[%s1597 + $0x22] sm:$0xff]
        %v2510 = vld [vmem:[%s1597 + $0x32] sm:$0xff]
        %v2511 = vld [vmem:[%s1597 + $0x3a] sm:$0xff]
        %v2512 = vld [vmem:[%s1597 + $0x4a] sm:$0xff]
        %v2513 = vld [vmem:[%s1597 + $0x52] sm:$0xff]
        %v2514 = vld [vmem:[%s1597 + $0x62] sm:$0xff]
        %v2515 = vld [vmem:[%s1597 + $0x6a] sm:$0xff]
        %v2516 = vld [vmem:[%s1597 + $0x7a] sm:$0xff]
        %v2517 = vld [vmem:[%s1597 + $0x82] sm:$0xff]
        %v2518 = vld [vmem:[%s1597 + $0x92] sm:$0xff]
        %v2519 = vld [vmem:[%s1597 + $0x9a] sm:$0xff]
        %v2520 = vld [vmem:[%s1597 + $0xaa] sm:$0xff]
        %v2521 = vld [vmem:[%s1597 + $0xb2] sm:$0xff]
        %v2522 = vld [vmem:[%s1597 + $0xc2] sm:$0xff]
        %v2523 = vld [vmem:[%s1597 + $0xca] sm:$0xff]
        %v2524 = vld [vmem:[%s1597 + $0xda] sm:$0xff]
        %v2525 = vld [vmem:[%s1597 + $0xe2] sm:$0xff]
        %v2526 = vld [vmem:[%s1597 + $0xf2] sm:$0xff]
        %v2527 = vld [vmem:[%s1597 + $0xfa] sm:$0xff]
        %v2528 = vld [vmem:[%s1597 + $0x10a] sm:$0xff]
        %v2529 = vld [vmem:[%s1597 + $0x112] sm:$0xff]
        %v2530 = vld [vmem:[%s1597 + $0x122] sm:$0xff]
        %v2531 = vld [vmem:[%s1597 + $0x12a] sm:$0xff]
        %v2532 = vld [vmem:[%s1597 + $0x13a] sm:$0xff]
        %v2533 = vld [vmem:[%s1597 + $0x142] sm:$0xff]
        %v2534 = vld [vmem:[%s1597 + $0x152] sm:$0xff]
        %v2535 = vld [vmem:[%s1597 + $0x15a] sm:$0xff]
        %v2536 = vld [vmem:[%s1597 + $0x16a] sm:$0xff]
        %v2537 = vld [vmem:[%s1597 + $0x172] sm:$0xff]
        %v2538 = vld [vmem:[#allocation2] sm:$0xff]
        %v2539 = vld [vmem:[#allocation2 + $0x8] sm:$0xff]
        %v2540 = vld [vmem:[#allocation2 + $0x10] sm:$0xff]
        %v2541 = vld [vmem:[#allocation2 + $0x18] sm:$0xff]
        %v2542 = vld [vmem:[#allocation2 + $0x20] sm:$0xff]
        %v2543 = vld [vmem:[#allocation2 + $0x28] sm:$0xff]
        %v2544 = vld [vmem:[#allocation2 + $0x30] sm:$0xff]
        %v2545 = vld [vmem:[#allocation2 + $0x38] sm:$0xff]
        %v2546 = vld [vmem:[#allocation2 + $0x40] sm:$0xff]
        %v2547 = vld [vmem:[#allocation2 + $0x48] sm:$0xff]
        %v2548 = vld [vmem:[#allocation2 + $0x50] sm:$0xff]
        %v2549 = vld [vmem:[#allocation2 + $0x58] sm:$0xff]
        %v2550 = vld [vmem:[#allocation2 + $0x60] sm:$0xff]
        %v2551 = vld [vmem:[#allocation2 + $0x68] sm:$0xff]
        %v2552 = vld [vmem:[#allocation2 + $0x70] sm:$0xff]
        %v2553 = vld [vmem:[#allocation2 + $0x78] sm:$0xff]
        %v2554 = vld [vmem:[#allocation2 + $0x80] sm:$0xff]
        %v2555 = vld [vmem:[#allocation2 + $0x88] sm:$0xff]
        %v2556 = vld [vmem:[#allocation2 + $0x90] sm:$0xff]
        %v2557 = vld [vmem:[#allocation2 + $0x98] sm:$0xff]
        %v2558 = vld [vmem:[#allocation2 + $0xa0] sm:$0xff]
        %v2559 = vld [vmem:[#allocation2 + $0xa8] sm:$0xff]
        %v2560 = vld [vmem:[#allocation2 + $0xb0] sm:$0xff]
        %v2561 = vld [vmem:[#allocation2 + $0xb8] sm:$0xff]
        %v2562 = vld [vmem:[#allocation2 + $0xc0] sm:$0xff]
        %v2563 = vld [vmem:[#allocation2 + $0xc8] sm:$0xff]
        %v2564 = vld [vmem:[#allocation2 + $0xd0] sm:$0xff]
        %v2565 = vld [vmem:[#allocation2 + $0xd8] sm:$0xff]
        %v2566 = vld [vmem:[#allocation2 + $0xe0] sm:$0xff]
        %v2567 = vld [vmem:[#allocation2 + $0xe8] sm:$0xff]
        %v2568 = vld [vmem:[#allocation2 + $0xf0] sm:$0xff]
        %v2569 = vld [vmem:[#allocation2 + $0xf8] sm:$0xff]
        %s2570 = scalar_lea.vmem %s1, 20
        %v2571 = vld [vmem:[%s2570] sm:$0xf]
        %v2573 = vsel %vm297, %v2506, 0
        %v2576 = vsel %vm297, %v2507, 0
        %v2579 = vsel %vm297, %v2508, 0
        %v2582 = vsel %vm297, %v2509, 0
        %v2585 = vsel %vm297, %v2510, 0
        %v2588 = vsel %vm297, %v2511, 0
        %v2591 = vsel %vm297, %v2512, 0
        %v2594 = vsel %vm297, %v2513, 0
        %v2597 = vsel %vm297, %v2514, 0
        %v2600 = vsel %vm297, %v2515, 0
        %v2603 = vsel %vm297, %v2516, 0
        %v2606 = vsel %vm297, %v2517, 0
        %v2609 = vsel %vm297, %v2518, 0
        %v2612 = vsel %vm297, %v2519, 0
        %v2615 = vsel %vm297, %v2520, 0
        %v2618 = vsel %vm297, %v2521, 0
        %v2621 = vsel %vm297, %v2522, 0
        %v2624 = vsel %vm297, %v2523, 0
        %v2627 = vsel %vm297, %v2524, 0
        %v2630 = vsel %vm297, %v2525, 0
        %v2633 = vsel %vm297, %v2526, 0
        %v2636 = vsel %vm297, %v2527, 0
        %v2639 = vsel %vm297, %v2528, 0
        %v2642 = vsel %vm297, %v2529, 0
        %v2645 = vsel %vm297, %v2530, 0
        %v2648 = vsel %vm297, %v2531, 0
        %v2651 = vsel %vm297, %v2532, 0
        %v2654 = vsel %vm297, %v2533, 0
        %v2657 = vsel %vm297, %v2534, 0
        %v2660 = vsel %vm297, %v2535, 0
        %v2663 = vsel %vm297, %v2536, 0
        %v2666 = vsel %vm297, %v2537, 0
        %v2669 = vsel %vm394, %v2571, 0
        %2671 = vmatprep.subr.mxu0 0.0
        %2672 = vmatpush1.msra.mxu0 %v2669
        %2673 = vmatprep.subr.mxu0 0.0
        %2674 = vmatpush1.msra.mxu0 0.0
        %2675 = vmatprep.subr.mxu0 0.0
        %2676 = vmatpush1.msra.mxu0 0.0
        %2677 = vmatprep.subr.mxu0 0.0
        %2678 = vmatpush1.msra.mxu0 0.0
        %2679 = vmatprep.subr.mxu0 0.0
        %2680 = vmatpush1.msra.mxu0 0.0
        %2681 = vmatprep.subr.mxu0 0.0
        %2682 = vmatpush1.msra.mxu0 0.0
        %2683 = vmatprep.subr.mxu0 0.0
        %2684 = vmatpush1.msra.mxu0 0.0
        %2685 = vmatprep.subr.mxu0 0.0
        %2686 = vmatpush1.msra.mxu0 0.0
        %2687 = vmatprep.subr.mxu0 0.0
        %2688 = vmatpush1.msra.mxu0 0.0
        %2689 = vmatprep.subr.mxu0 0.0
        %2690 = vmatpush1.msra.mxu0 0.0
        %2691 = vmatprep.subr.mxu0 0.0
        %2692 = vmatpush1.msra.mxu0 0.0
        %2693 = vmatprep.subr.mxu0 0.0
        %2694 = vmatpush1.msra.mxu0 0.0
        %2695 = vmatprep.subr.mxu0 0.0
        %2696 = vmatpush1.msra.mxu0 0.0
        %2697 = vmatprep.subr.mxu0 0.0
        %2698 = vmatpush1.msra.mxu0 0.0
        %2699 = vmatprep.subr.mxu0 0.0
        %2700 = vmatpush1.msra.mxu0 0.0
        %2701 = vmatprep.subr.mxu0 0.0
        %2702 = vmatpush1.msra.mxu0 0.0
        %2703 = vmatprep.subr.mxu0 0.0
        %2704 = vmatpush1.msra.mxu0 0.0
        %2705 = vmatprep.subr.mxu0 0.0
        %2706 = vmatpush1.msra.mxu0 0.0
        %2707 = vmatprep.subr.mxu0 0.0
        %2708 = vmatpush1.msra.mxu0 0.0
        %2709 = vmatprep.subr.mxu0 0.0
        %2710 = vmatpush1.msra.mxu0 0.0
        %2711 = vmatprep.subr.mxu0 0.0
        %2712 = vmatpush1.msra.mxu0 0.0
        %2713 = vmatprep.subr.mxu0 0.0
        %2714 = vmatpush1.msra.mxu0 0.0
        %2715 = vmatprep.subr.mxu0 0.0
        %2716 = vmatpush1.msra.mxu0 0.0
        %2717 = vmatprep.subr.mxu0 0.0
        %2718 = vmatpush1.msra.mxu0 0.0
        %2719 = vmatprep.subr.mxu0 0.0
        %2720 = vmatpush1.msra.mxu0 0.0
        %2721 = vmatprep.subr.mxu0 0.0
        %2722 = vmatpush1.msra.mxu0 0.0
        %2723 = vmatprep.subr.mxu0 0.0
        %2724 = vmatpush1.msra.mxu0 0.0
        %2725 = vmatprep.subr.mxu0 0.0
        %2726 = vmatpush1.msra.mxu0 0.0
        %2727 = vmatprep.subr.mxu0 0.0
        %2728 = vmatpush1.msra.mxu0 0.0
        %2729 = vmatprep.subr.mxu0 0.0
        %2730 = vmatpush1.msra.mxu0 0.0
        %2731 = vmatprep.subr.mxu0 0.0
        %2732 = vmatpush1.msra.mxu0 0.0
        %2733 = vmatprep.subr.mxu0 0.0
        %2734 = vmatpush1.msra.mxu0 0.0
        %2735 = vmatprep.mubr.f32.mxu0 0.0
        %2736 = vmatmul.mubr.f32.gmra.mrb[0].mxu0 %v2573
        %v2737 = vpop.f32.mrb[0].mxu0
        %v2738 = vadd.f32 0.0, %v2737
        %v2739 = vpop.f32.mrb[0].mxu0
        %2740 = vmatprep.mubr.f32.mxu0 0.0
        %2741 = vmatmul.mubr.f32.gmra.mrb[0].mxu0 %v2576
        %v2742 = vpop.f32.mrb[0].mxu0
        %v2743 = vadd.f32 0.0, %v2742
        %v2744 = vpop.f32.mrb[0].mxu0
        %2745 = vmatprep.mubr.f32.mxu0 0.0
        %2746 = vmatmul.mubr.f32.gmra.mrb[0].mxu0 %v2579
        %v2747 = vpop.f32.mrb[0].mxu0
        %v2748 = vadd.f32 0.0, %v2747
        %v2749 = vpop.f32.mrb[0].mxu0
        %2750 = vmatprep.mubr.f32.mxu0 0.0
        %2751 = vmatmul.mubr.f32.gmra.mrb[0].mxu0 %v2582
        %v2752 = vpop.f32.mrb[0].mxu0
        %v2753 = vadd.f32 0.0, %v2752
        %v2754 = vpop.f32.mrb[0].mxu0
        %2755 = vmatprep.mubr.f32.mxu0 0.0
        %2756 = vmatmul.mubr.f32.gmra.mrb[0].mxu0 %v2585
        %v2757 = vpop.f32.mrb[0].mxu0
        %v2758 = vadd.f32 0.0, %v2757
        %v2759 = vpop.f32.mrb[0].mxu0
        %2760 = vmatprep.mubr.f32.mxu0 0.0
        %2761 = vmatmul.mubr.f32.gmra.mrb[0].mxu0 %v2588
        %v2762 = vpop.f32.mrb[0].mxu0
        %v2763 = vadd.f32 0.0, %v2762
        %v2764 = vpop.f32.mrb[0].mxu0
        %2765 = vmatprep.mubr.f32.mxu0 0.0
        %2766 = vmatmul.mubr.f32.gmra.mrb[0].mxu0 %v2591
        %v2767 = vpop.f32.mrb[0].mxu0
        %v2768 = vadd.f32 0.0, %v2767
        %v2769 = vpop.f32.mrb[0].mxu0
        %2770 = vmatprep.mubr.f32.mxu0 0.0
        %2771 = vmatmul.mubr.f32.gmra.mrb[0].mxu0 %v2594
        %v2772 = vpop.f32.mrb[0].mxu0
        %v2773 = vadd.f32 0.0, %v2772
        %v2774 = vpop.f32.mrb[0].mxu0
        %2775 = vmatprep.mubr.f32.mxu0 0.0
        %2776 = vmatmul.mubr.f32.gmra.mrb[0].mxu0 %v2597
        %v2777 = vpop.f32.mrb[0].mxu0
        %v2778 = vadd.f32 0.0, %v2777
        %v2779 = vpop.f32.mrb[0].mxu0
        %2780 = vmatprep.mubr.f32.mxu0 0.0
        %2781 = vmatmul.mubr.f32.gmra.mrb[0].mxu0 %v2600
        %v2782 = vpop.f32.mrb[0].mxu0
        %v2783 = vadd.f32 0.0, %v2782
        %v2784 = vpop.f32.mrb[0].mxu0
        %2785 = vmatprep.mubr.f32.mxu0 0.0
        %2786 = vmatmul.mubr.f32.gmra.mrb[0].mxu0 %v2603
        %v2787 = vpop.f32.mrb[0].mxu0
        %v2788 = vadd.f32 0.0, %v2787
        %v2789 = vpop.f32.mrb[0].mxu0
        %2790 = vmatprep.mubr.f32.mxu0 0.0
        %2791 = vmatmul.mubr.f32.gmra.mrb[0].mxu0 %v2606
        %v2792 = vpop.f32.mrb[0].mxu0
        %v2793 = vadd.f32 0.0, %v2792
        %v2794 = vpop.f32.mrb[0].mxu0
        %2795 = vmatprep.mubr.f32.mxu0 0.0
        %2796 = vmatmul.mubr.f32.gmra.mrb[0].mxu0 %v2609
        %v2797 = vpop.f32.mrb[0].mxu0
        %v2798 = vadd.f32 0.0, %v2797
        %v2799 = vpop.f32.mrb[0].mxu0
        %2800 = vmatprep.mubr.f32.mxu0 0.0
        %2801 = vmatmul.mubr.f32.gmra.mrb[0].mxu0 %v2612
        %v2802 = vpop.f32.mrb[0].mxu0
        %v2803 = vadd.f32 0.0, %v2802
        %v2804 = vpop.f32.mrb[0].mxu0
        %2805 = vmatprep.mubr.f32.mxu0 0.0
        %2806 = vmatmul.mubr.f32.gmra.mrb[0].mxu0 %v2615
        %v2807 = vpop.f32.mrb[0].mxu0
        %v2808 = vadd.f32 0.0, %v2807
        %v2809 = vpop.f32.mrb[0].mxu0
        %2810 = vmatprep.mubr.f32.mxu0 0.0
        %2811 = vmatmul.mubr.f32.gmra.mrb[0].mxu0 %v2618
        %v2812 = vpop.f32.mrb[0].mxu0
        %v2813 = vadd.f32 0.0, %v2812
        %v2814 = vpop.f32.mrb[0].mxu0
        %2815 = vmatprep.mubr.f32.mxu0 0.0
        %2816 = vmatmul.mubr.f32.gmra.mrb[0].mxu0 %v2621
        %v2817 = vpop.f32.mrb[0].mxu0
        %v2818 = vadd.f32 0.0, %v2817
        %v2819 = vpop.f32.mrb[0].mxu0
        %2820 = vmatprep.mubr.f32.mxu0 0.0
        %2821 = vmatmul.mubr.f32.gmra.mrb[0].mxu0 %v2624
        %v2822 = vpop.f32.mrb[0].mxu0
        %v2823 = vadd.f32 0.0, %v2822
        %v2824 = vpop.f32.mrb[0].mxu0
        %2825 = vmatprep.mubr.f32.mxu0 0.0
        %2826 = vmatmul.mubr.f32.gmra.mrb[0].mxu0 %v2627
        %v2827 = vpop.f32.mrb[0].mxu0
        %v2828 = vadd.f32 0.0, %v2827
        %v2829 = vpop.f32.mrb[0].mxu0
        %2830 = vmatprep.mubr.f32.mxu0 0.0
        %2831 = vmatmul.mubr.f32.gmra.mrb[0].mxu0 %v2630
        %v2832 = vpop.f32.mrb[0].mxu0
        %v2833 = vadd.f32 0.0, %v2832
        %v2834 = vpop.f32.mrb[0].mxu0
        %2835 = vmatprep.mubr.f32.mxu0 0.0
        %2836 = vmatmul.mubr.f32.gmra.mrb[0].mxu0 %v2633
        %v2837 = vpop.f32.mrb[0].mxu0
        %v2838 = vadd.f32 0.0, %v2837
        %v2839 = vpop.f32.mrb[0].mxu0
        %2840 = vmatprep.mubr.f32.mxu0 0.0
        %2841 = vmatmul.mubr.f32.gmra.mrb[0].mxu0 %v2636
        %v2842 = vpop.f32.mrb[0].mxu0
        %v2843 = vadd.f32 0.0, %v2842
        %v2844 = vpop.f32.mrb[0].mxu0
        %2845 = vmatprep.mubr.f32.mxu0 0.0
        %2846 = vmatmul.mubr.f32.gmra.mrb[0].mxu0 %v2639
        %v2847 = vpop.f32.mrb[0].mxu0
        %v2848 = vadd.f32 0.0, %v2847
        %v2849 = vpop.f32.mrb[0].mxu0
        %2850 = vmatprep.mubr.f32.mxu0 0.0
        %2851 = vmatmul.mubr.f32.gmra.mrb[0].mxu0 %v2642
        %v2852 = vpop.f32.mrb[0].mxu0
        %v2853 = vadd.f32 0.0, %v2852
        %v2854 = vpop.f32.mrb[0].mxu0
        %2855 = vmatprep.mubr.f32.mxu0 0.0
        %2856 = vmatmul.mubr.f32.gmra.mrb[0].mxu0 %v2645
        %v2857 = vpop.f32.mrb[0].mxu0
        %v2858 = vadd.f32 0.0, %v2857
        %v2859 = vpop.f32.mrb[0].mxu0
        %2860 = vmatprep.mubr.f32.mxu0 0.0
        %2861 = vmatmul.mubr.f32.gmra.mrb[0].mxu0 %v2648
        %v2862 = vpop.f32.mrb[0].mxu0
        %v2863 = vadd.f32 0.0, %v2862
        %v2864 = vpop.f32.mrb[0].mxu0
        %2865 = vmatprep.mubr.f32.mxu0 0.0
        %2866 = vmatmul.mubr.f32.gmra.mrb[0].mxu0 %v2651
        %v2867 = vpop.f32.mrb[0].mxu0
        %v2868 = vadd.f32 0.0, %v2867
        %v2869 = vpop.f32.mrb[0].mxu0
        %2870 = vmatprep.mubr.f32.mxu0 0.0
        %2871 = vmatmul.mubr.f32.gmra.mrb[0].mxu0 %v2654
        %v2872 = vpop.f32.mrb[0].mxu0
        %v2873 = vadd.f32 0.0, %v2872
        %v2874 = vpop.f32.mrb[0].mxu0
        %2875 = vmatprep.mubr.f32.mxu0 0.0
        %2876 = vmatmul.mubr.f32.gmra.mrb[0].mxu0 %v2657
        %v2877 = vpop.f32.mrb[0].mxu0
        %v2878 = vadd.f32 0.0, %v2877
        %v2879 = vpop.f32.mrb[0].mxu0
        %2880 = vmatprep.mubr.f32.mxu0 0.0
        %2881 = vmatmul.mubr.f32.gmra.mrb[0].mxu0 %v2660
        %v2882 = vpop.f32.mrb[0].mxu0
        %v2883 = vadd.f32 0.0, %v2882
        %v2884 = vpop.f32.mrb[0].mxu0
        %2885 = vmatprep.mubr.f32.mxu0 0.0
        %2886 = vmatmul.mubr.f32.gmra.mrb[0].mxu0 %v2663
        %v2887 = vpop.f32.mrb[0].mxu0
        %v2888 = vadd.f32 0.0, %v2887
        %v2889 = vpop.f32.mrb[0].mxu0
        %2890 = vmatprep.mubr.f32.mxu0 0.0
        %2891 = vmatmul.mubr.f32.gmra.mrb[0].mxu0 %v2666
        %v2892 = vpop.f32.mrb[0].mxu0
        %v2893 = vadd.f32 0.0, %v2892
        %v2894 = vpop.f32.mrb[0].mxu0
        %2895 = vdwg.mxu0
        %v2896 = vadd.f32 %v2538, %v2738
        %v2897 = vadd.f32 %v2539, %v2743
        %v2898 = vadd.f32 %v2540, %v2748
        %v2899 = vadd.f32 %v2541, %v2753
        %v2900 = vadd.f32 %v2542, %v2758
        %v2901 = vadd.f32 %v2543, %v2763
        %v2902 = vadd.f32 %v2544, %v2768
        %v2903 = vadd.f32 %v2545, %v2773
        %v2904 = vadd.f32 %v2546, %v2778
        %v2905 = vadd.f32 %v2547, %v2783
        %v2906 = vadd.f32 %v2548, %v2788
        %v2907 = vadd.f32 %v2549, %v2793
        %v2908 = vadd.f32 %v2550, %v2798
        %v2909 = vadd.f32 %v2551, %v2803
        %v2910 = vadd.f32 %v2552, %v2808
        %v2911 = vadd.f32 %v2553, %v2813
        %v2912 = vadd.f32 %v2554, %v2818
        %v2913 = vadd.f32 %v2555, %v2823
        %v2914 = vadd.f32 %v2556, %v2828
        %v2915 = vadd.f32 %v2557, %v2833
        %v2916 = vadd.f32 %v2558, %v2838
        %v2917 = vadd.f32 %v2559, %v2843
        %v2918 = vadd.f32 %v2560, %v2848
        %v2919 = vadd.f32 %v2561, %v2853
        %v2920 = vadd.f32 %v2562, %v2858
        %v2921 = vadd.f32 %v2563, %v2863
        %v2922 = vadd.f32 %v2564, %v2868
        %v2923 = vadd.f32 %v2565, %v2873
        %v2924 = vadd.f32 %v2566, %v2878
        %v2925 = vadd.f32 %v2567, %v2883
        %v2926 = vadd.f32 %v2568, %v2888
        %v2927 = vadd.f32 %v2569, %v2893
        %2928 = vst [vmem:[#allocation2] sm:$0xff] %v2896
        %2929 = vst [vmem:[#allocation2 + $0x8] sm:$0xff] %v2897
        %2930 = vst [vmem:[#allocation2 + $0x10] sm:$0xff] %v2898
        %2931 = vst [vmem:[#allocation2 + $0x18] sm:$0xff] %v2899
        %2932 = vst [vmem:[#allocation2 + $0x20] sm:$0xff] %v2900
        %2933 = vst [vmem:[#allocation2 + $0x28] sm:$0xff] %v2901
        %2934 = vst [vmem:[#allocation2 + $0x30] sm:$0xff] %v2902
        %2935 = vst [vmem:[#allocation2 + $0x38] sm:$0xff] %v2903
        %2936 = vst [vmem:[#allocation2 + $0x40] sm:$0xff] %v2904
        %2937 = vst [vmem:[#allocation2 + $0x48] sm:$0xff] %v2905
        %2938 = vst [vmem:[#allocation2 + $0x50] sm:$0xff] %v2906
        %2939 = vst [vmem:[#allocation2 + $0x58] sm:$0xff] %v2907
        %2940 = vst [vmem:[#allocation2 + $0x60] sm:$0xff] %v2908
        %2941 = vst [vmem:[#allocation2 + $0x68] sm:$0xff] %v2909
        %2942 = vst [vmem:[#allocation2 + $0x70] sm:$0xff] %v2910
        %2943 = vst [vmem:[#allocation2 + $0x78] sm:$0xff] %v2911
        %2944 = vst [vmem:[#allocation2 + $0x80] sm:$0xff] %v2912
        %2945 = vst [vmem:[#allocation2 + $0x88] sm:$0xff] %v2913
        %2946 = vst [vmem:[#allocation2 + $0x90] sm:$0xff] %v2914
        %2947 = vst [vmem:[#allocation2 + $0x98] sm:$0xff] %v2915
        %2948 = vst [vmem:[#allocation2 + $0xa0] sm:$0xff] %v2916
        %2949 = vst [vmem:[#allocation2 + $0xa8] sm:$0xff] %v2917
        %2950 = vst [vmem:[#allocation2 + $0xb0] sm:$0xff] %v2918
        %2951 = vst [vmem:[#allocation2 + $0xb8] sm:$0xff] %v2919
        %2952 = vst [vmem:[#allocation2 + $0xc0] sm:$0xff] %v2920
        %2953 = vst [vmem:[#allocation2 + $0xc8] sm:$0xff] %v2921
        %2954 = vst [vmem:[#allocation2 + $0xd0] sm:$0xff] %v2922
        %2955 = vst [vmem:[#allocation2 + $0xd8] sm:$0xff] %v2923
        %2956 = vst [vmem:[#allocation2 + $0xe0] sm:$0xff] %v2924
        %2957 = vst [vmem:[#allocation2 + $0xe8] sm:$0xff] %v2925
        %2958 = vst [vmem:[#allocation2 + $0xf0] sm:$0xff] %v2926
        %2959 = vst [vmem:[#allocation2 + $0xf8] sm:$0xff] %v2927
        %s2960 = sadd.s32 %s197, 2
        %s2961 = smul.u32 %s2960, 24
        %s2962 = scalar_lea.vmem %s195, %s2961
        %v2963 = vld [vmem:[%s2962] sm:$0xff]
        %v2964 = vld [vmem:[%s2962 + $0x8] sm:$0xff]
        %v2965 = vld [vmem:[%s2962 + $0x18] sm:$0xff]
        %v2966 = vld [vmem:[%s2962 + $0x20] sm:$0xff]
        %v2967 = vld [vmem:[%s2962 + $0x30] sm:$0xff]
        %v2968 = vld [vmem:[%s2962 + $0x38] sm:$0xff]
        %v2969 = vld [vmem:[%s2962 + $0x48] sm:$0xff]
        %v2970 = vld [vmem:[%s2962 + $0x50] sm:$0xff]
        %v2971 = vld [vmem:[%s2962 + $0x60] sm:$0xff]
        %v2972 = vld [vmem:[%s2962 + $0x68] sm:$0xff]
        %v2973 = vld [vmem:[%s2962 + $0x78] sm:$0xff]
        %v2974 = vld [vmem:[%s2962 + $0x80] sm:$0xff]
        %v2975 = vld [vmem:[%s2962 + $0x90] sm:$0xff]
        %v2976 = vld [vmem:[%s2962 + $0x98] sm:$0xff]
        %v2977 = vld [vmem:[%s2962 + $0xa8] sm:$0xff]
        %v2978 = vld [vmem:[%s2962 + $0xb0] sm:$0xff]
        %v2979 = vld [vmem:[%s2962 + $0xc0] sm:$0xff]
        %v2980 = vld [vmem:[%s2962 + $0xc8] sm:$0xff]
        %v2981 = vld [vmem:[%s2962 + $0xd8] sm:$0xff]
        %v2982 = vld [vmem:[%s2962 + $0xe0] sm:$0xff]
        %v2983 = vld [vmem:[%s2962 + $0xf0] sm:$0xff]
        %v2984 = vld [vmem:[%s2962 + $0xf8] sm:$0xff]
        %v2985 = vld [vmem:[%s2962 + $0x108] sm:$0xff]
        %v2986 = vld [vmem:[%s2962 + $0x110] sm:$0xff]
        %v2987 = vld [vmem:[%s2962 + $0x120] sm:$0xff]
        %v2988 = vld [vmem:[%s2962 + $0x128] sm:$0xff]
        %v2989 = vld [vmem:[%s2962 + $0x138] sm:$0xff]
        %v2990 = vld [vmem:[%s2962 + $0x140] sm:$0xff]
        %v2991 = vld [vmem:[%s2962 + $0x150] sm:$0xff]
        %v2992 = vld [vmem:[%s2962 + $0x158] sm:$0xff]
        %v2993 = vld [vmem:[%s2962 + $0x168] sm:$0xff]
        %v2994 = vld [vmem:[%s2962 + $0x170] sm:$0xff]
        %v2995 = vld [vmem:[#allocation2] sm:$0xff]
        %v2996 = vld [vmem:[#allocation2 + $0x8] sm:$0xff]
        %v2997 = vld [vmem:[#allocation2 + $0x10] sm:$0xff]
        %v2998 = vld [vmem:[#allocation2 + $0x18] sm:$0xff]
        %v2999 = vld [vmem:[#allocation2 + $0x20] sm:$0xff]
        %v3000 = vld [vmem:[#allocation2 + $0x28] sm:$0xff]
        %v3001 = vld [vmem:[#allocation2 + $0x30] sm:$0xff]
        %v3002 = vld [vmem:[#allocation2 + $0x38] sm:$0xff]
        %v3003 = vld [vmem:[#allocation2 + $0x40] sm:$0xff]
        %v3004 = vld [vmem:[#allocation2 + $0x48] sm:$0xff]
        %v3005 = vld [vmem:[#allocation2 + $0x50] sm:$0xff]
        %v3006 = vld [vmem:[#allocation2 + $0x58] sm:$0xff]
        %v3007 = vld [vmem:[#allocation2 + $0x60] sm:$0xff]
        %v3008 = vld [vmem:[#allocation2 + $0x68] sm:$0xff]
        %v3009 = vld [vmem:[#allocation2 + $0x70] sm:$0xff]
        %v3010 = vld [vmem:[#allocation2 + $0x78] sm:$0xff]
        %v3011 = vld [vmem:[#allocation2 + $0x80] sm:$0xff]
        %v3012 = vld [vmem:[#allocation2 + $0x88] sm:$0xff]
        %v3013 = vld [vmem:[#allocation2 + $0x90] sm:$0xff]
        %v3014 = vld [vmem:[#allocation2 + $0x98] sm:$0xff]
        %v3015 = vld [vmem:[#allocation2 + $0xa0] sm:$0xff]
        %v3016 = vld [vmem:[#allocation2 + $0xa8] sm:$0xff]
        %v3017 = vld [vmem:[#allocation2 + $0xb0] sm:$0xff]
        %v3018 = vld [vmem:[#allocation2 + $0xb8] sm:$0xff]
        %v3019 = vld [vmem:[#allocation2 + $0xc0] sm:$0xff]
        %v3020 = vld [vmem:[#allocation2 + $0xc8] sm:$0xff]
        %v3021 = vld [vmem:[#allocation2 + $0xd0] sm:$0xff]
        %v3022 = vld [vmem:[#allocation2 + $0xd8] sm:$0xff]
        %v3023 = vld [vmem:[#allocation2 + $0xe0] sm:$0xff]
        %v3024 = vld [vmem:[#allocation2 + $0xe8] sm:$0xff]
        %v3025 = vld [vmem:[#allocation2 + $0xf0] sm:$0xff]
        %v3026 = vld [vmem:[#allocation2 + $0xf8] sm:$0xff]
        %s3027 = scalar_lea.vmem %s1, 24
        %v3028 = vld [vmem:[%s3027] sm:$0xf]
        %v3030 = vsel %vm297, %v2963, 0
        %v3033 = vsel %vm297, %v2964, 0
        %v3036 = vsel %vm297, %v2965, 0
        %v3039 = vsel %vm297, %v2966, 0
        %v3042 = vsel %vm297, %v2967, 0
        %v3045 = vsel %vm297, %v2968, 0
        %v3048 = vsel %vm297, %v2969, 0
        %v3051 = vsel %vm297, %v2970, 0
        %v3054 = vsel %vm297, %v2971, 0
        %v3057 = vsel %vm297, %v2972, 0
        %v3060 = vsel %vm297, %v2973, 0
        %v3063 = vsel %vm297, %v2974, 0
        %v3066 = vsel %vm297, %v2975, 0
        %v3069 = vsel %vm297, %v2976, 0
        %v3072 = vsel %vm297, %v2977, 0
        %v3075 = vsel %vm297, %v2978, 0
        %v3078 = vsel %vm297, %v2979, 0
        %v3081 = vsel %vm297, %v2980, 0
        %v3084 = vsel %vm297, %v2981, 0
        %v3087 = vsel %vm297, %v2982, 0
        %v3090 = vsel %vm297, %v2983, 0
        %v3093 = vsel %vm297, %v2984, 0
        %v3096 = vsel %vm297, %v2985, 0
        %v3099 = vsel %vm297, %v2986, 0
        %v3102 = vsel %vm297, %v2987, 0
        %v3105 = vsel %vm297, %v2988, 0
        %v3108 = vsel %vm297, %v2989, 0
        %v3111 = vsel %vm297, %v2990, 0
        %v3114 = vsel %vm297, %v2991, 0
        %v3117 = vsel %vm297, %v2992, 0
        %v3120 = vsel %vm297, %v2993, 0
        %v3123 = vsel %vm297, %v2994, 0
        %v3126 = vsel %vm394, %v3028, 0
        %3128 = vmatprep.subr.mxu0 0.0
        %3129 = vmatpush1.msra.mxu0 %v3126
        %3130 = vmatprep.subr.mxu0 0.0
        %3131 = vmatpush1.msra.mxu0 0.0
        %3132 = vmatprep.subr.mxu0 0.0
        %3133 = vmatpush1.msra.mxu0 0.0
        %3134 = vmatprep.subr.mxu0 0.0
        %3135 = vmatpush1.msra.mxu0 0.0
        %3136 = vmatprep.subr.mxu0 0.0
        %3137 = vmatpush1.msra.mxu0 0.0
        %3138 = vmatprep.subr.mxu0 0.0
        %3139 = vmatpush1.msra.mxu0 0.0
        %3140 = vmatprep.subr.mxu0 0.0
        %3141 = vmatpush1.msra.mxu0 0.0
        %3142 = vmatprep.subr.mxu0 0.0
        %3143 = vmatpush1.msra.mxu0 0.0
        %3144 = vmatprep.subr.mxu0 0.0
        %3145 = vmatpush1.msra.mxu0 0.0
        %3146 = vmatprep.subr.mxu0 0.0
        %3147 = vmatpush1.msra.mxu0 0.0
        %3148 = vmatprep.subr.mxu0 0.0
        %3149 = vmatpush1.msra.mxu0 0.0
        %3150 = vmatprep.subr.mxu0 0.0
        %3151 = vmatpush1.msra.mxu0 0.0
        %3152 = vmatprep.subr.mxu0 0.0
        %3153 = vmatpush1.msra.mxu0 0.0
        %3154 = vmatprep.subr.mxu0 0.0
        %3155 = vmatpush1.msra.mxu0 0.0
        %3156 = vmatprep.subr.mxu0 0.0
        %3157 = vmatpush1.msra.mxu0 0.0
        %3158 = vmatprep.subr.mxu0 0.0
        %3159 = vmatpush1.msra.mxu0 0.0
        %3160 = vmatprep.subr.mxu0 0.0
        %3161 = vmatpush1.msra.mxu0 0.0
        %3162 = vmatprep.subr.mxu0 0.0
        %3163 = vmatpush1.msra.mxu0 0.0
        %3164 = vmatprep.subr.mxu0 0.0
        %3165 = vmatpush1.msra.mxu0 0.0
        %3166 = vmatprep.subr.mxu0 0.0
        %3167 = vmatpush1.msra.mxu0 0.0
        %3168 = vmatprep.subr.mxu0 0.0
        %3169 = vmatpush1.msra.mxu0 0.0
        %3170 = vmatprep.subr.mxu0 0.0
        %3171 = vmatpush1.msra.mxu0 0.0
        %3172 = vmatprep.subr.mxu0 0.0
        %3173 = vmatpush1.msra.mxu0 0.0
        %3174 = vmatprep.subr.mxu0 0.0
        %3175 = vmatpush1.msra.mxu0 0.0
        %3176 = vmatprep.subr.mxu0 0.0
        %3177 = vmatpush1.msra.mxu0 0.0
        %3178 = vmatprep.subr.mxu0 0.0
        %3179 = vmatpush1.msra.mxu0 0.0
        %3180 = vmatprep.subr.mxu0 0.0
        %3181 = vmatpush1.msra.mxu0 0.0
        %3182 = vmatprep.subr.mxu0 0.0
        %3183 = vmatpush1.msra.mxu0 0.0
        %3184 = vmatprep.subr.mxu0 0.0
        %3185 = vmatpush1.msra.mxu0 0.0
        %3186 = vmatprep.subr.mxu0 0.0
        %3187 = vmatpush1.msra.mxu0 0.0
        %3188 = vmatprep.subr.mxu0 0.0
        %3189 = vmatpush1.msra.mxu0 0.0
        %3190 = vmatprep.subr.mxu0 0.0
        %3191 = vmatpush1.msra.mxu0 0.0
        %3192 = vmatprep.mubr.f32.mxu0 0.0
        %3193 = vmatmul.mubr.f32.gmra.mrb[0].mxu0 %v3030
        %v3194 = vpop.f32.mrb[0].mxu0
        %v3195 = vadd.f32 0.0, %v3194
        %v3196 = vpop.f32.mrb[0].mxu0
        %3197 = vmatprep.mubr.f32.mxu0 0.0
        %3198 = vmatmul.mubr.f32.gmra.mrb[0].mxu0 %v3033
        %v3199 = vpop.f32.mrb[0].mxu0
        %v3200 = vadd.f32 0.0, %v3199
        %v3201 = vpop.f32.mrb[0].mxu0
        %3202 = vmatprep.mubr.f32.mxu0 0.0
        %3203 = vmatmul.mubr.f32.gmra.mrb[0].mxu0 %v3036
        %v3204 = vpop.f32.mrb[0].mxu0
        %v3205 = vadd.f32 0.0, %v3204
        %v3206 = vpop.f32.mrb[0].mxu0
        %3207 = vmatprep.mubr.f32.mxu0 0.0
        %3208 = vmatmul.mubr.f32.gmra.mrb[0].mxu0 %v3039
        %v3209 = vpop.f32.mrb[0].mxu0
        %v3210 = vadd.f32 0.0, %v3209
        %v3211 = vpop.f32.mrb[0].mxu0
        %3212 = vmatprep.mubr.f32.mxu0 0.0
        %3213 = vmatmul.mubr.f32.gmra.mrb[0].mxu0 %v3042
        %v3214 = vpop.f32.mrb[0].mxu0
        %v3215 = vadd.f32 0.0, %v3214
        %v3216 = vpop.f32.mrb[0].mxu0
        %3217 = vmatprep.mubr.f32.mxu0 0.0
        %3218 = vmatmul.mubr.f32.gmra.mrb[0].mxu0 %v3045
        %v3219 = vpop.f32.mrb[0].mxu0
        %v3220 = vadd.f32 0.0, %v3219
        %v3221 = vpop.f32.mrb[0].mxu0
        %3222 = vmatprep.mubr.f32.mxu0 0.0
        %3223 = vmatmul.mubr.f32.gmra.mrb[0].mxu0 %v3048
        %v3224 = vpop.f32.mrb[0].mxu0
        %v3225 = vadd.f32 0.0, %v3224
        %v3226 = vpop.f32.mrb[0].mxu0
        %3227 = vmatprep.mubr.f32.mxu0 0.0
        %3228 = vmatmul.mubr.f32.gmra.mrb[0].mxu0 %v3051
        %v3229 = vpop.f32.mrb[0].mxu0
        %v3230 = vadd.f32 0.0, %v3229
        %v3231 = vpop.f32.mrb[0].mxu0
        %3232 = vmatprep.mubr.f32.mxu0 0.0
        %3233 = vmatmul.mubr.f32.gmra.mrb[0].mxu0 %v3054
        %v3234 = vpop.f32.mrb[0].mxu0
        %v3235 = vadd.f32 0.0, %v3234
        %v3236 = vpop.f32.mrb[0].mxu0
        %3237 = vmatprep.mubr.f32.mxu0 0.0
        %3238 = vmatmul.mubr.f32.gmra.mrb[0].mxu0 %v3057
        %v3239 = vpop.f32.mrb[0].mxu0
        %v3240 = vadd.f32 0.0, %v3239
        %v3241 = vpop.f32.mrb[0].mxu0
        %3242 = vmatprep.mubr.f32.mxu0 0.0
        %3243 = vmatmul.mubr.f32.gmra.mrb[0].mxu0 %v3060
        %v3244 = vpop.f32.mrb[0].mxu0
        %v3245 = vadd.f32 0.0, %v3244
        %v3246 = vpop.f32.mrb[0].mxu0
        %3247 = vmatprep.mubr.f32.mxu0 0.0
        %3248 = vmatmul.mubr.f32.gmra.mrb[0].mxu0 %v3063
        %v3249 = vpop.f32.mrb[0].mxu0
        %v3250 = vadd.f32 0.0, %v3249
        %v3251 = vpop.f32.mrb[0].mxu0
        %3252 = vmatprep.mubr.f32.mxu0 0.0
        %3253 = vmatmul.mubr.f32.gmra.mrb[0].mxu0 %v3066
        %v3254 = vpop.f32.mrb[0].mxu0
        %v3255 = vadd.f32 0.0, %v3254
        %v3256 = vpop.f32.mrb[0].mxu0
        %3257 = vmatprep.mubr.f32.mxu0 0.0
        %3258 = vmatmul.mubr.f32.gmra.mrb[0].mxu0 %v3069
        %v3259 = vpop.f32.mrb[0].mxu0
        %v3260 = vadd.f32 0.0, %v3259
        %v3261 = vpop.f32.mrb[0].mxu0
        %3262 = vmatprep.mubr.f32.mxu0 0.0
        %3263 = vmatmul.mubr.f32.gmra.mrb[0].mxu0 %v3072
        %v3264 = vpop.f32.mrb[0].mxu0
        %v3265 = vadd.f32 0.0, %v3264
        %v3266 = vpop.f32.mrb[0].mxu0
        %3267 = vmatprep.mubr.f32.mxu0 0.0
        %3268 = vmatmul.mubr.f32.gmra.mrb[0].mxu0 %v3075
        %v3269 = vpop.f32.mrb[0].mxu0
        %v3270 = vadd.f32 0.0, %v3269
        %v3271 = vpop.f32.mrb[0].mxu0
        %3272 = vmatprep.mubr.f32.mxu0 0.0
        %3273 = vmatmul.mubr.f32.gmra.mrb[0].mxu0 %v3078
        %v3274 = vpop.f32.mrb[0].mxu0
        %v3275 = vadd.f32 0.0, %v3274
        %v3276 = vpop.f32.mrb[0].mxu0
        %3277 = vmatprep.mubr.f32.mxu0 0.0
        %3278 = vmatmul.mubr.f32.gmra.mrb[0].mxu0 %v3081
        %v3279 = vpop.f32.mrb[0].mxu0
        %v3280 = vadd.f32 0.0, %v3279
        %v3281 = vpop.f32.mrb[0].mxu0
        %3282 = vmatprep.mubr.f32.mxu0 0.0
        %3283 = vmatmul.mubr.f32.gmra.mrb[0].mxu0 %v3084
        %v3284 = vpop.f32.mrb[0].mxu0
        %v3285 = vadd.f32 0.0, %v3284
        %v3286 = vpop.f32.mrb[0].mxu0
        %3287 = vmatprep.mubr.f32.mxu0 0.0
        %3288 = vmatmul.mubr.f32.gmra.mrb[0].mxu0 %v3087
        %v3289 = vpop.f32.mrb[0].mxu0
        %v3290 = vadd.f32 0.0, %v3289
        %v3291 = vpop.f32.mrb[0].mxu0
        %3292 = vmatprep.mubr.f32.mxu0 0.0
        %3293 = vmatmul.mubr.f32.gmra.mrb[0].mxu0 %v3090
        %v3294 = vpop.f32.mrb[0].mxu0
        %v3295 = vadd.f32 0.0, %v3294
        %v3296 = vpop.f32.mrb[0].mxu0
        %3297 = vmatprep.mubr.f32.mxu0 0.0
        %3298 = vmatmul.mubr.f32.gmra.mrb[0].mxu0 %v3093
        %v3299 = vpop.f32.mrb[0].mxu0
        %v3300 = vadd.f32 0.0, %v3299
        %v3301 = vpop.f32.mrb[0].mxu0
        %3302 = vmatprep.mubr.f32.mxu0 0.0
        %3303 = vmatmul.mubr.f32.gmra.mrb[0].mxu0 %v3096
        %v3304 = vpop.f32.mrb[0].mxu0
        %v3305 = vadd.f32 0.0, %v3304
        %v3306 = vpop.f32.mrb[0].mxu0
        %3307 = vmatprep.mubr.f32.mxu0 0.0
        %3308 = vmatmul.mubr.f32.gmra.mrb[0].mxu0 %v3099
        %v3309 = vpop.f32.mrb[0].mxu0
        %v3310 = vadd.f32 0.0, %v3309
        %v3311 = vpop.f32.mrb[0].mxu0
        %3312 = vmatprep.mubr.f32.mxu0 0.0
        %3313 = vmatmul.mubr.f32.gmra.mrb[0].mxu0 %v3102
        %v3314 = vpop.f32.mrb[0].mxu0
        %v3315 = vadd.f32 0.0, %v3314
        %v3316 = vpop.f32.mrb[0].mxu0
        %3317 = vmatprep.mubr.f32.mxu0 0.0
        %3318 = vmatmul.mubr.f32.gmra.mrb[0].mxu0 %v3105
        %v3319 = vpop.f32.mrb[0].mxu0
        %v3320 = vadd.f32 0.0, %v3319
        %v3321 = vpop.f32.mrb[0].mxu0
        %3322 = vmatprep.mubr.f32.mxu0 0.0
        %3323 = vmatmul.mubr.f32.gmra.mrb[0].mxu0 %v3108
        %v3324 = vpop.f32.mrb[0].mxu0
        %v3325 = vadd.f32 0.0, %v3324
        %v3326 = vpop.f32.mrb[0].mxu0
        %3327 = vmatprep.mubr.f32.mxu0 0.0
        %3328 = vmatmul.mubr.f32.gmra.mrb[0].mxu0 %v3111
        %v3329 = vpop.f32.mrb[0].mxu0
        %v3330 = vadd.f32 0.0, %v3329
        %v3331 = vpop.f32.mrb[0].mxu0
        %3332 = vmatprep.mubr.f32.mxu0 0.0
        %3333 = vmatmul.mubr.f32.gmra.mrb[0].mxu0 %v3114
        %v3334 = vpop.f32.mrb[0].mxu0
        %v3335 = vadd.f32 0.0, %v3334
        %v3336 = vpop.f32.mrb[0].mxu0
        %3337 = vmatprep.mubr.f32.mxu0 0.0
        %3338 = vmatmul.mubr.f32.gmra.mrb[0].mxu0 %v3117
        %v3339 = vpop.f32.mrb[0].mxu0
        %v3340 = vadd.f32 0.0, %v3339
        %v3341 = vpop.f32.mrb[0].mxu0
        %3342 = vmatprep.mubr.f32.mxu0 0.0
        %3343 = vmatmul.mubr.f32.gmra.mrb[0].mxu0 %v3120
        %v3344 = vpop.f32.mrb[0].mxu0
        %v3345 = vadd.f32 0.0, %v3344
        %v3346 = vpop.f32.mrb[0].mxu0
        %3347 = vmatprep.mubr.f32.mxu0 0.0
        %3348 = vmatmul.mubr.f32.gmra.mrb[0].mxu0 %v3123
        %v3349 = vpop.f32.mrb[0].mxu0
        %v3350 = vadd.f32 0.0, %v3349
        %v3351 = vpop.f32.mrb[0].mxu0
        %3352 = vdwg.mxu0
        %v3353 = vadd.f32 %v2995, %v3195
        %v3354 = vadd.f32 %v2996, %v3200
        %v3355 = vadd.f32 %v2997, %v3205
        %v3356 = vadd.f32 %v2998, %v3210
        %v3357 = vadd.f32 %v2999, %v3215
        %v3358 = vadd.f32 %v3000, %v3220
        %v3359 = vadd.f32 %v3001, %v3225
        %v3360 = vadd.f32 %v3002, %v3230
        %v3361 = vadd.f32 %v3003, %v3235
        %v3362 = vadd.f32 %v3004, %v3240
        %v3363 = vadd.f32 %v3005, %v3245
        %v3364 = vadd.f32 %v3006, %v3250
        %v3365 = vadd.f32 %v3007, %v3255
        %v3366 = vadd.f32 %v3008, %v3260
        %v3367 = vadd.f32 %v3009, %v3265
        %v3368 = vadd.f32 %v3010, %v3270
        %v3369 = vadd.f32 %v3011, %v3275
        %v3370 = vadd.f32 %v3012, %v3280
        %v3371 = vadd.f32 %v3013, %v3285
        %v3372 = vadd.f32 %v3014, %v3290
        %v3373 = vadd.f32 %v3015, %v3295
        %v3374 = vadd.f32 %v3016, %v3300
        %v3375 = vadd.f32 %v3017, %v3305
        %v3376 = vadd.f32 %v3018, %v3310
        %v3377 = vadd.f32 %v3019, %v3315
        %v3378 = vadd.f32 %v3020, %v3320
        %v3379 = vadd.f32 %v3021, %v3325
        %v3380 = vadd.f32 %v3022, %v3330
        %v3381 = vadd.f32 %v3023, %v3335
        %v3382 = vadd.f32 %v3024, %v3340
        %v3383 = vadd.f32 %v3025, %v3345
        %v3384 = vadd.f32 %v3026, %v3350
        %3385 = vst [vmem:[#allocation2] sm:$0xff] %v3353
        %3386 = vst [vmem:[#allocation2 + $0x8] sm:$0xff] %v3354
        %3387 = vst [vmem:[#allocation2 + $0x10] sm:$0xff] %v3355
        %3388 = vst [vmem:[#allocation2 + $0x18] sm:$0xff] %v3356
        %3389 = vst [vmem:[#allocation2 + $0x20] sm:$0xff] %v3357
        %3390 = vst [vmem:[#allocation2 + $0x28] sm:$0xff] %v3358
        %3391 = vst [vmem:[#allocation2 + $0x30] sm:$0xff] %v3359
        %3392 = vst [vmem:[#allocation2 + $0x38] sm:$0xff] %v3360
        %3393 = vst [vmem:[#allocation2 + $0x40] sm:$0xff] %v3361
        %3394 = vst [vmem:[#allocation2 + $0x48] sm:$0xff] %v3362
        %3395 = vst [vmem:[#allocation2 + $0x50] sm:$0xff] %v3363
        %3396 = vst [vmem:[#allocation2 + $0x58] sm:$0xff] %v3364
        %3397 = vst [vmem:[#allocation2 + $0x60] sm:$0xff] %v3365
        %3398 = vst [vmem:[#allocation2 + $0x68] sm:$0xff] %v3366
        %3399 = vst [vmem:[#allocation2 + $0x70] sm:$0xff] %v3367
        %3400 = vst [vmem:[#allocation2 + $0x78] sm:$0xff] %v3368
        %3401 = vst [vmem:[#allocation2 + $0x80] sm:$0xff] %v3369
        %3402 = vst [vmem:[#allocation2 + $0x88] sm:$0xff] %v3370
        %3403 = vst [vmem:[#allocation2 + $0x90] sm:$0xff] %v3371
        %3404 = vst [vmem:[#allocation2 + $0x98] sm:$0xff] %v3372
        %3405 = vst [vmem:[#allocation2 + $0xa0] sm:$0xff] %v3373
        %3406 = vst [vmem:[#allocation2 + $0xa8] sm:$0xff] %v3374
        %3407 = vst [vmem:[#allocation2 + $0xb0] sm:$0xff] %v3375
        %3408 = vst [vmem:[#allocation2 + $0xb8] sm:$0xff] %v3376
        %3409 = vst [vmem:[#allocation2 + $0xc0] sm:$0xff] %v3377
        %3410 = vst [vmem:[#allocation2 + $0xc8] sm:$0xff] %v3378
        %3411 = vst [vmem:[#allocation2 + $0xd0] sm:$0xff] %v3379
        %3412 = vst [vmem:[#allocation2 + $0xd8] sm:$0xff] %v3380
        %3413 = vst [vmem:[#allocation2 + $0xe0] sm:$0xff] %v3381
        %3414 = vst [vmem:[#allocation2 + $0xe8] sm:$0xff] %v3382
        %3415 = vst [vmem:[#allocation2 + $0xf0] sm:$0xff] %v3383
        %3416 = vst [vmem:[#allocation2 + $0xf8] sm:$0xff] %v3384
        %v3417 = vld [vmem:[%s2962 + $0x1] sm:$0xff]
        %v3418 = vld [vmem:[%s2962 + $0x9] sm:$0xff]
        %v3419 = vld [vmem:[%s2962 + $0x19] sm:$0xff]
        %v3420 = vld [vmem:[%s2962 + $0x21] sm:$0xff]
        %v3421 = vld [vmem:[%s2962 + $0x31] sm:$0xff]
        %v3422 = vld [vmem:[%s2962 + $0x39] sm:$0xff]
        %v3423 = vld [vmem:[%s2962 + $0x49] sm:$0xff]
        %v3424 = vld [vmem:[%s2962 + $0x51] sm:$0xff]
        %v3425 = vld [vmem:[%s2962 + $0x61] sm:$0xff]
        %v3426 = vld [vmem:[%s2962 + $0x69] sm:$0xff]
        %v3427 = vld [vmem:[%s2962 + $0x79] sm:$0xff]
        %v3428 = vld [vmem:[%s2962 + $0x81] sm:$0xff]
        %v3429 = vld [vmem:[%s2962 + $0x91] sm:$0xff]
        %v3430 = vld [vmem:[%s2962 + $0x99] sm:$0xff]
        %v3431 = vld [vmem:[%s2962 + $0xa9] sm:$0xff]
        %v3432 = vld [vmem:[%s2962 + $0xb1] sm:$0xff]
        %v3433 = vld [vmem:[%s2962 + $0xc1] sm:$0xff]
        %v3434 = vld [vmem:[%s2962 + $0xc9] sm:$0xff]
        %v3435 = vld [vmem:[%s2962 + $0xd9] sm:$0xff]
        %v3436 = vld [vmem:[%s2962 + $0xe1] sm:$0xff]
        %v3437 = vld [vmem:[%s2962 + $0xf1] sm:$0xff]
        %v3438 = vld [vmem:[%s2962 + $0xf9] sm:$0xff]
        %v3439 = vld [vmem:[%s2962 + $0x109] sm:$0xff]
        %v3440 = vld [vmem:[%s2962 + $0x111] sm:$0xff]
        %v3441 = vld [vmem:[%s2962 + $0x121] sm:$0xff]
        %v3442 = vld [vmem:[%s2962 + $0x129] sm:$0xff]
        %v3443 = vld [vmem:[%s2962 + $0x139] sm:$0xff]
        %v3444 = vld [vmem:[%s2962 + $0x141] sm:$0xff]
        %v3445 = vld [vmem:[%s2962 + $0x151] sm:$0xff]
        %v3446 = vld [vmem:[%s2962 + $0x159] sm:$0xff]
        %v3447 = vld [vmem:[%s2962 + $0x169] sm:$0xff]
        %v3448 = vld [vmem:[%s2962 + $0x171] sm:$0xff]
        %v3449 = vld [vmem:[#allocation2] sm:$0xff]
        %v3450 = vld [vmem:[#allocation2 + $0x8] sm:$0xff]
        %v3451 = vld [vmem:[#allocation2 + $0x10] sm:$0xff]
        %v3452 = vld [vmem:[#allocation2 + $0x18] sm:$0xff]
        %v3453 = vld [vmem:[#allocation2 + $0x20] sm:$0xff]
        %v3454 = vld [vmem:[#allocation2 + $0x28] sm:$0xff]
        %v3455 = vld [vmem:[#allocation2 + $0x30] sm:$0xff]
        %v3456 = vld [vmem:[#allocation2 + $0x38] sm:$0xff]
        %v3457 = vld [vmem:[#allocation2 + $0x40] sm:$0xff]
        %v3458 = vld [vmem:[#allocation2 + $0x48] sm:$0xff]
        %v3459 = vld [vmem:[#allocation2 + $0x50] sm:$0xff]
        %v3460 = vld [vmem:[#allocation2 + $0x58] sm:$0xff]
        %v3461 = vld [vmem:[#allocation2 + $0x60] sm:$0xff]
        %v3462 = vld [vmem:[#allocation2 + $0x68] sm:$0xff]
        %v3463 = vld [vmem:[#allocation2 + $0x70] sm:$0xff]
        %v3464 = vld [vmem:[#allocation2 + $0x78] sm:$0xff]
        %v3465 = vld [vmem:[#allocation2 + $0x80] sm:$0xff]
        %v3466 = vld [vmem:[#allocation2 + $0x88] sm:$0xff]
        %v3467 = vld [vmem:[#allocation2 + $0x90] sm:$0xff]
        %v3468 = vld [vmem:[#allocation2 + $0x98] sm:$0xff]
        %v3469 = vld [vmem:[#allocation2 + $0xa0] sm:$0xff]
        %v3470 = vld [vmem:[#allocation2 + $0xa8] sm:$0xff]
        %v3471 = vld [vmem:[#allocation2 + $0xb0] sm:$0xff]
        %v3472 = vld [vmem:[#allocation2 + $0xb8] sm:$0xff]
        %v3473 = vld [vmem:[#allocation2 + $0xc0] sm:$0xff]
        %v3474 = vld [vmem:[#allocation2 + $0xc8] sm:$0xff]
        %v3475 = vld [vmem:[#allocation2 + $0xd0] sm:$0xff]
        %v3476 = vld [vmem:[#allocation2 + $0xd8] sm:$0xff]
        %v3477 = vld [vmem:[#allocation2 + $0xe0] sm:$0xff]
        %v3478 = vld [vmem:[#allocation2 + $0xe8] sm:$0xff]
        %v3479 = vld [vmem:[#allocation2 + $0xf0] sm:$0xff]
        %v3480 = vld [vmem:[#allocation2 + $0xf8] sm:$0xff]
        %s3481 = scalar_lea.vmem %s1, 28
        %v3482 = vld [vmem:[%s3481] sm:$0xf]
        %v3484 = vsel %vm297, %v3417, 0
        %v3487 = vsel %vm297, %v3418, 0
        %v3490 = vsel %vm297, %v3419, 0
        %v3493 = vsel %vm297, %v3420, 0
        %v3496 = vsel %vm297, %v3421, 0
        %v3499 = vsel %vm297, %v3422, 0
        %v3502 = vsel %vm297, %v3423, 0
        %v3505 = vsel %vm297, %v3424, 0
        %v3508 = vsel %vm297, %v3425, 0
        %v3511 = vsel %vm297, %v3426, 0
        %v3514 = vsel %vm297, %v3427, 0
        %v3517 = vsel %vm297, %v3428, 0
        %v3520 = vsel %vm297, %v3429, 0
        %v3523 = vsel %vm297, %v3430, 0
        %v3526 = vsel %vm297, %v3431, 0
        %v3529 = vsel %vm297, %v3432, 0
        %v3532 = vsel %vm297, %v3433, 0
        %v3535 = vsel %vm297, %v3434, 0
        %v3538 = vsel %vm297, %v3435, 0
        %v3541 = vsel %vm297, %v3436, 0
        %v3544 = vsel %vm297, %v3437, 0
        %v3547 = vsel %vm297, %v3438, 0
        %v3550 = vsel %vm297, %v3439, 0
        %v3553 = vsel %vm297, %v3440, 0
        %v3556 = vsel %vm297, %v3441, 0
        %v3559 = vsel %vm297, %v3442, 0
        %v3562 = vsel %vm297, %v3443, 0
        %v3565 = vsel %vm297, %v3444, 0
        %v3568 = vsel %vm297, %v3445, 0
        %v3571 = vsel %vm297, %v3446, 0
        %v3574 = vsel %vm297, %v3447, 0
        %v3577 = vsel %vm297, %v3448, 0
        %v3580 = vsel %vm394, %v3482, 0
        %3582 = vmatprep.subr.mxu0 0.0
        %3583 = vmatpush1.msra.mxu0 %v3580
        %3584 = vmatprep.subr.mxu0 0.0
        %3585 = vmatpush1.msra.mxu0 0.0
        %3586 = vmatprep.subr.mxu0 0.0
        %3587 = vmatpush1.msra.mxu0 0.0
        %3588 = vmatprep.subr.mxu0 0.0
        %3589 = vmatpush1.msra.mxu0 0.0
        %3590 = vmatprep.subr.mxu0 0.0
        %3591 = vmatpush1.msra.mxu0 0.0
        %3592 = vmatprep.subr.mxu0 0.0
        %3593 = vmatpush1.msra.mxu0 0.0
        %3594 = vmatprep.subr.mxu0 0.0
        %3595 = vmatpush1.msra.mxu0 0.0
        %3596 = vmatprep.subr.mxu0 0.0
        %3597 = vmatpush1.msra.mxu0 0.0
        %3598 = vmatprep.subr.mxu0 0.0
        %3599 = vmatpush1.msra.mxu0 0.0
        %3600 = vmatprep.subr.mxu0 0.0
        %3601 = vmatpush1.msra.mxu0 0.0
        %3602 = vmatprep.subr.mxu0 0.0
        %3603 = vmatpush1.msra.mxu0 0.0
        %3604 = vmatprep.subr.mxu0 0.0
        %3605 = vmatpush1.msra.mxu0 0.0
        %3606 = vmatprep.subr.mxu0 0.0
        %3607 = vmatpush1.msra.mxu0 0.0
        %3608 = vmatprep.subr.mxu0 0.0
        %3609 = vmatpush1.msra.mxu0 0.0
        %3610 = vmatprep.subr.mxu0 0.0
        %3611 = vmatpush1.msra.mxu0 0.0
        %3612 = vmatprep.subr.mxu0 0.0
        %3613 = vmatpush1.msra.mxu0 0.0
        %3614 = vmatprep.subr.mxu0 0.0
        %3615 = vmatpush1.msra.mxu0 0.0
        %3616 = vmatprep.subr.mxu0 0.0
        %3617 = vmatpush1.msra.mxu0 0.0
        %3618 = vmatprep.subr.mxu0 0.0
        %3619 = vmatpush1.msra.mxu0 0.0
        %3620 = vmatprep.subr.mxu0 0.0
        %3621 = vmatpush1.msra.mxu0 0.0
        %3622 = vmatprep.subr.mxu0 0.0
        %3623 = vmatpush1.msra.mxu0 0.0
        %3624 = vmatprep.subr.mxu0 0.0
        %3625 = vmatpush1.msra.mxu0 0.0
        %3626 = vmatprep.subr.mxu0 0.0
        %3627 = vmatpush1.msra.mxu0 0.0
        %3628 = vmatprep.subr.mxu0 0.0
        %3629 = vmatpush1.msra.mxu0 0.0
        %3630 = vmatprep.subr.mxu0 0.0
        %3631 = vmatpush1.msra.mxu0 0.0
        %3632 = vmatprep.subr.mxu0 0.0
        %3633 = vmatpush1.msra.mxu0 0.0
        %3634 = vmatprep.subr.mxu0 0.0
        %3635 = vmatpush1.msra.mxu0 0.0
        %3636 = vmatprep.subr.mxu0 0.0
        %3637 = vmatpush1.msra.mxu0 0.0
        %3638 = vmatprep.subr.mxu0 0.0
        %3639 = vmatpush1.msra.mxu0 0.0
        %3640 = vmatprep.subr.mxu0 0.0
        %3641 = vmatpush1.msra.mxu0 0.0
        %3642 = vmatprep.subr.mxu0 0.0
        %3643 = vmatpush1.msra.mxu0 0.0
        %3644 = vmatprep.subr.mxu0 0.0
        %3645 = vmatpush1.msra.mxu0 0.0
        %3646 = vmatprep.mubr.f32.mxu0 0.0
        %3647 = vmatmul.mubr.f32.gmra.mrb[0].mxu0 %v3484
        %v3648 = vpop.f32.mrb[0].mxu0
        %v3649 = vadd.f32 0.0, %v3648
        %v3650 = vpop.f32.mrb[0].mxu0
        %3651 = vmatprep.mubr.f32.mxu0 0.0
        %3652 = vmatmul.mubr.f32.gmra.mrb[0].mxu0 %v3487
        %v3653 = vpop.f32.mrb[0].mxu0
        %v3654 = vadd.f32 0.0, %v3653
        %v3655 = vpop.f32.mrb[0].mxu0
        %3656 = vmatprep.mubr.f32.mxu0 0.0
        %3657 = vmatmul.mubr.f32.gmra.mrb[0].mxu0 %v3490
        %v3658 = vpop.f32.mrb[0].mxu0
        %v3659 = vadd.f32 0.0, %v3658
        %v3660 = vpop.f32.mrb[0].mxu0
        %3661 = vmatprep.mubr.f32.mxu0 0.0
        %3662 = vmatmul.mubr.f32.gmra.mrb[0].mxu0 %v3493
        %v3663 = vpop.f32.mrb[0].mxu0
        %v3664 = vadd.f32 0.0, %v3663
        %v3665 = vpop.f32.mrb[0].mxu0
        %3666 = vmatprep.mubr.f32.mxu0 0.0
        %3667 = vmatmul.mubr.f32.gmra.mrb[0].mxu0 %v3496
        %v3668 = vpop.f32.mrb[0].mxu0
        %v3669 = vadd.f32 0.0, %v3668
        %v3670 = vpop.f32.mrb[0].mxu0
        %3671 = vmatprep.mubr.f32.mxu0 0.0
        %3672 = vmatmul.mubr.f32.gmra.mrb[0].mxu0 %v3499
        %v3673 = vpop.f32.mrb[0].mxu0
        %v3674 = vadd.f32 0.0, %v3673
        %v3675 = vpop.f32.mrb[0].mxu0
        %3676 = vmatprep.mubr.f32.mxu0 0.0
        %3677 = vmatmul.mubr.f32.gmra.mrb[0].mxu0 %v3502
        %v3678 = vpop.f32.mrb[0].mxu0
        %v3679 = vadd.f32 0.0, %v3678
        %v3680 = vpop.f32.mrb[0].mxu0
        %3681 = vmatprep.mubr.f32.mxu0 0.0
        %3682 = vmatmul.mubr.f32.gmra.mrb[0].mxu0 %v3505
        %v3683 = vpop.f32.mrb[0].mxu0
        %v3684 = vadd.f32 0.0, %v3683
        %v3685 = vpop.f32.mrb[0].mxu0
        %3686 = vmatprep.mubr.f32.mxu0 0.0
        %3687 = vmatmul.mubr.f32.gmra.mrb[0].mxu0 %v3508
        %v3688 = vpop.f32.mrb[0].mxu0
        %v3689 = vadd.f32 0.0, %v3688
        %v3690 = vpop.f32.mrb[0].mxu0
        %3691 = vmatprep.mubr.f32.mxu0 0.0
        %3692 = vmatmul.mubr.f32.gmra.mrb[0].mxu0 %v3511
        %v3693 = vpop.f32.mrb[0].mxu0
        %v3694 = vadd.f32 0.0, %v3693
        %v3695 = vpop.f32.mrb[0].mxu0
        %3696 = vmatprep.mubr.f32.mxu0 0.0
        %3697 = vmatmul.mubr.f32.gmra.mrb[0].mxu0 %v3514
        %v3698 = vpop.f32.mrb[0].mxu0
        %v3699 = vadd.f32 0.0, %v3698
        %v3700 = vpop.f32.mrb[0].mxu0
        %3701 = vmatprep.mubr.f32.mxu0 0.0
        %3702 = vmatmul.mubr.f32.gmra.mrb[0].mxu0 %v3517
        %v3703 = vpop.f32.mrb[0].mxu0
        %v3704 = vadd.f32 0.0, %v3703
        %v3705 = vpop.f32.mrb[0].mxu0
        %3706 = vmatprep.mubr.f32.mxu0 0.0
        %3707 = vmatmul.mubr.f32.gmra.mrb[0].mxu0 %v3520
        %v3708 = vpop.f32.mrb[0].mxu0
        %v3709 = vadd.f32 0.0, %v3708
        %v3710 = vpop.f32.mrb[0].mxu0
        %3711 = vmatprep.mubr.f32.mxu0 0.0
        %3712 = vmatmul.mubr.f32.gmra.mrb[0].mxu0 %v3523
        %v3713 = vpop.f32.mrb[0].mxu0
        %v3714 = vadd.f32 0.0, %v3713
        %v3715 = vpop.f32.mrb[0].mxu0
        %3716 = vmatprep.mubr.f32.mxu0 0.0
        %3717 = vmatmul.mubr.f32.gmra.mrb[0].mxu0 %v3526
        %v3718 = vpop.f32.mrb[0].mxu0
        %v3719 = vadd.f32 0.0, %v3718
        %v3720 = vpop.f32.mrb[0].mxu0
        %3721 = vmatprep.mubr.f32.mxu0 0.0
        %3722 = vmatmul.mubr.f32.gmra.mrb[0].mxu0 %v3529
        %v3723 = vpop.f32.mrb[0].mxu0
        %v3724 = vadd.f32 0.0, %v3723
        %v3725 = vpop.f32.mrb[0].mxu0
        %3726 = vmatprep.mubr.f32.mxu0 0.0
        %3727 = vmatmul.mubr.f32.gmra.mrb[0].mxu0 %v3532
        %v3728 = vpop.f32.mrb[0].mxu0
        %v3729 = vadd.f32 0.0, %v3728
        %v3730 = vpop.f32.mrb[0].mxu0
        %3731 = vmatprep.mubr.f32.mxu0 0.0
        %3732 = vmatmul.mubr.f32.gmra.mrb[0].mxu0 %v3535
        %v3733 = vpop.f32.mrb[0].mxu0
        %v3734 = vadd.f32 0.0, %v3733
        %v3735 = vpop.f32.mrb[0].mxu0
        %3736 = vmatprep.mubr.f32.mxu0 0.0
        %3737 = vmatmul.mubr.f32.gmra.mrb[0].mxu0 %v3538
        %v3738 = vpop.f32.mrb[0].mxu0
        %v3739 = vadd.f32 0.0, %v3738
        %v3740 = vpop.f32.mrb[0].mxu0
        %3741 = vmatprep.mubr.f32.mxu0 0.0
        %3742 = vmatmul.mubr.f32.gmra.mrb[0].mxu0 %v3541
        %v3743 = vpop.f32.mrb[0].mxu0
        %v3744 = vadd.f32 0.0, %v3743
        %v3745 = vpop.f32.mrb[0].mxu0
        %3746 = vmatprep.mubr.f32.mxu0 0.0
        %3747 = vmatmul.mubr.f32.gmra.mrb[0].mxu0 %v3544
        %v3748 = vpop.f32.mrb[0].mxu0
        %v3749 = vadd.f32 0.0, %v3748
        %v3750 = vpop.f32.mrb[0].mxu0
        %3751 = vmatprep.mubr.f32.mxu0 0.0
        %3752 = vmatmul.mubr.f32.gmra.mrb[0].mxu0 %v3547
        %v3753 = vpop.f32.mrb[0].mxu0
        %v3754 = vadd.f32 0.0, %v3753
        %v3755 = vpop.f32.mrb[0].mxu0
        %3756 = vmatprep.mubr.f32.mxu0 0.0
        %3757 = vmatmul.mubr.f32.gmra.mrb[0].mxu0 %v3550
        %v3758 = vpop.f32.mrb[0].mxu0
        %v3759 = vadd.f32 0.0, %v3758
        %v3760 = vpop.f32.mrb[0].mxu0
        %3761 = vmatprep.mubr.f32.mxu0 0.0
        %3762 = vmatmul.mubr.f32.gmra.mrb[0].mxu0 %v3553
        %v3763 = vpop.f32.mrb[0].mxu0
        %v3764 = vadd.f32 0.0, %v3763
        %v3765 = vpop.f32.mrb[0].mxu0
        %3766 = vmatprep.mubr.f32.mxu0 0.0
        %3767 = vmatmul.mubr.f32.gmra.mrb[0].mxu0 %v3556
        %v3768 = vpop.f32.mrb[0].mxu0
        %v3769 = vadd.f32 0.0, %v3768
        %v3770 = vpop.f32.mrb[0].mxu0
        %3771 = vmatprep.mubr.f32.mxu0 0.0
        %3772 = vmatmul.mubr.f32.gmra.mrb[0].mxu0 %v3559
        %v3773 = vpop.f32.mrb[0].mxu0
        %v3774 = vadd.f32 0.0, %v3773
        %v3775 = vpop.f32.mrb[0].mxu0
        %3776 = vmatprep.mubr.f32.mxu0 0.0
        %3777 = vmatmul.mubr.f32.gmra.mrb[0].mxu0 %v3562
        %v3778 = vpop.f32.mrb[0].mxu0
        %v3779 = vadd.f32 0.0, %v3778
        %v3780 = vpop.f32.mrb[0].mxu0
        %3781 = vmatprep.mubr.f32.mxu0 0.0
        %3782 = vmatmul.mubr.f32.gmra.mrb[0].mxu0 %v3565
        %v3783 = vpop.f32.mrb[0].mxu0
        %v3784 = vadd.f32 0.0, %v3783
        %v3785 = vpop.f32.mrb[0].mxu0
        %3786 = vmatprep.mubr.f32.mxu0 0.0
        %3787 = vmatmul.mubr.f32.gmra.mrb[0].mxu0 %v3568
        %v3788 = vpop.f32.mrb[0].mxu0
        %v3789 = vadd.f32 0.0, %v3788
        %v3790 = vpop.f32.mrb[0].mxu0
        %3791 = vmatprep.mubr.f32.mxu0 0.0
        %3792 = vmatmul.mubr.f32.gmra.mrb[0].mxu0 %v3571
        %v3793 = vpop.f32.mrb[0].mxu0
        %v3794 = vadd.f32 0.0, %v3793
        %v3795 = vpop.f32.mrb[0].mxu0
        %3796 = vmatprep.mubr.f32.mxu0 0.0
        %3797 = vmatmul.mubr.f32.gmra.mrb[0].mxu0 %v3574
        %v3798 = vpop.f32.mrb[0].mxu0
        %v3799 = vadd.f32 0.0, %v3798
        %v3800 = vpop.f32.mrb[0].mxu0
        %3801 = vmatprep.mubr.f32.mxu0 0.0
        %3802 = vmatmul.mubr.f32.gmra.mrb[0].mxu0 %v3577
        %v3803 = vpop.f32.mrb[0].mxu0
        %v3804 = vadd.f32 0.0, %v3803
        %v3805 = vpop.f32.mrb[0].mxu0
        %3806 = vdwg.mxu0
        %v3807 = vadd.f32 %v3449, %v3649
        %v3808 = vadd.f32 %v3450, %v3654
        %v3809 = vadd.f32 %v3451, %v3659
        %v3810 = vadd.f32 %v3452, %v3664
        %v3811 = vadd.f32 %v3453, %v3669
        %v3812 = vadd.f32 %v3454, %v3674
        %v3813 = vadd.f32 %v3455, %v3679
        %v3814 = vadd.f32 %v3456, %v3684
        %v3815 = vadd.f32 %v3457, %v3689
        %v3816 = vadd.f32 %v3458, %v3694
        %v3817 = vadd.f32 %v3459, %v3699
        %v3818 = vadd.f32 %v3460, %v3704
        %v3819 = vadd.f32 %v3461, %v3709
        %v3820 = vadd.f32 %v3462, %v3714
        %v3821 = vadd.f32 %v3463, %v3719
        %v3822 = vadd.f32 %v3464, %v3724
        %v3823 = vadd.f32 %v3465, %v3729
        %v3824 = vadd.f32 %v3466, %v3734
        %v3825 = vadd.f32 %v3467, %v3739
        %v3826 = vadd.f32 %v3468, %v3744
        %v3827 = vadd.f32 %v3469, %v3749
        %v3828 = vadd.f32 %v3470, %v3754
        %v3829 = vadd.f32 %v3471, %v3759
        %v3830 = vadd.f32 %v3472, %v3764
        %v3831 = vadd.f32 %v3473, %v3769
        %v3832 = vadd.f32 %v3474, %v3774
        %v3833 = vadd.f32 %v3475, %v3779
        %v3834 = vadd.f32 %v3476, %v3784
        %v3835 = vadd.f32 %v3477, %v3789
        %v3836 = vadd.f32 %v3478, %v3794
        %v3837 = vadd.f32 %v3479, %v3799
        %v3838 = vadd.f32 %v3480, %v3804
        %3839 = vst [vmem:[#allocation2] sm:$0xff] %v3807
        %3840 = vst [vmem:[#allocation2 + $0x8] sm:$0xff] %v3808
        %3841 = vst [vmem:[#allocation2 + $0x10] sm:$0xff] %v3809
        %3842 = vst [vmem:[#allocation2 + $0x18] sm:$0xff] %v3810
        %3843 = vst [vmem:[#allocation2 + $0x20] sm:$0xff] %v3811
        %3844 = vst [vmem:[#allocation2 + $0x28] sm:$0xff] %v3812
        %3845 = vst [vmem:[#allocation2 + $0x30] sm:$0xff] %v3813
        %3846 = vst [vmem:[#allocation2 + $0x38] sm:$0xff] %v3814
        %3847 = vst [vmem:[#allocation2 + $0x40] sm:$0xff] %v3815
        %3848 = vst [vmem:[#allocation2 + $0x48] sm:$0xff] %v3816
        %3849 = vst [vmem:[#allocation2 + $0x50] sm:$0xff] %v3817
        %3850 = vst [vmem:[#allocation2 + $0x58] sm:$0xff] %v3818
        %3851 = vst [vmem:[#allocation2 + $0x60] sm:$0xff] %v3819
        %3852 = vst [vmem:[#allocation2 + $0x68] sm:$0xff] %v3820
        %3853 = vst [vmem:[#allocation2 + $0x70] sm:$0xff] %v3821
        %3854 = vst [vmem:[#allocation2 + $0x78] sm:$0xff] %v3822
        %3855 = vst [vmem:[#allocation2 + $0x80] sm:$0xff] %v3823
        %3856 = vst [vmem:[#allocation2 + $0x88] sm:$0xff] %v3824
        %3857 = vst [vmem:[#allocation2 + $0x90] sm:$0xff] %v3825
        %3858 = vst [vmem:[#allocation2 + $0x98] sm:$0xff] %v3826
        %3859 = vst [vmem:[#allocation2 + $0xa0] sm:$0xff] %v3827
        %3860 = vst [vmem:[#allocation2 + $0xa8] sm:$0xff] %v3828
        %3861 = vst [vmem:[#allocation2 + $0xb0] sm:$0xff] %v3829
        %3862 = vst [vmem:[#allocation2 + $0xb8] sm:$0xff] %v3830
        %3863 = vst [vmem:[#allocation2 + $0xc0] sm:$0xff] %v3831
        %3864 = vst [vmem:[#allocation2 + $0xc8] sm:$0xff] %v3832
        %3865 = vst [vmem:[#allocation2 + $0xd0] sm:$0xff] %v3833
        %3866 = vst [vmem:[#allocation2 + $0xd8] sm:$0xff] %v3834
        %3867 = vst [vmem:[#allocation2 + $0xe0] sm:$0xff] %v3835
        %3868 = vst [vmem:[#allocation2 + $0xe8] sm:$0xff] %v3836
        %3869 = vst [vmem:[#allocation2 + $0xf0] sm:$0xff] %v3837
        %3870 = vst [vmem:[#allocation2 + $0xf8] sm:$0xff] %v3838
        %v3871 = vld [vmem:[%s2962 + $0x2] sm:$0xff]
        %v3872 = vld [vmem:[%s2962 + $0xa] sm:$0xff]
        %v3873 = vld [vmem:[%s2962 + $0x1a] sm:$0xff]
        %v3874 = vld [vmem:[%s2962 + $0x22] sm:$0xff]
        %v3875 = vld [vmem:[%s2962 + $0x32] sm:$0xff]
        %v3876 = vld [vmem:[%s2962 + $0x3a] sm:$0xff]
        %v3877 = vld [vmem:[%s2962 + $0x4a] sm:$0xff]
        %v3878 = vld [vmem:[%s2962 + $0x52] sm:$0xff]
        %v3879 = vld [vmem:[%s2962 + $0x62] sm:$0xff]
        %v3880 = vld [vmem:[%s2962 + $0x6a] sm:$0xff]
        %v3881 = vld [vmem:[%s2962 + $0x7a] sm:$0xff]
        %v3882 = vld [vmem:[%s2962 + $0x82] sm:$0xff]
        %v3883 = vld [vmem:[%s2962 + $0x92] sm:$0xff]
        %v3884 = vld [vmem:[%s2962 + $0x9a] sm:$0xff]
        %v3885 = vld [vmem:[%s2962 + $0xaa] sm:$0xff]
        %v3886 = vld [vmem:[%s2962 + $0xb2] sm:$0xff]
        %v3887 = vld [vmem:[%s2962 + $0xc2] sm:$0xff]
        %v3888 = vld [vmem:[%s2962 + $0xca] sm:$0xff]
        %v3889 = vld [vmem:[%s2962 + $0xda] sm:$0xff]
        %v3890 = vld [vmem:[%s2962 + $0xe2] sm:$0xff]
        %v3891 = vld [vmem:[%s2962 + $0xf2] sm:$0xff]
        %v3892 = vld [vmem:[%s2962 + $0xfa] sm:$0xff]
        %v3893 = vld [vmem:[%s2962 + $0x10a] sm:$0xff]
        %v3894 = vld [vmem:[%s2962 + $0x112] sm:$0xff]
        %v3895 = vld [vmem:[%s2962 + $0x122] sm:$0xff]
        %v3896 = vld [vmem:[%s2962 + $0x12a] sm:$0xff]
        %v3897 = vld [vmem:[%s2962 + $0x13a] sm:$0xff]
        %v3898 = vld [vmem:[%s2962 + $0x142] sm:$0xff]
        %v3899 = vld [vmem:[%s2962 + $0x152] sm:$0xff]
        %v3900 = vld [vmem:[%s2962 + $0x15a] sm:$0xff]
        %v3901 = vld [vmem:[%s2962 + $0x16a] sm:$0xff]
        %v3902 = vld [vmem:[%s2962 + $0x172] sm:$0xff]
        %v3903 = vld [vmem:[#allocation2] sm:$0xff]
        %v3904 = vld [vmem:[#allocation2 + $0x8] sm:$0xff]
        %v3905 = vld [vmem:[#allocation2 + $0x10] sm:$0xff]
        %v3906 = vld [vmem:[#allocation2 + $0x18] sm:$0xff]
        %v3907 = vld [vmem:[#allocation2 + $0x20] sm:$0xff]
        %v3908 = vld [vmem:[#allocation2 + $0x28] sm:$0xff]
        %v3909 = vld [vmem:[#allocation2 + $0x30] sm:$0xff]
        %v3910 = vld [vmem:[#allocation2 + $0x38] sm:$0xff]
        %v3911 = vld [vmem:[#allocation2 + $0x40] sm:$0xff]
        %v3912 = vld [vmem:[#allocation2 + $0x48] sm:$0xff]
        %v3913 = vld [vmem:[#allocation2 + $0x50] sm:$0xff]
        %v3914 = vld [vmem:[#allocation2 + $0x58] sm:$0xff]
        %v3915 = vld [vmem:[#allocation2 + $0x60] sm:$0xff]
        %v3916 = vld [vmem:[#allocation2 + $0x68] sm:$0xff]
        %v3917 = vld [vmem:[#allocation2 + $0x70] sm:$0xff]
        %v3918 = vld [vmem:[#allocation2 + $0x78] sm:$0xff]
        %v3919 = vld [vmem:[#allocation2 + $0x80] sm:$0xff]
        %v3920 = vld [vmem:[#allocation2 + $0x88] sm:$0xff]
        %v3921 = vld [vmem:[#allocation2 + $0x90] sm:$0xff]
        %v3922 = vld [vmem:[#allocation2 + $0x98] sm:$0xff]
        %v3923 = vld [vmem:[#allocation2 + $0xa0] sm:$0xff]
        %v3924 = vld [vmem:[#allocation2 + $0xa8] sm:$0xff]
        %v3925 = vld [vmem:[#allocation2 + $0xb0] sm:$0xff]
        %v3926 = vld [vmem:[#allocation2 + $0xb8] sm:$0xff]
        %v3927 = vld [vmem:[#allocation2 + $0xc0] sm:$0xff]
        %v3928 = vld [vmem:[#allocation2 + $0xc8] sm:$0xff]
        %v3929 = vld [vmem:[#allocation2 + $0xd0] sm:$0xff]
        %v3930 = vld [vmem:[#allocation2 + $0xd8] sm:$0xff]
        %v3931 = vld [vmem:[#allocation2 + $0xe0] sm:$0xff]
        %v3932 = vld [vmem:[#allocation2 + $0xe8] sm:$0xff]
        %v3933 = vld [vmem:[#allocation2 + $0xf0] sm:$0xff]
        %v3934 = vld [vmem:[#allocation2 + $0xf8] sm:$0xff]
        %s3935 = scalar_lea.vmem %s1, 32
        %v3936 = vld [vmem:[%s3935] sm:$0xf]
        %v3938 = vsel %vm297, %v3871, 0
        %v3941 = vsel %vm297, %v3872, 0
        %v3944 = vsel %vm297, %v3873, 0
        %v3947 = vsel %vm297, %v3874, 0
        %v3950 = vsel %vm297, %v3875, 0
        %v3953 = vsel %vm297, %v3876, 0
        %v3956 = vsel %vm297, %v3877, 0
        %v3959 = vsel %vm297, %v3878, 0
        %v3962 = vsel %vm297, %v3879, 0
        %v3965 = vsel %vm297, %v3880, 0
        %v3968 = vsel %vm297, %v3881, 0
        %v3971 = vsel %vm297, %v3882, 0
        %v3974 = vsel %vm297, %v3883, 0
        %v3977 = vsel %vm297, %v3884, 0
        %v3980 = vsel %vm297, %v3885, 0
        %v3983 = vsel %vm297, %v3886, 0
        %v3986 = vsel %vm297, %v3887, 0
        %v3989 = vsel %vm297, %v3888, 0
        %v3992 = vsel %vm297, %v3889, 0
        %v3995 = vsel %vm297, %v3890, 0
        %v3998 = vsel %vm297, %v3891, 0
        %v4001 = vsel %vm297, %v3892, 0
        %v4004 = vsel %vm297, %v3893, 0
        %v4007 = vsel %vm297, %v3894, 0
        %v4010 = vsel %vm297, %v3895, 0
        %v4013 = vsel %vm297, %v3896, 0
        %v4016 = vsel %vm297, %v3897, 0
        %v4019 = vsel %vm297, %v3898, 0
        %v4022 = vsel %vm297, %v3899, 0
        %v4025 = vsel %vm297, %v3900, 0
        %v4028 = vsel %vm297, %v3901, 0
        %v4031 = vsel %vm297, %v3902, 0
        %v4034 = vsel %vm394, %v3936, 0
        %4036 = vmatprep.subr.mxu0 0.0
        %4037 = vmatpush1.msra.mxu0 %v4034
        %4038 = vmatprep.subr.mxu0 0.0
        %4039 = vmatpush1.msra.mxu0 0.0
        %4040 = vmatprep.subr.mxu0 0.0
        %4041 = vmatpush1.msra.mxu0 0.0
        %4042 = vmatprep.subr.mxu0 0.0
        %4043 = vmatpush1.msra.mxu0 0.0
        %4044 = vmatprep.subr.mxu0 0.0
        %4045 = vmatpush1.msra.mxu0 0.0
        %4046 = vmatprep.subr.mxu0 0.0
        %4047 = vmatpush1.msra.mxu0 0.0
        %4048 = vmatprep.subr.mxu0 0.0
        %4049 = vmatpush1.msra.mxu0 0.0
        %4050 = vmatprep.subr.mxu0 0.0
        %4051 = vmatpush1.msra.mxu0 0.0
        %4052 = vmatprep.subr.mxu0 0.0
        %4053 = vmatpush1.msra.mxu0 0.0
        %4054 = vmatprep.subr.mxu0 0.0
        %4055 = vmatpush1.msra.mxu0 0.0
        %4056 = vmatprep.subr.mxu0 0.0
        %4057 = vmatpush1.msra.mxu0 0.0
        %4058 = vmatprep.subr.mxu0 0.0
        %4059 = vmatpush1.msra.mxu0 0.0
        %4060 = vmatprep.subr.mxu0 0.0
        %4061 = vmatpush1.msra.mxu0 0.0
        %4062 = vmatprep.subr.mxu0 0.0
        %4063 = vmatpush1.msra.mxu0 0.0
        %4064 = vmatprep.subr.mxu0 0.0
        %4065 = vmatpush1.msra.mxu0 0.0
        %4066 = vmatprep.subr.mxu0 0.0
        %4067 = vmatpush1.msra.mxu0 0.0
        %4068 = vmatprep.subr.mxu0 0.0
        %4069 = vmatpush1.msra.mxu0 0.0
        %4070 = vmatprep.subr.mxu0 0.0
        %4071 = vmatpush1.msra.mxu0 0.0
        %4072 = vmatprep.subr.mxu0 0.0
        %4073 = vmatpush1.msra.mxu0 0.0
        %4074 = vmatprep.subr.mxu0 0.0
        %4075 = vmatpush1.msra.mxu0 0.0
        %4076 = vmatprep.subr.mxu0 0.0
        %4077 = vmatpush1.msra.mxu0 0.0
        %4078 = vmatprep.subr.mxu0 0.0
        %4079 = vmatpush1.msra.mxu0 0.0
        %4080 = vmatprep.subr.mxu0 0.0
        %4081 = vmatpush1.msra.mxu0 0.0
        %4082 = vmatprep.subr.mxu0 0.0
        %4083 = vmatpush1.msra.mxu0 0.0
        %4084 = vmatprep.subr.mxu0 0.0
        %4085 = vmatpush1.msra.mxu0 0.0
        %4086 = vmatprep.subr.mxu0 0.0
        %4087 = vmatpush1.msra.mxu0 0.0
        %4088 = vmatprep.subr.mxu0 0.0
        %4089 = vmatpush1.msra.mxu0 0.0
        %4090 = vmatprep.subr.mxu0 0.0
        %4091 = vmatpush1.msra.mxu0 0.0
        %4092 = vmatprep.subr.mxu0 0.0
        %4093 = vmatpush1.msra.mxu0 0.0
        %4094 = vmatprep.subr.mxu0 0.0
        %4095 = vmatpush1.msra.mxu0 0.0
        %4096 = vmatprep.subr.mxu0 0.0
        %4097 = vmatpush1.msra.mxu0 0.0
        %4098 = vmatprep.subr.mxu0 0.0
        %4099 = vmatpush1.msra.mxu0 0.0
        %4100 = vmatprep.mubr.f32.mxu0 0.0
        %4101 = vmatmul.mubr.f32.gmra.mrb[0].mxu0 %v3938
        %v4102 = vpop.f32.mrb[0].mxu0
        %v4103 = vadd.f32 0.0, %v4102
        %v4104 = vpop.f32.mrb[0].mxu0
        %4105 = vmatprep.mubr.f32.mxu0 0.0
        %4106 = vmatmul.mubr.f32.gmra.mrb[0].mxu0 %v3941
        %v4107 = vpop.f32.mrb[0].mxu0
        %v4108 = vadd.f32 0.0, %v4107
        %v4109 = vpop.f32.mrb[0].mxu0
        %4110 = vmatprep.mubr.f32.mxu0 0.0
        %4111 = vmatmul.mubr.f32.gmra.mrb[0].mxu0 %v3944
        %v4112 = vpop.f32.mrb[0].mxu0
        %v4113 = vadd.f32 0.0, %v4112
        %v4114 = vpop.f32.mrb[0].mxu0
        %4115 = vmatprep.mubr.f32.mxu0 0.0
        %4116 = vmatmul.mubr.f32.gmra.mrb[0].mxu0 %v3947
        %v4117 = vpop.f32.mrb[0].mxu0
        %v4118 = vadd.f32 0.0, %v4117
        %v4119 = vpop.f32.mrb[0].mxu0
        %4120 = vmatprep.mubr.f32.mxu0 0.0
        %4121 = vmatmul.mubr.f32.gmra.mrb[0].mxu0 %v3950
        %v4122 = vpop.f32.mrb[0].mxu0
        %v4123 = vadd.f32 0.0, %v4122
        %v4124 = vpop.f32.mrb[0].mxu0
        %4125 = vmatprep.mubr.f32.mxu0 0.0
        %4126 = vmatmul.mubr.f32.gmra.mrb[0].mxu0 %v3953
        %v4127 = vpop.f32.mrb[0].mxu0
        %v4128 = vadd.f32 0.0, %v4127
        %v4129 = vpop.f32.mrb[0].mxu0
        %4130 = vmatprep.mubr.f32.mxu0 0.0
        %4131 = vmatmul.mubr.f32.gmra.mrb[0].mxu0 %v3956
        %v4132 = vpop.f32.mrb[0].mxu0
        %v4133 = vadd.f32 0.0, %v4132
        %v4134 = vpop.f32.mrb[0].mxu0
        %4135 = vmatprep.mubr.f32.mxu0 0.0
        %4136 = vmatmul.mubr.f32.gmra.mrb[0].mxu0 %v3959
        %v4137 = vpop.f32.mrb[0].mxu0
        %v4138 = vadd.f32 0.0, %v4137
        %v4139 = vpop.f32.mrb[0].mxu0
        %4140 = vmatprep.mubr.f32.mxu0 0.0
        %4141 = vmatmul.mubr.f32.gmra.mrb[0].mxu0 %v3962
        %v4142 = vpop.f32.mrb[0].mxu0
        %v4143 = vadd.f32 0.0, %v4142
        %v4144 = vpop.f32.mrb[0].mxu0
        %4145 = vmatprep.mubr.f32.mxu0 0.0
        %4146 = vmatmul.mubr.f32.gmra.mrb[0].mxu0 %v3965
        %v4147 = vpop.f32.mrb[0].mxu0
        %v4148 = vadd.f32 0.0, %v4147
        %v4149 = vpop.f32.mrb[0].mxu0
        %4150 = vmatprep.mubr.f32.mxu0 0.0
        %4151 = vmatmul.mubr.f32.gmra.mrb[0].mxu0 %v3968
        %v4152 = vpop.f32.mrb[0].mxu0
        %v4153 = vadd.f32 0.0, %v4152
        %v4154 = vpop.f32.mrb[0].mxu0
        %4155 = vmatprep.mubr.f32.mxu0 0.0
        %4156 = vmatmul.mubr.f32.gmra.mrb[0].mxu0 %v3971
        %v4157 = vpop.f32.mrb[0].mxu0
        %v4158 = vadd.f32 0.0, %v4157
        %v4159 = vpop.f32.mrb[0].mxu0
        %4160 = vmatprep.mubr.f32.mxu0 0.0
        %4161 = vmatmul.mubr.f32.gmra.mrb[0].mxu0 %v3974
        %v4162 = vpop.f32.mrb[0].mxu0
        %v4163 = vadd.f32 0.0, %v4162
        %v4164 = vpop.f32.mrb[0].mxu0
        %4165 = vmatprep.mubr.f32.mxu0 0.0
        %4166 = vmatmul.mubr.f32.gmra.mrb[0].mxu0 %v3977
        %v4167 = vpop.f32.mrb[0].mxu0
        %v4168 = vadd.f32 0.0, %v4167
        %v4169 = vpop.f32.mrb[0].mxu0
        %4170 = vmatprep.mubr.f32.mxu0 0.0
        %4171 = vmatmul.mubr.f32.gmra.mrb[0].mxu0 %v3980
        %v4172 = vpop.f32.mrb[0].mxu0
        %v4173 = vadd.f32 0.0, %v4172
        %v4174 = vpop.f32.mrb[0].mxu0
        %4175 = vmatprep.mubr.f32.mxu0 0.0
        %4176 = vmatmul.mubr.f32.gmra.mrb[0].mxu0 %v3983
        %v4177 = vpop.f32.mrb[0].mxu0
        %v4178 = vadd.f32 0.0, %v4177
        %v4179 = vpop.f32.mrb[0].mxu0
        %4180 = vmatprep.mubr.f32.mxu0 0.0
        %4181 = vmatmul.mubr.f32.gmra.mrb[0].mxu0 %v3986
        %v4182 = vpop.f32.mrb[0].mxu0
        %v4183 = vadd.f32 0.0, %v4182
        %v4184 = vpop.f32.mrb[0].mxu0
        %4185 = vmatprep.mubr.f32.mxu0 0.0
        %4186 = vmatmul.mubr.f32.gmra.mrb[0].mxu0 %v3989
        %v4187 = vpop.f32.mrb[0].mxu0
        %v4188 = vadd.f32 0.0, %v4187
        %v4189 = vpop.f32.mrb[0].mxu0
        %4190 = vmatprep.mubr.f32.mxu0 0.0
        %4191 = vmatmul.mubr.f32.gmra.mrb[0].mxu0 %v3992
        %v4192 = vpop.f32.mrb[0].mxu0
        %v4193 = vadd.f32 0.0, %v4192
        %v4194 = vpop.f32.mrb[0].mxu0
        %4195 = vmatprep.mubr.f32.mxu0 0.0
        %4196 = vmatmul.mubr.f32.gmra.mrb[0].mxu0 %v3995
        %v4197 = vpop.f32.mrb[0].mxu0
        %v4198 = vadd.f32 0.0, %v4197
        %v4199 = vpop.f32.mrb[0].mxu0
        %4200 = vmatprep.mubr.f32.mxu0 0.0
        %4201 = vmatmul.mubr.f32.gmra.mrb[0].mxu0 %v3998
        %v4202 = vpop.f32.mrb[0].mxu0
        %v4203 = vadd.f32 0.0, %v4202
        %v4204 = vpop.f32.mrb[0].mxu0
        %4205 = vmatprep.mubr.f32.mxu0 0.0
        %4206 = vmatmul.mubr.f32.gmra.mrb[0].mxu0 %v4001
        %v4207 = vpop.f32.mrb[0].mxu0
        %v4208 = vadd.f32 0.0, %v4207
        %v4209 = vpop.f32.mrb[0].mxu0
        %4210 = vmatprep.mubr.f32.mxu0 0.0
        %4211 = vmatmul.mubr.f32.gmra.mrb[0].mxu0 %v4004
        %v4212 = vpop.f32.mrb[0].mxu0
        %v4213 = vadd.f32 0.0, %v4212
        %v4214 = vpop.f32.mrb[0].mxu0
        %4215 = vmatprep.mubr.f32.mxu0 0.0
        %4216 = vmatmul.mubr.f32.gmra.mrb[0].mxu0 %v4007
        %v4217 = vpop.f32.mrb[0].mxu0
        %v4218 = vadd.f32 0.0, %v4217
        %v4219 = vpop.f32.mrb[0].mxu0
        %4220 = vmatprep.mubr.f32.mxu0 0.0
        %4221 = vmatmul.mubr.f32.gmra.mrb[0].mxu0 %v4010
        %v4222 = vpop.f32.mrb[0].mxu0
        %v4223 = vadd.f32 0.0, %v4222
        %v4224 = vpop.f32.mrb[0].mxu0
        %4225 = vmatprep.mubr.f32.mxu0 0.0
        %4226 = vmatmul.mubr.f32.gmra.mrb[0].mxu0 %v4013
        %v4227 = vpop.f32.mrb[0].mxu0
        %v4228 = vadd.f32 0.0, %v4227
        %v4229 = vpop.f32.mrb[0].mxu0
        %4230 = vmatprep.mubr.f32.mxu0 0.0
        %4231 = vmatmul.mubr.f32.gmra.mrb[0].mxu0 %v4016
        %v4232 = vpop.f32.mrb[0].mxu0
        %v4233 = vadd.f32 0.0, %v4232
        %v4234 = vpop.f32.mrb[0].mxu0
        %4235 = vmatprep.mubr.f32.mxu0 0.0
        %4236 = vmatmul.mubr.f32.gmra.mrb[0].mxu0 %v4019
        %v4237 = vpop.f32.mrb[0].mxu0
        %v4238 = vadd.f32 0.0, %v4237
        %v4239 = vpop.f32.mrb[0].mxu0
        %4240 = vmatprep.mubr.f32.mxu0 0.0
        %4241 = vmatmul.mubr.f32.gmra.mrb[0].mxu0 %v4022
        %v4242 = vpop.f32.mrb[0].mxu0
        %v4243 = vadd.f32 0.0, %v4242
        %v4244 = vpop.f32.mrb[0].mxu0
        %4245 = vmatprep.mubr.f32.mxu0 0.0
        %4246 = vmatmul.mubr.f32.gmra.mrb[0].mxu0 %v4025
        %v4247 = vpop.f32.mrb[0].mxu0
        %v4248 = vadd.f32 0.0, %v4247
        %v4249 = vpop.f32.mrb[0].mxu0
        %4250 = vmatprep.mubr.f32.mxu0 0.0
        %4251 = vmatmul.mubr.f32.gmra.mrb[0].mxu0 %v4028
        %v4252 = vpop.f32.mrb[0].mxu0
        %v4253 = vadd.f32 0.0, %v4252
        %v4254 = vpop.f32.mrb[0].mxu0
        %4255 = vmatprep.mubr.f32.mxu0 0.0
        %4256 = vmatmul.mubr.f32.gmra.mrb[0].mxu0 %v4031
        %v4257 = vpop.f32.mrb[0].mxu0
        %v4258 = vadd.f32 0.0, %v4257
        %v4259 = vpop.f32.mrb[0].mxu0
        %4260 = vdwg.mxu0
        %v4261 = vadd.f32 %v3903, %v4103
        %v4262 = vadd.f32 %v3904, %v4108
        %v4263 = vadd.f32 %v3905, %v4113
        %v4264 = vadd.f32 %v3906, %v4118
        %v4265 = vadd.f32 %v3907, %v4123
        %v4266 = vadd.f32 %v3908, %v4128
        %v4267 = vadd.f32 %v3909, %v4133
        %v4268 = vadd.f32 %v3910, %v4138
        %v4269 = vadd.f32 %v3911, %v4143
        %v4270 = vadd.f32 %v3912, %v4148
        %v4271 = vadd.f32 %v3913, %v4153
        %v4272 = vadd.f32 %v3914, %v4158
        %v4273 = vadd.f32 %v3915, %v4163
        %v4274 = vadd.f32 %v3916, %v4168
        %v4275 = vadd.f32 %v3917, %v4173
        %v4276 = vadd.f32 %v3918, %v4178
        %v4277 = vadd.f32 %v3919, %v4183
        %v4278 = vadd.f32 %v3920, %v4188
        %v4279 = vadd.f32 %v3921, %v4193
        %v4280 = vadd.f32 %v3922, %v4198
        %v4281 = vadd.f32 %v3923, %v4203
        %v4282 = vadd.f32 %v3924, %v4208
        %v4283 = vadd.f32 %v3925, %v4213
        %v4284 = vadd.f32 %v3926, %v4218
        %v4285 = vadd.f32 %v3927, %v4223
        %v4286 = vadd.f32 %v3928, %v4228
        %v4287 = vadd.f32 %v3929, %v4233
        %v4288 = vadd.f32 %v3930, %v4238
        %v4289 = vadd.f32 %v3931, %v4243
        %v4290 = vadd.f32 %v3932, %v4248
        %v4291 = vadd.f32 %v3933, %v4253
        %v4292 = vadd.f32 %v3934, %v4258
        %4293 = vst [vmem:[#allocation2] sm:$0xff] %v4261
        %4294 = vst [vmem:[#allocation2 + $0x8] sm:$0xff] %v4262
        %4295 = vst [vmem:[#allocation2 + $0x10] sm:$0xff] %v4263
        %4296 = vst [vmem:[#allocation2 + $0x18] sm:$0xff] %v4264
        %4297 = vst [vmem:[#allocation2 + $0x20] sm:$0xff] %v4265
        %4298 = vst [vmem:[#allocation2 + $0x28] sm:$0xff] %v4266
        %4299 = vst [vmem:[#allocation2 + $0x30] sm:$0xff] %v4267
        %4300 = vst [vmem:[#allocation2 + $0x38] sm:$0xff] %v4268
        %4301 = vst [vmem:[#allocation2 + $0x40] sm:$0xff] %v4269
        %4302 = vst [vmem:[#allocation2 + $0x48] sm:$0xff] %v4270
        %4303 = vst [vmem:[#allocation2 + $0x50] sm:$0xff] %v4271
        %4304 = vst [vmem:[#allocation2 + $0x58] sm:$0xff] %v4272
        %4305 = vst [vmem:[#allocation2 + $0x60] sm:$0xff] %v4273
        %4306 = vst [vmem:[#allocation2 + $0x68] sm:$0xff] %v4274
        %4307 = vst [vmem:[#allocation2 + $0x70] sm:$0xff] %v4275
        %4308 = vst [vmem:[#allocation2 + $0x78] sm:$0xff] %v4276
        %4309 = vst [vmem:[#allocation2 + $0x80] sm:$0xff] %v4277
        %4310 = vst [vmem:[#allocation2 + $0x88] sm:$0xff] %v4278
        %4311 = vst [vmem:[#allocation2 + $0x90] sm:$0xff] %v4279
        %4312 = vst [vmem:[#allocation2 + $0x98] sm:$0xff] %v4280
        %4313 = vst [vmem:[#allocation2 + $0xa0] sm:$0xff] %v4281
        %4314 = vst [vmem:[#allocation2 + $0xa8] sm:$0xff] %v4282
        %4315 = vst [vmem:[#allocation2 + $0xb0] sm:$0xff] %v4283
        %4316 = vst [vmem:[#allocation2 + $0xb8] sm:$0xff] %v4284
        %4317 = vst [vmem:[#allocation2 + $0xc0] sm:$0xff] %v4285
        %4318 = vst [vmem:[#allocation2 + $0xc8] sm:$0xff] %v4286
        %4319 = vst [vmem:[#allocation2 + $0xd0] sm:$0xff] %v4287
        %4320 = vst [vmem:[#allocation2 + $0xd8] sm:$0xff] %v4288
        %4321 = vst [vmem:[#allocation2 + $0xe0] sm:$0xff] %v4289
        %4322 = vst [vmem:[#allocation2 + $0xe8] sm:$0xff] %v4290
        %4323 = vst [vmem:[#allocation2 + $0xf0] sm:$0xff] %v4291
        %4324 = vst [vmem:[#allocation2 + $0xf8] sm:$0xff] %v4292
        %v4325 = vld [vmem:[#allocation2] sm:$0xff]
        %v4326 = vld [vmem:[#allocation2 + $0x8] sm:$0xff]
        %v4327 = vld [vmem:[#allocation2 + $0x10] sm:$0xff]
        %v4328 = vld [vmem:[#allocation2 + $0x18] sm:$0xff]
        %v4329 = vld [vmem:[#allocation2 + $0x20] sm:$0xff]
        %v4330 = vld [vmem:[#allocation2 + $0x28] sm:$0xff]
        %v4331 = vld [vmem:[#allocation2 + $0x30] sm:$0xff]
        %v4332 = vld [vmem:[#allocation2 + $0x38] sm:$0xff]
        %v4333 = vld [vmem:[#allocation2 + $0x40] sm:$0xff]
        %v4334 = vld [vmem:[#allocation2 + $0x48] sm:$0xff]
        %v4335 = vld [vmem:[#allocation2 + $0x50] sm:$0xff]
        %v4336 = vld [vmem:[#allocation2 + $0x58] sm:$0xff]
        %v4337 = vld [vmem:[#allocation2 + $0x60] sm:$0xff]
        %v4338 = vld [vmem:[#allocation2 + $0x68] sm:$0xff]
        %v4339 = vld [vmem:[#allocation2 + $0x70] sm:$0xff]
        %v4340 = vld [vmem:[#allocation2 + $0x78] sm:$0xff]
        %v4341 = vld [vmem:[#allocation2 + $0x80] sm:$0xff]
        %v4342 = vld [vmem:[#allocation2 + $0x88] sm:$0xff]
        %v4343 = vld [vmem:[#allocation2 + $0x90] sm:$0xff]
        %v4344 = vld [vmem:[#allocation2 + $0x98] sm:$0xff]
        %v4345 = vld [vmem:[#allocation2 + $0xa0] sm:$0xff]
        %v4346 = vld [vmem:[#allocation2 + $0xa8] sm:$0xff]
        %v4347 = vld [vmem:[#allocation2 + $0xb0] sm:$0xff]
        %v4348 = vld [vmem:[#allocation2 + $0xb8] sm:$0xff]
        %v4349 = vld [vmem:[#allocation2 + $0xc0] sm:$0xff]
        %v4350 = vld [vmem:[#allocation2 + $0xc8] sm:$0xff]
        %v4351 = vld [vmem:[#allocation2 + $0xd0] sm:$0xff]
        %v4352 = vld [vmem:[#allocation2 + $0xd8] sm:$0xff]
        %v4353 = vld [vmem:[#allocation2 + $0xe0] sm:$0xff]
        %v4354 = vld [vmem:[#allocation2 + $0xe8] sm:$0xff]
        %v4355 = vld [vmem:[#allocation2 + $0xf0] sm:$0xff]
        %v4356 = vld [vmem:[#allocation2 + $0xf8] sm:$0xff]
        %4357 = vst [vmem:[%s183] sm:$0xff] %v4325
        %4358 = vst [vmem:[%s183 + $0x8] sm:$0xff] %v4326
        %4359 = vst [vmem:[%s183 + $0x10] sm:$0xff] %v4327
        %4360 = vst [vmem:[%s183 + $0x18] sm:$0xff] %v4328
        %4361 = vst [vmem:[%s183 + $0x20] sm:$0xff] %v4329
        %4362 = vst [vmem:[%s183 + $0x28] sm:$0xff] %v4330
        %4363 = vst [vmem:[%s183 + $0x30] sm:$0xff] %v4331
        %4364 = vst [vmem:[%s183 + $0x38] sm:$0xff] %v4332
        %4365 = vst [vmem:[%s183 + $0x40] sm:$0xff] %v4333
        %4366 = vst [vmem:[%s183 + $0x48] sm:$0xff] %v4334
        %4367 = vst [vmem:[%s183 + $0x50] sm:$0xff] %v4335
        %4368 = vst [vmem:[%s183 + $0x58] sm:$0xff] %v4336
        %4369 = vst [vmem:[%s183 + $0x60] sm:$0xff] %v4337
        %4370 = vst [vmem:[%s183 + $0x68] sm:$0xff] %v4338
        %4371 = vst [vmem:[%s183 + $0x70] sm:$0xff] %v4339
        %4372 = vst [vmem:[%s183 + $0x78] sm:$0xff] %v4340
        %4373 = vst [vmem:[%s183 + $0x80] sm:$0xff] %v4341
        %4374 = vst [vmem:[%s183 + $0x88] sm:$0xff] %v4342
        %4375 = vst [vmem:[%s183 + $0x90] sm:$0xff] %v4343
        %4376 = vst [vmem:[%s183 + $0x98] sm:$0xff] %v4344
        %4377 = vst [vmem:[%s183 + $0xa0] sm:$0xff] %v4345
        %4378 = vst [vmem:[%s183 + $0xa8] sm:$0xff] %v4346
        %4379 = vst [vmem:[%s183 + $0xb0] sm:$0xff] %v4347
        %4380 = vst [vmem:[%s183 + $0xb8] sm:$0xff] %v4348
        %4381 = vst [vmem:[%s183 + $0xc0] sm:$0xff] %v4349
        %4382 = vst [vmem:[%s183 + $0xc8] sm:$0xff] %v4350
        %4383 = vst [vmem:[%s183 + $0xd0] sm:$0xff] %v4351
        %4384 = vst [vmem:[%s183 + $0xd8] sm:$0xff] %v4352
        %4385 = vst [vmem:[%s183 + $0xe0] sm:$0xff] %v4353
        %4386 = vst [vmem:[%s183 + $0xe8] sm:$0xff] %v4354
        %4387 = vst [vmem:[%s183 + $0xf0] sm:$0xff] %v4355
        %4388 = vst [vmem:[%s183 + $0xf8] sm:$0xff] %v4356
        %v4389 = vadd.f32 %v4325, %v4326
        %v4390 = vadd.f32 %v4389, %v4327
        %v4391 = vadd.f32 %v4390, %v4328
        %v4392 = vadd.f32 %v4391, %v4329
        %v4393 = vadd.f32 %v4392, %v4330
        %v4394 = vadd.f32 %v4393, %v4331
        %v4395 = vadd.f32 %v4394, %v4332
        %v4396 = vadd.f32 %v4395, %v4333
        %v4397 = vadd.f32 %v4396, %v4334
        %v4398 = vadd.f32 %v4397, %v4335
        %v4399 = vadd.f32 %v4398, %v4336
        %v4400 = vadd.f32 %v4399, %v4337
        %v4401 = vadd.f32 %v4400, %v4338
        %v4402 = vadd.f32 %v4401, %v4339
        %v4403 = vadd.f32 %v4402, %v4340
        %v4404 = vadd.f32 %v4403, %v4341
        %v4405 = vadd.f32 %v4404, %v4342
        %v4406 = vadd.f32 %v4405, %v4343
        %v4407 = vadd.f32 %v4406, %v4344
        %v4408 = vadd.f32 %v4407, %v4345
        %v4409 = vadd.f32 %v4408, %v4346
        %v4410 = vadd.f32 %v4409, %v4347
        %v4411 = vadd.f32 %v4410, %v4348
        %v4412 = vadd.f32 %v4411, %v4349
        %v4413 = vadd.f32 %v4412, %v4350
        %v4414 = vadd.f32 %v4413, %v4351
        %v4415 = vadd.f32 %v4414, %v4352
        %v4416 = vadd.f32 %v4415, %v4353
        %v4417 = vadd.f32 %v4416, %v4354
        %v4418 = vadd.f32 %v4417, %v4355
        %v4419 = vadd.f32 %v4418, %v4356
        %v4420 = vrot.slane %v4419, 4
        %v4421 = vadd.f32 %v4419, %v4420
        %v4422 = vrot.slane %v4421, 2
        %v4423 = vadd.f32 %v4421, %v4422
        %v4424 = vrot.slane %v4423, 1
        %v4425 = vadd.f32 %v4423, %v4424
        %v4426 = vmul.f32 %v4325, %v4325
        %v4427 = vmul.f32 %v4326, %v4326
        %v4428 = vmul.f32 %v4327, %v4327
        %v4429 = vmul.f32 %v4328, %v4328
        %v4430 = vmul.f32 %v4329, %v4329
        %v4431 = vmul.f32 %v4330, %v4330
        %v4432 = vmul.f32 %v4331, %v4331
        %v4433 = vmul.f32 %v4332, %v4332
        %v4434 = vmul.f32 %v4333, %v4333
        %v4435 = vmul.f32 %v4334, %v4334
        %v4436 = vmul.f32 %v4335, %v4335
        %v4437 = vmul.f32 %v4336, %v4336
        %v4438 = vmul.f32 %v4337, %v4337
        %v4439 = vmul.f32 %v4338, %v4338
        %v4440 = vmul.f32 %v4339, %v4339
        %v4441 = vmul.f32 %v4340, %v4340
        %v4442 = vmul.f32 %v4341, %v4341
        %v4443 = vmul.f32 %v4342, %v4342
        %v4444 = vmul.f32 %v4343, %v4343
        %v4445 = vmul.f32 %v4344, %v4344
        %v4446 = vmul.f32 %v4345, %v4345
        %v4447 = vmul.f32 %v4346, %v4346
        %v4448 = vmul.f32 %v4347, %v4347
        %v4449 = vmul.f32 %v4348, %v4348
        %v4450 = vmul.f32 %v4349, %v4349
        %v4451 = vmul.f32 %v4350, %v4350
        %v4452 = vmul.f32 %v4351, %v4351
        %v4453 = vmul.f32 %v4352, %v4352
        %v4454 = vmul.f32 %v4353, %v4353
        %v4455 = vmul.f32 %v4354, %v4354
        %v4456 = vmul.f32 %v4355, %v4355
        %v4457 = vmul.f32 %v4356, %v4356
        %v4458 = vadd.f32 %v4426, %v4427
        %v4459 = vadd.f32 %v4458, %v4428
        %v4460 = vadd.f32 %v4459, %v4429
        %v4461 = vadd.f32 %v4460, %v4430
        %v4462 = vadd.f32 %v4461, %v4431
        %v4463 = vadd.f32 %v4462, %v4432
        %v4464 = vadd.f32 %v4463, %v4433
        %v4465 = vadd.f32 %v4464, %v4434
        %v4466 = vadd.f32 %v4465, %v4435
        %v4467 = vadd.f32 %v4466, %v4436
        %v4468 = vadd.f32 %v4467, %v4437
        %v4469 = vadd.f32 %v4468, %v4438
        %v4470 = vadd.f32 %v4469, %v4439
        %v4471 = vadd.f32 %v4470, %v4440
        %v4472 = vadd.f32 %v4471, %v4441
        %v4473 = vadd.f32 %v4472, %v4442
        %v4474 = vadd.f32 %v4473, %v4443
        %v4475 = vadd.f32 %v4474, %v4444
        %v4476 = vadd.f32 %v4475, %v4445
        %v4477 = vadd.f32 %v4476, %v4446
        %v4478 = vadd.f32 %v4477, %v4447
        %v4479 = vadd.f32 %v4478, %v4448
        %v4480 = vadd.f32 %v4479, %v4449
        %v4481 = vadd.f32 %v4480, %v4450
        %v4482 = vadd.f32 %v4481, %v4451
        %v4483 = vadd.f32 %v4482, %v4452
        %v4484 = vadd.f32 %v4483, %v4453
        %v4485 = vadd.f32 %v4484, %v4454
        %v4486 = vadd.f32 %v4485, %v4455
        %v4487 = vadd.f32 %v4486, %v4456
        %v4488 = vadd.f32 %v4487, %v4457
        %v4489 = vrot.slane %v4488, 4
        %v4490 = vadd.f32 %v4488, %v4489
        %v4491 = vrot.slane %v4490, 2
        %v4492 = vadd.f32 %v4490, %v4491
        %v4493 = vrot.slane %v4492, 1
        %v4494 = vadd.f32 %v4492, %v4493
        %vm4495 = vcmask 1040384
        %v4496 = vsel %vm4495, %v4425, %v4494
        %4497 = vst [vmem:[%s190] sm:$0x3] %v4496
        %s4498 = sand.u32 %s90, 1
        %s4499 = scalar_lea.sflag [#allocation4], %s4498
        %s4500 = sand.u32 %s90, 1
        %s4501 = smul.addr %s4500, 256
        %s4502 = scalar_lea.vmem [#allocation3], %s4501
        %s4503 = sand.u32 %s118, 1
        %s4504 = scalar_lea.sflag [#allocation6], %s4503
        %s4505 = sand.u32 %s118, 1
        %s4506 = smul.addr %s4505, 2
        %s4507 = scalar_lea.vmem [#allocation5], %s4506
        // Predicated region
        $region29: #{tpu_custom_call.1} parent=27 // pred_check
          %p4508 = pneg %p100
        $region30: #{tpu_custom_call.1} parent=27 // pred_check_branch
          %4510 = sbr.rel (%p4508) target = $region32
        $region31: #{tpu_custom_call.1} parent=27 // pred_region
          %s4511 = smul.u32 16, %s26
          %s4513 = ssub.s32 4096, 4096
          %4514 = vsyncadd %s4499, %s4513
          %s4515 = smul.addr %s4511, 2
          %s4516 = smul.addr %s25, 32
          %s4517 = sadd.s32 %s4515, %s4516
          %s4518 = smul.addr %s4517, 128
          %s4519 = scalar_lea.hbm %s2, %s4518
          %s4520 = sshll.u32 %s4502, 4
          %s4521 = int_to_ptr.vmem [resolvable:$true] %s4520
          %4526 = dma.vmem_to_hbm [thread:$0]  %s4521, 4096, %s4519, %s4499, 128, 128, 8
        $region32: #{tpu_custom_call.1} parent=27 // pred_fallthru
          _
        // Predicated region
        $region33: #{tpu_custom_call.1} parent=27 // pred_check
          %p4527 = pneg %p128
        $region34: #{tpu_custom_call.1} parent=27 // pred_check_branch
          %4529 = sbr.rel (%p4527) target = $region36
        $region35: #{tpu_custom_call.1} parent=27 // pred_region
          %s4531 = ssub.s32 32, 32
          %4532 = vsyncadd %s4504, %s4531
          %s4533 = sadd.s32 %s26, %s25
          %s4534 = smul.addr %s4533, 32
          %s4535 = scalar_lea.hbm %s3, %s4534
          %s4537 = sshll.u32 %s4507, 4
          %s4538 = int_to_ptr.vmem [resolvable:$true] %s4537
          %4540 = dma.vmem_to_hbm [thread:$0]  %s4538, 32, %s4535, %s4504
        $region36: #{tpu_custom_call.1} parent=27 // pred_fallthru
          _
      $region28: #{tpu_custom_call.1} parent=5 // pred_fallthru
        _
      %p4541 = scmp.le.s32.totalorder 2, %s16
      // Predicated region
      $region37: #{tpu_custom_call.1} parent=5 // pred_check
        %p4542 = pneg %p4541
      $region38: #{tpu_custom_call.1} parent=5 // pred_check_branch
        %4544 = sbr.rel (%p4542) target = $region40
      $region39: #{tpu_custom_call.1} parent=5 // pred_region
        %s4545 = ssub.s32 %s16, 2
        // Predicated region
        $region41: #{tpu_custom_call.1} parent=39 // pred_check
          %p4546 = pneg %p106
        $region42: #{tpu_custom_call.1} parent=39 // pred_check_branch
          %4548 = sbr.rel (%p4546) target = $region44
        $region43: #{tpu_custom_call.1} parent=39 // pred_region
          %s4549 = sand.u32 %s91, 1
          %s4550 = scalar_lea.sflag [#allocation4], %s4549
          %s4551 = sand.u32 %s91, 1
          %s4552 = smul.addr %s4551, 256
          %s4553 = scalar_lea.vmem [#allocation3], %s4552
          %4554 = dma.done %s4550, 4096
        $region44: #{tpu_custom_call.1} parent=39 // pred_fallthru
          _
        // Predicated region
        $region45: #{tpu_custom_call.1} parent=39 // pred_check
          %p4555 = pneg %p134
        $region46: #{tpu_custom_call.1} parent=39 // pred_check_branch
          %4557 = sbr.rel (%p4555) target = $region48
        $region47: #{tpu_custom_call.1} parent=39 // pred_region
          %s4558 = sand.u32 %s119, 1
          %s4559 = scalar_lea.sflag [#allocation6], %s4558
          %s4560 = sand.u32 %s119, 1
          %s4561 = smul.addr %s4560, 2
          %s4562 = scalar_lea.vmem [#allocation5], %s4561
          %4563 = dma.done %s4559, 32
        $region48: #{tpu_custom_call.1} parent=39 // pred_fallthru
          _
      $region40: #{tpu_custom_call.1} parent=5 // pred_fallthru
        _
    $region6: #{tpu_custom_call.1} parent=1 // loop_footer
      %s20 = sadd.s32 1, %s16
    $region7: #{tpu_custom_call.1} parent=1 // loop_footer_branch
      %15 = sbr.rel target = $region3
    $region8: #{tpu_custom_call.1} parent=1 // loop_exit
      _
    %4564 = vsyncpa [#allocation4], 1
    %s4565 = scalar_lea.sflag [#allocation4], 1
    %4566 = vsyncpa %s4565, 1
    %4567 = vsyncpa [#allocation6], 1
    %s4568 = scalar_lea.sflag [#allocation6], 1
    %4569 = vsyncpa %s4568, 1

</llo_original>
